<compile_context>
chip_gen: v7x
topology: tpu7x:2x2x1
jax: 0.10.0
libtpu: 0.0.40
codegen_flags: <defaults>
</compile_context>

<pallas_src>
import jax
import jax.numpy as jnp
from jax.experimental import pallas as pl
from jax.experimental.pallas import tpu as pltpu

EPS = 1e-5
SLAB_ROWS = 16     # padded rows for the packed bias/BN-param slab
SLAB_COLS = 512


def _bn_scale_shift(h, gamma=None, beta=None):
    """Training-mode BatchNorm1d folded to per-feature (scale, shift)."""
    mean = jnp.mean(h, axis=0, keepdims=True)
    c = h - mean
    var = jnp.mean(c * c, axis=0, keepdims=True)          # biased batch variance
    inv = jax.lax.rsqrt(var + EPS)
    if gamma is None:                                      # affine=False
        return inv, -mean * inv
    scale = gamma * inv
    return scale, beta - mean * scale


def mlp_kernel(x_ref, w0_ref, w1_ref, w2_ref, wc_ref, p_ref, out_ref):
    p = p_ref[...]  # (16, 512) f32 slab: b0,g0,be0,b1,g1,be1,b2,g2,be2,bc

    # fc0 + BN0 + ReLU (single full-K matmul; bf16 x bf16 -> f32 accumulate)
    h = jnp.dot(x_ref[...], w0_ref[...],
                preferred_element_type=jnp.float32) + p[0:1, :]
    s, t = _bn_scale_shift(h, p[1:2, :], p[2:3, :])
    h = jnp.maximum(h * s + t, 0.0)

    # fc1 + BN1 + ReLU
    h = jnp.dot(h.astype(jnp.bfloat16), w1_ref[...],
                preferred_element_type=jnp.float32) + p[3:4, :256]
    s, t = _bn_scale_shift(h, p[4:5, :256], p[5:6, :256])
    h = jnp.maximum(h * s + t, 0.0)

    # fc2 + BN2 + ReLU
    h = jnp.dot(h.astype(jnp.bfloat16), w2_ref[...],
                preferred_element_type=jnp.float32) + p[6:7, :128]
    s, t = _bn_scale_shift(h, p[7:8, :128], p[8:9, :128])
    h = jnp.maximum(h * s + t, 0.0)

    # classifier + BN (affine=False)
    h = jnp.dot(h.astype(jnp.bfloat16), wc_ref[...],
                preferred_element_type=jnp.float32) + p[9:10, :10]
    s, t = _bn_scale_shift(h)
    out_ref[...] = h * s + t


def prepare_params(params):
    """One-time conversion: weights -> bf16, tiny vectors -> one padded f32 slab."""
    (w0, b0, g0, be0, w1, b1, g1, be1, w2, b2, g2, be2, wc, bc) = params
    slab = jnp.zeros((SLAB_ROWS, SLAB_COLS), jnp.float32)
    for i, v in enumerate((b0, g0, be0, b1, g1, be1, b2, g2, be2, bc)):
        v = v.reshape(-1)
        slab = slab.at[i, : v.shape[0]].set(v)
    to_bf16 = lambda w: w.astype(jnp.bfloat16)
    return to_bf16(w0), to_bf16(w1), to_bf16(w2), to_bf16(wc), slab


@jax.jit
def custom_cnn_4_forward(x, prepared):
    w0, w1, w2, wc, slab = prepared
    B = x.shape[0]
    n_out = wc.shape[1]
    x = x.astype(jnp.bfloat16)

    flops = 2 * B * (3072 * 512 + 512 * 256 + 256 * 128 + 128 * 10)
    transcendentals = 512 + 256 + 128 + 10          # one rsqrt lane per BN feature
    bytes_accessed = (x.size * 2 + w0.size * 2 + w1.size * 2 + w2.size * 2
                      + wc.size * 2 + slab.size * 4 + B * n_out * 4)

    # Grid-less call: everything is fetched once and stays resident in VMEM
    # (~3.6 MiB total), eliminating all per-step pipeline overhead.
    return pl.pallas_call(
        mlp_kernel,
        out_shape=jax.ShapeDtypeStruct((B, n_out), jnp.float32),
        in_specs=[
            pl.BlockSpec(x.shape, lambda: (0, 0)),      # x resident (48 KiB)
            pl.BlockSpec(w0.shape, lambda: (0, 0)),     # w0 resident (3 MiB bf16)
            pl.BlockSpec(w1.shape, lambda: (0, 0)),
            pl.BlockSpec(w2.shape, lambda: (0, 0)),
            pl.BlockSpec(wc.shape, lambda: (0, 0)),
            pl.BlockSpec(slab.shape, lambda: (0, 0)),   # packed bias/BN slab
        ],
        out_specs=pl.BlockSpec((B, n_out), lambda: (0, 0)),
        cost_estimate=pl.CostEstimate(flops=flops,
                                      transcendentals=transcendentals,
                                      bytes_accessed=bytes_accessed),
    )(x, w0, w1, w2, wc, slab)


def reference_forward(x, params, cast_bf16=False):
    (w0, b0, g0, be0, w1, b1, g1, be1, w2, b2, g2, be2, wc, bc) = params

    def mm(a, w):
        if cast_bf16:
            a = a.astype(jnp.bfloat16)
            w = w.astype(jnp.bfloat16)
        return jnp.dot(a, w, preferred_element_type=jnp.float32)

    def bn(h, g=None, b=None):
        mean = jnp.mean(h, axis=0, keepdims=True)
        var = jnp.mean((h - mean) ** 2, axis=0, keepdims=True)
        y = (h - mean) * jax.lax.rsqrt(var + EPS)
        if g is not None:
            y = y * g + b
        return y

    h = jnp.maximum(bn(mm(x, w0) + b0, g0, be0), 0.0)
    h = jnp.maximum(bn(mm(h, w1) + b1, g1, be1), 0.0)
    h = jnp.maximum(bn(mm(h, w2) + b2, g2, be2), 0.0)
    return bn(mm(h, wc) + bc)


def init_params(key, input_features=3072):
    # PyTorch reset_parameters: every parameter (incl. BN gamma/beta) ~ U(-stdv, stdv),
    # stdv = 1/sqrt(input_features).  classifier_bn is affine=False (no params).
    stdv = 1.0 / jnp.sqrt(jnp.float32(input_features))
    dims = [(3072, 512), (512, 256), (256, 128), (128, 10)]
    params = []
    for i, (din, dout) in enumerate(dims):
        key, k1, k2, k3, k4 = jax.random.split(key, 5)
        w = jax.random.uniform(k1, (din, dout), jnp.float32, -stdv, stdv)
        b = jax.random.uniform(k2, (1, dout), jnp.float32, -stdv, stdv)
        params += [w, b]
        if i < 3:  # affine BN layers
            g = jax.random.uniform(k3, (1, dout), jnp.float32, -stdv, stdv)
            be = jax.random.uniform(k4, (1, dout), jnp.float32, -stdv, stdv)
            params += [g, be]
    return tuple(params)


if __name__ == "__main__":
    key = jax.random.PRNGKey(0)
    key, kx = jax.random.split(key)
    B, F = 8, 3072
    x = jax.random.normal(kx, (B, F), jnp.float32)
    params = init_params(key, input_features=F)
    prepared = prepare_params(params)

    out = jax.block_until_ready(custom_cnn_4_forward(x, prepared))
    ref_bf16 = jax.block_until_ready(reference_forward(x, params, cast_bf16=True))
    ref_f32 = jax.block_until_ready(reference_forward(x, params, cast_bf16=False))

    assert out.shape == (B, 10), out.shape
    # Exact-semantics check against a bf16-weight reference (same quantization).
    assert jnp.allclose(out, ref_bf16, atol=5e-3, rtol=5e-3), \
        float(jnp.max(jnp.abs(out - ref_bf16)))
    # Sanity check against the full-f32 reference (bf16 weight quantization noise only).
    assert jnp.allclose(out, ref_f32, atol=1e-1, rtol=1e-1), \
        float(jnp.max(jnp.abs(out - ref_f32)))
    print("KERNEL_OK")
</pallas_src>

<mosaic_0001>
module attributes {stable_mosaic.version = 11 : i64} {
  func.func @mlp_kernel(%arg0: memref<8x3072xbf16, #tpu.memory_space<vmem>>, %arg1: memref<3072x512xbf16, #tpu.memory_space<vmem>>, %arg2: memref<512x256xbf16, #tpu.memory_space<vmem>>, %arg3: memref<256x128xbf16, #tpu.memory_space<vmem>>, %arg4: memref<128x10xbf16, #tpu.memory_space<vmem>>, %arg5: memref<16x512xf32, #tpu.memory_space<vmem>>, %arg6: memref<8x10xf32, #tpu.memory_space<vmem>>) attributes {dimension_semantics = [], scalar_prefetch = 0 : i64, scratch_operands = 0 : i64, tpu.core_type = #tpu.core_type<tc>} {
    %c0 = arith.constant 0 : index
    %c0_0 = arith.constant 0 : index
    %0 = vector.load %arg5[%c0, %c0_0] : memref<16x512xf32, #tpu.memory_space<vmem>>, vector<16x512xf32>
    %c0_1 = arith.constant 0 : index
    %c0_2 = arith.constant 0 : index
    %1 = vector.load %arg0[%c0_1, %c0_2] : memref<8x3072xbf16, #tpu.memory_space<vmem>>, vector<8x3072xbf16>
    %c0_3 = arith.constant 0 : index
    %c0_4 = arith.constant 0 : index
    %2 = vector.load %arg1[%c0_3, %c0_4] : memref<3072x512xbf16, #tpu.memory_space<vmem>>, vector<3072x512xbf16>
    %cst = arith.constant dense<0.000000e+00> : vector<8x512xf32>
    %3 = tpu.matmul %1, %2, %cst {dimension_numbers = #tpu.dot_dimension_numbers<[1], [0], [0], [1], [0, 0, 1, 1], [], []>} : vector<8x3072xbf16>, vector<3072x512xbf16>, vector<8x512xf32> -> vector<8x512xf32>
    %4 = vector.extract_strided_slice %0 {offsets = [0, 0], sizes = [1, 512], strides = [1, 1]} : vector<16x512xf32> to vector<1x512xf32>
    %5 = vector.broadcast %4 : vector<1x512xf32> to vector<8x512xf32>
    %6 = arith.addf %3, %5 : vector<8x512xf32>
    %7 = vector.extract_strided_slice %0 {offsets = [1, 0], sizes = [1, 512], strides = [1, 1]} : vector<16x512xf32> to vector<1x512xf32>
    %8 = vector.extract_strided_slice %0 {offsets = [2, 0], sizes = [1, 512], strides = [1, 1]} : vector<16x512xf32> to vector<1x512xf32>
    %cst_5 = arith.constant dense<0.000000e+00> : vector<512xf32>
    %9 = vector.multi_reduction <add>, %6, %cst_5 [0] : vector<8x512xf32> to vector<512xf32>
    %10 = vector.shape_cast %9 : vector<512xf32> to vector<1x512xf32>
    %cst_6 = arith.constant 8.000000e+00 : f32
    %11 = vector.broadcast %cst_6 : f32 to vector<1x512xf32>
    %12 = arith.divf %10, %11 : vector<1x512xf32>
    %13 = vector.broadcast %12 : vector<1x512xf32> to vector<8x512xf32>
    %14 = arith.subf %6, %13 : vector<8x512xf32>
    %15 = arith.mulf %14, %14 : vector<8x512xf32>
    %cst_7 = arith.constant dense<0.000000e+00> : vector<512xf32>
    %16 = vector.multi_reduction <add>, %15, %cst_7 [0] : vector<8x512xf32> to vector<512xf32>
    %17 = vector.shape_cast %16 : vector<512xf32> to vector<1x512xf32>
    %cst_8 = arith.constant 8.000000e+00 : f32
    %18 = vector.broadcast %cst_8 : f32 to vector<1x512xf32>
    %19 = arith.divf %17, %18 : vector<1x512xf32>
    %cst_9 = arith.constant 9.99999974E-6 : f32
    %20 = vector.broadcast %cst_9 : f32 to vector<1x512xf32>
    %21 = arith.addf %19, %20 : vector<1x512xf32>
    %22 = math.rsqrt %21 : vector<1x512xf32>
    %23 = arith.mulf %7, %22 : vector<1x512xf32>
    %24 = arith.mulf %12, %23 : vector<1x512xf32>
    %25 = arith.subf %8, %24 : vector<1x512xf32>
    %26 = vector.broadcast %23 : vector<1x512xf32> to vector<8x512xf32>
    %27 = arith.mulf %6, %26 : vector<8x512xf32>
    %28 = vector.broadcast %25 : vector<1x512xf32> to vector<8x512xf32>
    %29 = arith.addf %27, %28 : vector<8x512xf32>
    %cst_10 = arith.constant 0.000000e+00 : f32
    %30 = vector.broadcast %cst_10 : f32 to vector<8x512xf32>
    %31 = arith.maximumf %29, %30 : vector<8x512xf32>
    %32 = arith.truncf %31 : vector<8x512xf32> to vector<8x512xbf16>
    %c0_11 = arith.constant 0 : index
    %c0_12 = arith.constant 0 : index
    %33 = vector.load %arg2[%c0_11, %c0_12] : memref<512x256xbf16, #tpu.memory_space<vmem>>, vector<512x256xbf16>
    %cst_13 = arith.constant dense<0.000000e+00> : vector<8x256xf32>
    %34 = tpu.matmul %32, %33, %cst_13 {dimension_numbers = #tpu.dot_dimension_numbers<[1], [0], [0], [1], [0, 0, 1, 1], [], []>} : vector<8x512xbf16>, vector<512x256xbf16>, vector<8x256xf32> -> vector<8x256xf32>
    %35 = vector.extract_strided_slice %0 {offsets = [3, 0], sizes = [1, 256], strides = [1, 1]} : vector<16x512xf32> to vector<1x256xf32>
    %36 = vector.broadcast %35 : vector<1x256xf32> to vector<8x256xf32>
    %37 = arith.addf %34, %36 : vector<8x256xf32>
    %38 = vector.extract_strided_slice %0 {offsets = [4, 0], sizes = [1, 256], strides = [1, 1]} : vector<16x512xf32> to vector<1x256xf32>
    %39 = vector.extract_strided_slice %0 {offsets = [5, 0], sizes = [1, 256], strides = [1, 1]} : vector<16x512xf32> to vector<1x256xf32>
    %cst_14 = arith.constant dense<0.000000e+00> : vector<256xf32>
    %40 = vector.multi_reduction <add>, %37, %cst_14 [0] : vector<8x256xf32> to vector<256xf32>
    %41 = vector.shape_cast %40 : vector<256xf32> to vector<1x256xf32>
    %cst_15 = arith.constant 8.000000e+00 : f32
    %42 = vector.broadcast %cst_15 : f32 to vector<1x256xf32>
    %43 = arith.divf %41, %42 : vector<1x256xf32>
    %44 = vector.broadcast %43 : vector<1x256xf32> to vector<8x256xf32>
    %45 = arith.subf %37, %44 : vector<8x256xf32>
    %46 = arith.mulf %45, %45 : vector<8x256xf32>
    %cst_16 = arith.constant dense<0.000000e+00> : vector<256xf32>
    %47 = vector.multi_reduction <add>, %46, %cst_16 [0] : vector<8x256xf32> to vector<256xf32>
    %48 = vector.shape_cast %47 : vector<256xf32> to vector<1x256xf32>
    %cst_17 = arith.constant 8.000000e+00 : f32
    %49 = vector.broadcast %cst_17 : f32 to vector<1x256xf32>
    %50 = arith.divf %48, %49 : vector<1x256xf32>
    %cst_18 = arith.constant 9.99999974E-6 : f32
    %51 = vector.broadcast %cst_18 : f32 to vector<1x256xf32>
    %52 = arith.addf %50, %51 : vector<1x256xf32>
    %53 = math.rsqrt %52 : vector<1x256xf32>
    %54 = arith.mulf %38, %53 : vector<1x256xf32>
    %55 = arith.mulf %43, %54 : vector<1x256xf32>
    %56 = arith.subf %39, %55 : vector<1x256xf32>
    %57 = vector.broadcast %54 : vector<1x256xf32> to vector<8x256xf32>
    %58 = arith.mulf %37, %57 : vector<8x256xf32>
    %59 = vector.broadcast %56 : vector<1x256xf32> to vector<8x256xf32>
    %60 = arith.addf %58, %59 : vector<8x256xf32>
    %cst_19 = arith.constant 0.000000e+00 : f32
    %61 = vector.broadcast %cst_19 : f32 to vector<8x256xf32>
    %62 = arith.maximumf %60, %61 : vector<8x256xf32>
    %63 = arith.truncf %62 : vector<8x256xf32> to vector<8x256xbf16>
    %c0_20 = arith.constant 0 : index
    %c0_21 = arith.constant 0 : index
    %64 = vector.load %arg3[%c0_20, %c0_21] : memref<256x128xbf16, #tpu.memory_space<vmem>>, vector<256x128xbf16>
    %cst_22 = arith.constant dense<0.000000e+00> : vector<8x128xf32>
    %65 = tpu.matmul %63, %64, %cst_22 {dimension_numbers = #tpu.dot_dimension_numbers<[1], [0], [0], [1], [0, 0, 1, 1], [], []>} : vector<8x256xbf16>, vector<256x128xbf16>, vector<8x128xf32> -> vector<8x128xf32>
    %66 = vector.extract_strided_slice %0 {offsets = [6, 0], sizes = [1, 128], strides = [1, 1]} : vector<16x512xf32> to vector<1x128xf32>
    %67 = vector.broadcast %66 : vector<1x128xf32> to vector<8x128xf32>
    %68 = arith.addf %65, %67 : vector<8x128xf32>
    %69 = vector.extract_strided_slice %0 {offsets = [7, 0], sizes = [1, 128], strides = [1, 1]} : vector<16x512xf32> to vector<1x128xf32>
    %70 = vector.extract_strided_slice %0 {offsets = [8, 0], sizes = [1, 128], strides = [1, 1]} : vector<16x512xf32> to vector<1x128xf32>
    %cst_23 = arith.constant dense<0.000000e+00> : vector<128xf32>
    %71 = vector.multi_reduction <add>, %68, %cst_23 [0] : vector<8x128xf32> to vector<128xf32>
    %72 = vector.shape_cast %71 : vector<128xf32> to vector<1x128xf32>
    %cst_24 = arith.constant 8.000000e+00 : f32
    %73 = vector.broadcast %cst_24 : f32 to vector<1x128xf32>
    %74 = arith.divf %72, %73 : vector<1x128xf32>
    %75 = vector.broadcast %74 : vector<1x128xf32> to vector<8x128xf32>
    %76 = arith.subf %68, %75 : vector<8x128xf32>
    %77 = arith.mulf %76, %76 : vector<8x128xf32>
    %cst_25 = arith.constant dense<0.000000e+00> : vector<128xf32>
    %78 = vector.multi_reduction <add>, %77, %cst_25 [0] : vector<8x128xf32> to vector<128xf32>
    %79 = vector.shape_cast %78 : vector<128xf32> to vector<1x128xf32>
    %cst_26 = arith.constant 8.000000e+00 : f32
    %80 = vector.broadcast %cst_26 : f32 to vector<1x128xf32>
    %81 = arith.divf %79, %80 : vector<1x128xf32>
    %cst_27 = arith.constant 9.99999974E-6 : f32
    %82 = vector.broadcast %cst_27 : f32 to vector<1x128xf32>
    %83 = arith.addf %81, %82 : vector<1x128xf32>
    %84 = math.rsqrt %83 : vector<1x128xf32>
    %85 = arith.mulf %69, %84 : vector<1x128xf32>
    %86 = arith.mulf %74, %85 : vector<1x128xf32>
    %87 = arith.subf %70, %86 : vector<1x128xf32>
    %88 = vector.broadcast %85 : vector<1x128xf32> to vector<8x128xf32>
    %89 = arith.mulf %68, %88 : vector<8x128xf32>
    %90 = vector.broadcast %87 : vector<1x128xf32> to vector<8x128xf32>
    %91 = arith.addf %89, %90 : vector<8x128xf32>
    %cst_28 = arith.constant 0.000000e+00 : f32
    %92 = vector.broadcast %cst_28 : f32 to vector<8x128xf32>
    %93 = arith.maximumf %91, %92 : vector<8x128xf32>
    %94 = arith.truncf %93 : vector<8x128xf32> to vector<8x128xbf16>
    %c0_29 = arith.constant 0 : index
    %c0_30 = arith.constant 0 : index
    %95 = vector.load %arg4[%c0_29, %c0_30] : memref<128x10xbf16, #tpu.memory_space<vmem>>, vector<128x10xbf16>
    %cst_31 = arith.constant dense<0.000000e+00> : vector<8x10xf32>
    %96 = tpu.matmul %94, %95, %cst_31 {dimension_numbers = #tpu.dot_dimension_numbers<[1], [0], [0], [1], [0, 0, 1, 1], [], []>} : vector<8x128xbf16>, vector<128x10xbf16>, vector<8x10xf32> -> vector<8x10xf32>
    %97 = vector.extract_strided_slice %0 {offsets = [9, 0], sizes = [1, 10], strides = [1, 1]} : vector<16x512xf32> to vector<1x10xf32>
    %98 = vector.broadcast %97 : vector<1x10xf32> to vector<8x10xf32>
    %99 = arith.addf %96, %98 : vector<8x10xf32>
    %cst_32 = arith.constant dense<0.000000e+00> : vector<10xf32>
    %100 = vector.multi_reduction <add>, %99, %cst_32 [0] : vector<8x10xf32> to vector<10xf32>
    %101 = vector.shape_cast %100 : vector<10xf32> to vector<1x10xf32>
    %cst_33 = arith.constant 8.000000e+00 : f32
    %102 = vector.broadcast %cst_33 : f32 to vector<1x10xf32>
    %103 = arith.divf %101, %102 : vector<1x10xf32>
    %104 = vector.broadcast %103 : vector<1x10xf32> to vector<8x10xf32>
    %105 = arith.subf %99, %104 : vector<8x10xf32>
    %106 = arith.mulf %105, %105 : vector<8x10xf32>
    %cst_34 = arith.constant dense<0.000000e+00> : vector<10xf32>
    %107 = vector.multi_reduction <add>, %106, %cst_34 [0] : vector<8x10xf32> to vector<10xf32>
    %108 = vector.shape_cast %107 : vector<10xf32> to vector<1x10xf32>
    %cst_35 = arith.constant 8.000000e+00 : f32
    %109 = vector.broadcast %cst_35 : f32 to vector<1x10xf32>
    %110 = arith.divf %108, %109 : vector<1x10xf32>
    %cst_36 = arith.constant 9.99999974E-6 : f32
    %111 = vector.broadcast %cst_36 : f32 to vector<1x10xf32>
    %112 = arith.addf %110, %111 : vector<1x10xf32>
    %113 = math.rsqrt %112 : vector<1x10xf32>
    %cst_37 = arith.constant 0.000000e+00 : f32
    %114 = vector.broadcast %cst_37 : f32 to vector<1x10xf32>
    %115 = arith.subf %114, %103 : vector<1x10xf32>
    %116 = arith.mulf %115, %113 : vector<1x10xf32>
    %117 = vector.broadcast %113 : vector<1x10xf32> to vector<8x10xf32>
    %118 = arith.mulf %99, %117 : vector<8x10xf32>
    %119 = vector.broadcast %116 : vector<1x10xf32> to vector<8x10xf32>
    %120 = arith.addf %118, %119 : vector<8x10xf32>
    %c0_38 = arith.constant 0 : index
    %c0_39 = arith.constant 0 : index
    %121 = vector.load %arg6[%c0_38, %c0_39] : memref<8x10xf32, #tpu.memory_space<vmem>>, vector<8x10xf32>
    tpu.vector_store %arg6[%c0_38, %c0_39], %120 {strides = array<i32>} : memref<8x10xf32, #tpu.memory_space<vmem>>, vector<8x10xf32>,
    return
  }
}

</mosaic_0001>

<llo_original>
// kernel: custom_cnn_4_forward.1
$region0: #{custom_cnn_4_forward.1}
  #allocation0 [shape = 'u32[]', space=smem, size = 0x4, offset = 0x4, fixed_abs, tag = 'smem constant byte address 0x4 - core index']
  #allocation1 [shape = 'u32[144,128]{1,0:T(1,128)}', space=vmem, size = 0x12000, scoped, tag = 'internal scratch']
  %s0 = inlined_call_operand.vmem [shape: bf16[8,3072], index: 0, kind: input, shape index: {}]
  %s1 = inlined_call_operand.hbm [shape: bf16[3072,512], index: 1, kind: input, shape index: {}]
  %s2 = inlined_call_operand.hbm [shape: bf16[512,256], index: 2, kind: input, shape index: {}]
  %s3 = inlined_call_operand.hbm [shape: bf16[256,128], index: 3, kind: input, shape index: {}]
  %s4 = inlined_call_operand.vmem [shape: bf16[128,10], index: 4, kind: input, shape index: {}]
  %s5 = inlined_call_operand.hbm [shape: f32[16,512], index: 5, kind: input, shape index: {}]
  %s6 = inlined_call_operand.hbm [shape: f32[8,10], index: 6, kind: output, shape index: {}]
  %s7 = sld [smem:[#allocation0]]
  $region50: #{custom_cnn_4_forward.1} parent=0
    _
  %s9 = ssub.s32 1, %s7
  %s10 = scalar_select 0, %s9, %s7
  $region1: #{custom_cnn_4_forward.1} parent=0
    #allocation2 [shape = 'u8[3145728]{0}', space=vmem, size = 0x300000, scoped, tag = 'input window, operand 1, single buffered']
    #allocation3 [shape = 's32[1]{0}', space=sflag, size = 0x4, scoped, tag = 'scoped memory for custom_cnn_4_forward.1']
    #allocation4 [shape = 's32[1]{0}', space=sflag, size = 0x4, scoped, tag = 'scoped memory for custom_cnn_4_forward.1']
    #allocation5 [shape = 'u8[262144]{0}', space=vmem, size = 0x40000, scoped, tag = 'input window, operand 2, single buffered']
    #allocation6 [shape = 's32[1]{0}', space=sflag, size = 0x4, scoped, tag = 'scoped memory for custom_cnn_4_forward.1']
    #allocation7 [shape = 'u8[65536]{0}', space=vmem, size = 0x10000, scoped, tag = 'input window, operand 3, single buffered']
    #allocation8 [shape = 'u8[32768]{0}', space=vmem, size = 0x8000, scoped, tag = 'input window, operand 5, single buffered']
    #allocation9 [shape = 's32[1]{0}', space=sflag, size = 0x4, scoped, tag = 'scoped memory for custom_cnn_4_forward.1']
    #allocation10 [shape = 'u8[4096]{0}', space=vmem, size = 0x1000, scoped, tag = 'output window, operand 0, single buffered']
    %11 = vsyncpa [#allocation3], 0
    %12 = vsyncpa [#allocation6], 0
    %13 = vsyncpa [#allocation9], 0
    %14 = vsyncpa [#allocation4], 0
    // Predicated region
    $region2: #{custom_cnn_4_forward.1} parent=1 // pred_check
      _
    $region3: #{custom_cnn_4_forward.1} parent=1 // pred_check_branch
      %16 = sbr.rel (0) target = $region5
    $region4: #{custom_cnn_4_forward.1} parent=1 // pred_region
      _
    $region5: #{custom_cnn_4_forward.1} parent=1 // pred_fallthru
      _
    // Predicated region
    $region6: #{custom_cnn_4_forward.1} parent=1 // pred_check
      _
    $region7: #{custom_cnn_4_forward.1} parent=1 // pred_check_branch
      %18 = sbr.rel (0) target = $region9
    $region8: #{custom_cnn_4_forward.1} parent=1 // pred_region
      %s20 = ssub.s32 98304, 98304
      %21 = vsyncadd [#allocation3], %s20
      %s22 = sshll.u32 [#allocation2], 4
      %s23 = int_to_ptr.vmem [resolvable:$true] %s22
      %28 = dma.hbm_to_vmem [thread:$0]  %s1, 98304, %s23, [#allocation3], 256, 256, 16
    $region9: #{custom_cnn_4_forward.1} parent=1 // pred_fallthru
      _
    // Predicated region
    $region10: #{custom_cnn_4_forward.1} parent=1 // pred_check
      _
    $region11: #{custom_cnn_4_forward.1} parent=1 // pred_check_branch
      %30 = sbr.rel (0) target = $region13
    $region12: #{custom_cnn_4_forward.1} parent=1 // pred_region
      %s32 = ssub.s32 8192, 8192
      %33 = vsyncadd [#allocation6], %s32
      %s34 = sshll.u32 [#allocation5], 4
      %s35 = int_to_ptr.vmem [resolvable:$true] %s34
      %40 = dma.hbm_to_vmem [thread:$0]  %s2, 8192, %s35, [#allocation6], 128, 128, 8
    $region13: #{custom_cnn_4_forward.1} parent=1 // pred_fallthru
      _
    // Predicated region
    $region14: #{custom_cnn_4_forward.1} parent=1 // pred_check
      _
    $region15: #{custom_cnn_4_forward.1} parent=1 // pred_check_branch
      %42 = sbr.rel (0) target = $region17
    $region16: #{custom_cnn_4_forward.1} parent=1 // pred_region
      %s44 = ssub.s32 2048, 2048
      %45 = vsyncadd [#allocation6], %s44
      %s46 = sshll.u32 [#allocation7], 4
      %s47 = int_to_ptr.vmem [resolvable:$true] %s46
      %52 = dma.hbm_to_vmem [thread:$0]  %s3, 2048, %s47, [#allocation6], 64, 64, 4
    $region17: #{custom_cnn_4_forward.1} parent=1 // pred_fallthru
      _
    // Predicated region
    $region18: #{custom_cnn_4_forward.1} parent=1 // pred_check
      _
    $region19: #{custom_cnn_4_forward.1} parent=1 // pred_check_branch
      %54 = sbr.rel (0) target = $region21
    $region20: #{custom_cnn_4_forward.1} parent=1 // pred_region
      _
    $region21: #{custom_cnn_4_forward.1} parent=1 // pred_fallthru
      _
    // Predicated region
    $region22: #{custom_cnn_4_forward.1} parent=1 // pred_check
      _
    $region23: #{custom_cnn_4_forward.1} parent=1 // pred_check_branch
      %56 = sbr.rel (0) target = $region25
    $region24: #{custom_cnn_4_forward.1} parent=1 // pred_region
      %s58 = ssub.s32 1024, 1024
      %59 = vsyncadd [#allocation9], %s58
      %s60 = sshll.u32 [#allocation8], 4
      %s61 = int_to_ptr.vmem [resolvable:$true] %s60
      %66 = dma.hbm_to_vmem [thread:$0]  %s5, 1024, %s61, [#allocation9], 512, 512, 32
    $region25: #{custom_cnn_4_forward.1} parent=1 // pred_fallthru
      _
    // Predicated region
    $region26: #{custom_cnn_4_forward.1} parent=1 // pred_check
      _
    $region27: #{custom_cnn_4_forward.1} parent=1 // pred_check_branch
      %68 = sbr.rel (0) target = $region29
    $region28: #{custom_cnn_4_forward.1} parent=1 // pred_region
      %69 = dma.done [#allocation3], 98304
    $region29: #{custom_cnn_4_forward.1} parent=1 // pred_fallthru
      _
    // Predicated region
    $region30: #{custom_cnn_4_forward.1} parent=1 // pred_check
      _
    $region31: #{custom_cnn_4_forward.1} parent=1 // pred_check_branch
      %71 = sbr.rel (0) target = $region33
    $region32: #{custom_cnn_4_forward.1} parent=1 // pred_region
      %72 = dma.done [#allocation6], 8192
    $region33: #{custom_cnn_4_forward.1} parent=1 // pred_fallthru
      _
    // Predicated region
    $region34: #{custom_cnn_4_forward.1} parent=1 // pred_check
      _
    $region35: #{custom_cnn_4_forward.1} parent=1 // pred_check_branch
      %74 = sbr.rel (0) target = $region37
    $region36: #{custom_cnn_4_forward.1} parent=1 // pred_region
      %75 = dma.done [#allocation6], 2048
    $region37: #{custom_cnn_4_forward.1} parent=1 // pred_fallthru
      _
    // Predicated region
    $region38: #{custom_cnn_4_forward.1} parent=1 // pred_check
      _
    $region39: #{custom_cnn_4_forward.1} parent=1 // pred_check_branch
      %77 = sbr.rel (0) target = $region41
    $region40: #{custom_cnn_4_forward.1} parent=1 // pred_region
      %78 = dma.done [#allocation9], 1024
    $region41: #{custom_cnn_4_forward.1} parent=1 // pred_fallthru
      _
    %v80 = vld [vmem:[#allocation8] sm:$0xff]
    %v81 = vld [vmem:[#allocation8 + $0x8] sm:$0xff]
    %v82 = vld [vmem:[#allocation8 + $0x10] sm:$0xff]
    %v83 = vld [vmem:[#allocation8 + $0x18] sm:$0xff]
    %v84 = vld [vmem:[#allocation8 + $0x20] sm:$0xff]
    %v85 = vld [vmem:[%s0] sm:$0xff]
    %v86 = vld [vmem:[%s0 + $0x8] sm:$0xff]
    %v87 = vld [vmem:[%s0 + $0x10] sm:$0xff]
    %v88 = vld [vmem:[%s0 + $0x18] sm:$0xff]
    %v89 = vld [vmem:[%s0 + $0x20] sm:$0xff]
    %v90 = vld [vmem:[%s0 + $0x28] sm:$0xff]
    %v91 = vld [vmem:[%s0 + $0x30] sm:$0xff]
    %v92 = vld [vmem:[%s0 + $0x38] sm:$0xff]
    %v93 = vld [vmem:[%s0 + $0x40] sm:$0xff]
    %v94 = vld [vmem:[%s0 + $0x48] sm:$0xff]
    %v95 = vld [vmem:[%s0 + $0x50] sm:$0xff]
    %v96 = vld [vmem:[%s0 + $0x58] sm:$0xff]
    %v97 = vld [vmem:[#allocation2] sm:$0xff]
    %v98 = vld [vmem:[#allocation2 + $0x8] sm:$0xff]
    %v99 = vld [vmem:[#allocation2 + $0x10] sm:$0xff]
    %v100 = vld [vmem:[#allocation2 + $0x18] sm:$0xff]
    %v101 = vld [vmem:[#allocation2 + $0x20] sm:$0xff]
    %v102 = vld [vmem:[#allocation2 + $0x28] sm:$0xff]
    %v103 = vld [vmem:[#allocation2 + $0x30] sm:$0xff]
    %v104 = vld [vmem:[#allocation2 + $0x38] sm:$0xff]
    %v105 = vld [vmem:[#allocation2 + $0x40] sm:$0xff]
    %v106 = vld [vmem:[#allocation2 + $0x48] sm:$0xff]
    %v107 = vld [vmem:[#allocation2 + $0x50] sm:$0xff]
    %v108 = vld [vmem:[#allocation2 + $0x58] sm:$0xff]
    %v109 = vld [vmem:[#allocation2 + $0x60] sm:$0xff]
    %v110 = vld [vmem:[#allocation2 + $0x68] sm:$0xff]
    %v111 = vld [vmem:[#allocation2 + $0x70] sm:$0xff]
    %v112 = vld [vmem:[#allocation2 + $0x78] sm:$0xff]
    %v113 = vld [vmem:[#allocation2 + $0x80] sm:$0xff]
    %v114 = vld [vmem:[#allocation2 + $0x88] sm:$0xff]
    %v115 = vld [vmem:[#allocation2 + $0x90] sm:$0xff]
    %v116 = vld [vmem:[#allocation2 + $0x98] sm:$0xff]
    %v117 = vld [vmem:[#allocation2 + $0xa0] sm:$0xff]
    %v118 = vld [vmem:[#allocation2 + $0xa8] sm:$0xff]
    %v119 = vld [vmem:[#allocation2 + $0xb0] sm:$0xff]
    %v120 = vld [vmem:[#allocation2 + $0xb8] sm:$0xff]
    %v121 = vld [vmem:[#allocation2 + $0xc0] sm:$0xff]
    %v122 = vld [vmem:[#allocation2 + $0xc8] sm:$0xff]
    %v123 = vld [vmem:[#allocation2 + $0xd0] sm:$0xff]
    %v124 = vld [vmem:[#allocation2 + $0xd8] sm:$0xff]
    %v125 = vld [vmem:[#allocation2 + $0xe0] sm:$0xff]
    %v126 = vld [vmem:[#allocation2 + $0xe8] sm:$0xff]
    %v127 = vld [vmem:[#allocation2 + $0xf0] sm:$0xff]
    %v128 = vld [vmem:[#allocation2 + $0xf8] sm:$0xff]
    %v129 = vld [vmem:[#allocation2 + $0x100] sm:$0xff]
    %v130 = vld [vmem:[#allocation2 + $0x108] sm:$0xff]
    %v131 = vld [vmem:[#allocation2 + $0x110] sm:$0xff]
    %v132 = vld [vmem:[#allocation2 + $0x118] sm:$0xff]
    %v133 = vld [vmem:[#allocation2 + $0x120] sm:$0xff]
    %v134 = vld [vmem:[#allocation2 + $0x128] sm:$0xff]
    %v135 = vld [vmem:[#allocation2 + $0x130] sm:$0xff]
    %v136 = vld [vmem:[#allocation2 + $0x138] sm:$0xff]
    %v137 = vld [vmem:[#allocation2 + $0x140] sm:$0xff]
    %v138 = vld [vmem:[#allocation2 + $0x148] sm:$0xff]
    %v139 = vld [vmem:[#allocation2 + $0x150] sm:$0xff]
    %v140 = vld [vmem:[#allocation2 + $0x158] sm:$0xff]
    %v141 = vld [vmem:[#allocation2 + $0x160] sm:$0xff]
    %v142 = vld [vmem:[#allocation2 + $0x168] sm:$0xff]
    %v143 = vld [vmem:[#allocation2 + $0x170] sm:$0xff]
    %v144 = vld [vmem:[#allocation2 + $0x178] sm:$0xff]
    %v145 = vld [vmem:[#allocation2 + $0x180] sm:$0xff]
    %v146 = vld [vmem:[#allocation2 + $0x188] sm:$0xff]
    %v147 = vld [vmem:[#allocation2 + $0x190] sm:$0xff]
    %v148 = vld [vmem:[#allocation2 + $0x198] sm:$0xff]
    %v149 = vld [vmem:[#allocation2 + $0x1a0] sm:$0xff]
    %v150 = vld [vmem:[#allocation2 + $0x1a8] sm:$0xff]
    %v151 = vld [vmem:[#allocation2 + $0x1b0] sm:$0xff]
    %v152 = vld [vmem:[#allocation2 + $0x1b8] sm:$0xff]
    %v153 = vld [vmem:[#allocation2 + $0x1c0] sm:$0xff]
    %v154 = vld [vmem:[#allocation2 + $0x1c8] sm:$0xff]
    %v155 = vld [vmem:[#allocation2 + $0x1d0] sm:$0xff]
    %v156 = vld [vmem:[#allocation2 + $0x1d8] sm:$0xff]
    %v157 = vld [vmem:[#allocation2 + $0x1e0] sm:$0xff]
    %v158 = vld [vmem:[#allocation2 + $0x1e8] sm:$0xff]
    %v159 = vld [vmem:[#allocation2 + $0x1f0] sm:$0xff]
    %v160 = vld [vmem:[#allocation2 + $0x1f8] sm:$0xff]
    %v161 = vld [vmem:[#allocation2 + $0x200] sm:$0xff]
    %v162 = vld [vmem:[#allocation2 + $0x208] sm:$0xff]
    %v163 = vld [vmem:[#allocation2 + $0x210] sm:$0xff]
    %v164 = vld [vmem:[#allocation2 + $0x218] sm:$0xff]
    %v165 = vld [vmem:[#allocation2 + $0x220] sm:$0xff]
    %v166 = vld [vmem:[#allocation2 + $0x228] sm:$0xff]
    %v167 = vld [vmem:[#allocation2 + $0x230] sm:$0xff]
    %v168 = vld [vmem:[#allocation2 + $0x238] sm:$0xff]
    %v169 = vld [vmem:[#allocation2 + $0x240] sm:$0xff]
    %v170 = vld [vmem:[#allocation2 + $0x248] sm:$0xff]
    %v171 = vld [vmem:[#allocation2 + $0x250] sm:$0xff]
    %v172 = vld [vmem:[#allocation2 + $0x258] sm:$0xff]
    %v173 = vld [vmem:[#allocation2 + $0x260] sm:$0xff]
    %v174 = vld [vmem:[#allocation2 + $0x268] sm:$0xff]
    %v175 = vld [vmem:[#allocation2 + $0x270] sm:$0xff]
    %v176 = vld [vmem:[#allocation2 + $0x278] sm:$0xff]
    %v177 = vld [vmem:[#allocation2 + $0x280] sm:$0xff]
    %v178 = vld [vmem:[#allocation2 + $0x288] sm:$0xff]
    %v179 = vld [vmem:[#allocation2 + $0x290] sm:$0xff]
    %v180 = vld [vmem:[#allocation2 + $0x298] sm:$0xff]
    %v181 = vld [vmem:[#allocation2 + $0x2a0] sm:$0xff]
    %v182 = vld [vmem:[#allocation2 + $0x2a8] sm:$0xff]
    %v183 = vld [vmem:[#allocation2 + $0x2b0] sm:$0xff]
    %v184 = vld [vmem:[#allocation2 + $0x2b8] sm:$0xff]
    %v185 = vld [vmem:[#allocation2 + $0x2c0] sm:$0xff]
    %v186 = vld [vmem:[#allocation2 + $0x2c8] sm:$0xff]
    %v187 = vld [vmem:[#allocation2 + $0x2d0] sm:$0xff]
    %v188 = vld [vmem:[#allocation2 + $0x2d8] sm:$0xff]
    %v189 = vld [vmem:[#allocation2 + $0x2e0] sm:$0xff]
    %v190 = vld [vmem:[#allocation2 + $0x2e8] sm:$0xff]
    %v191 = vld [vmem:[#allocation2 + $0x2f0] sm:$0xff]
    %v192 = vld [vmem:[#allocation2 + $0x2f8] sm:$0xff]
    %v193 = vld [vmem:[#allocation2 + $0x300] sm:$0xff]
    %v194 = vld [vmem:[#allocation2 + $0x308] sm:$0xff]
    %v195 = vld [vmem:[#allocation2 + $0x310] sm:$0xff]
    %v196 = vld [vmem:[#allocation2 + $0x318] sm:$0xff]
    %v197 = vld [vmem:[#allocation2 + $0x320] sm:$0xff]
    %v198 = vld [vmem:[#allocation2 + $0x328] sm:$0xff]
    %v199 = vld [vmem:[#allocation2 + $0x330] sm:$0xff]
    %v200 = vld [vmem:[#allocation2 + $0x338] sm:$0xff]
    %v201 = vld [vmem:[#allocation2 + $0x340] sm:$0xff]
    %v202 = vld [vmem:[#allocation2 + $0x348] sm:$0xff]
    %v203 = vld [vmem:[#allocation2 + $0x350] sm:$0xff]
    %v204 = vld [vmem:[#allocation2 + $0x358] sm:$0xff]
    %v205 = vld [vmem:[#allocation2 + $0x360] sm:$0xff]
    %v206 = vld [vmem:[#allocation2 + $0x368] sm:$0xff]
    %v207 = vld [vmem:[#allocation2 + $0x370] sm:$0xff]
    %v208 = vld [vmem:[#allocation2 + $0x378] sm:$0xff]
    %v209 = vld [vmem:[#allocation2 + $0x380] sm:$0xff]
    %v210 = vld [vmem:[#allocation2 + $0x388] sm:$0xff]
    %v211 = vld [vmem:[#allocation2 + $0x390] sm:$0xff]
    %v212 = vld [vmem:[#allocation2 + $0x398] sm:$0xff]
    %v213 = vld [vmem:[#allocation2 + $0x3a0] sm:$0xff]
    %v214 = vld [vmem:[#allocation2 + $0x3a8] sm:$0xff]
    %v215 = vld [vmem:[#allocation2 + $0x3b0] sm:$0xff]
    %v216 = vld [vmem:[#allocation2 + $0x3b8] sm:$0xff]
    %v217 = vld [vmem:[#allocation2 + $0x3c0] sm:$0xff]
    %v218 = vld [vmem:[#allocation2 + $0x3c8] sm:$0xff]
    %v219 = vld [vmem:[#allocation2 + $0x3d0] sm:$0xff]
    %v220 = vld [vmem:[#allocation2 + $0x3d8] sm:$0xff]
    %v221 = vld [vmem:[#allocation2 + $0x3e0] sm:$0xff]
    %v222 = vld [vmem:[#allocation2 + $0x3e8] sm:$0xff]
    %v223 = vld [vmem:[#allocation2 + $0x3f0] sm:$0xff]
    %v224 = vld [vmem:[#allocation2 + $0x3f8] sm:$0xff]
    %v225 = vld [vmem:[#allocation2 + $0x400] sm:$0xff]
    %v226 = vld [vmem:[#allocation2 + $0x408] sm:$0xff]
    %v227 = vld [vmem:[#allocation2 + $0x410] sm:$0xff]
    %v228 = vld [vmem:[#allocation2 + $0x418] sm:$0xff]
    %v229 = vld [vmem:[#allocation2 + $0x420] sm:$0xff]
    %v230 = vld [vmem:[#allocation2 + $0x428] sm:$0xff]
    %v231 = vld [vmem:[#allocation2 + $0x430] sm:$0xff]
    %v232 = vld [vmem:[#allocation2 + $0x438] sm:$0xff]
    %v233 = vld [vmem:[#allocation2 + $0x440] sm:$0xff]
    %v234 = vld [vmem:[#allocation2 + $0x448] sm:$0xff]
    %v235 = vld [vmem:[#allocation2 + $0x450] sm:$0xff]
    %v236 = vld [vmem:[#allocation2 + $0x458] sm:$0xff]
    %v237 = vld [vmem:[#allocation2 + $0x460] sm:$0xff]
    %v238 = vld [vmem:[#allocation2 + $0x468] sm:$0xff]
    %v239 = vld [vmem:[#allocation2 + $0x470] sm:$0xff]
    %v240 = vld [vmem:[#allocation2 + $0x478] sm:$0xff]
    %v241 = vld [vmem:[#allocation2 + $0x480] sm:$0xff]
    %v242 = vld [vmem:[#allocation2 + $0x488] sm:$0xff]
    %v243 = vld [vmem:[#allocation2 + $0x490] sm:$0xff]
    %v244 = vld [vmem:[#allocation2 + $0x498] sm:$0xff]
    %v245 = vld [vmem:[#allocation2 + $0x4a0] sm:$0xff]
    %v246 = vld [vmem:[#allocation2 + $0x4a8] sm:$0xff]
    %v247 = vld [vmem:[#allocation2 + $0x4b0] sm:$0xff]
    %v248 = vld [vmem:[#allocation2 + $0x4b8] sm:$0xff]
    %v249 = vld [vmem:[#allocation2 + $0x4c0] sm:$0xff]
    %v250 = vld [vmem:[#allocation2 + $0x4c8] sm:$0xff]
    %v251 = vld [vmem:[#allocation2 + $0x4d0] sm:$0xff]
    %v252 = vld [vmem:[#allocation2 + $0x4d8] sm:$0xff]
    %v253 = vld [vmem:[#allocation2 + $0x4e0] sm:$0xff]
    %v254 = vld [vmem:[#allocation2 + $0x4e8] sm:$0xff]
    %v255 = vld [vmem:[#allocation2 + $0x4f0] sm:$0xff]
    %v256 = vld [vmem:[#allocation2 + $0x4f8] sm:$0xff]
    %v257 = vld [vmem:[#allocation2 + $0x500] sm:$0xff]
    %v258 = vld [vmem:[#allocation2 + $0x508] sm:$0xff]
    %v259 = vld [vmem:[#allocation2 + $0x510] sm:$0xff]
    %v260 = vld [vmem:[#allocation2 + $0x518] sm:$0xff]
    %v261 = vld [vmem:[#allocation2 + $0x520] sm:$0xff]
    %v262 = vld [vmem:[#allocation2 + $0x528] sm:$0xff]
    %v263 = vld [vmem:[#allocation2 + $0x530] sm:$0xff]
    %v264 = vld [vmem:[#allocation2 + $0x538] sm:$0xff]
    %v265 = vld [vmem:[#allocation2 + $0x540] sm:$0xff]
    %v266 = vld [vmem:[#allocation2 + $0x548] sm:$0xff]
    %v267 = vld [vmem:[#allocation2 + $0x550] sm:$0xff]
    %v268 = vld [vmem:[#allocation2 + $0x558] sm:$0xff]
    %v269 = vld [vmem:[#allocation2 + $0x560] sm:$0xff]
    %v270 = vld [vmem:[#allocation2 + $0x568] sm:$0xff]
    %v271 = vld [vmem:[#allocation2 + $0x570] sm:$0xff]
    %v272 = vld [vmem:[#allocation2 + $0x578] sm:$0xff]
    %v273 = vld [vmem:[#allocation2 + $0x580] sm:$0xff]
    %v274 = vld [vmem:[#allocation2 + $0x588] sm:$0xff]
    %v275 = vld [vmem:[#allocation2 + $0x590] sm:$0xff]
    %v276 = vld [vmem:[#allocation2 + $0x598] sm:$0xff]
    %v277 = vld [vmem:[#allocation2 + $0x5a0] sm:$0xff]
    %v278 = vld [vmem:[#allocation2 + $0x5a8] sm:$0xff]
    %v279 = vld [vmem:[#allocation2 + $0x5b0] sm:$0xff]
    %v280 = vld [vmem:[#allocation2 + $0x5b8] sm:$0xff]
    %v281 = vld [vmem:[#allocation2 + $0x5c0] sm:$0xff]
    %v282 = vld [vmem:[#allocation2 + $0x5c8] sm:$0xff]
    %v283 = vld [vmem:[#allocation2 + $0x5d0] sm:$0xff]
    %v284 = vld [vmem:[#allocation2 + $0x5d8] sm:$0xff]
    %v285 = vld [vmem:[#allocation2 + $0x5e0] sm:$0xff]
    %v286 = vld [vmem:[#allocation2 + $0x5e8] sm:$0xff]
    %v287 = vld [vmem:[#allocation2 + $0x5f0] sm:$0xff]
    %v288 = vld [vmem:[#allocation2 + $0x5f8] sm:$0xff]
    %v289 = vld [vmem:[#allocation2 + $0x600] sm:$0xff]
    %v290 = vld [vmem:[#allocation2 + $0x608] sm:$0xff]
    %v291 = vld [vmem:[#allocation2 + $0x610] sm:$0xff]
    %v292 = vld [vmem:[#allocation2 + $0x618] sm:$0xff]
    %v293 = vld [vmem:[#allocation2 + $0x620] sm:$0xff]
    %v294 = vld [vmem:[#allocation2 + $0x628] sm:$0xff]
    %v295 = vld [vmem:[#allocation2 + $0x630] sm:$0xff]
    %v296 = vld [vmem:[#allocation2 + $0x638] sm:$0xff]
    %v297 = vld [vmem:[#allocation2 + $0x640] sm:$0xff]
    %v298 = vld [vmem:[#allocation2 + $0x648] sm:$0xff]
    %v299 = vld [vmem:[#allocation2 + $0x650] sm:$0xff]
    %v300 = vld [vmem:[#allocation2 + $0x658] sm:$0xff]
    %v301 = vld [vmem:[#allocation2 + $0x660] sm:$0xff]
    %v302 = vld [vmem:[#allocation2 + $0x668] sm:$0xff]
    %v303 = vld [vmem:[#allocation2 + $0x670] sm:$0xff]
    %v304 = vld [vmem:[#allocation2 + $0x678] sm:$0xff]
    %v305 = vld [vmem:[#allocation2 + $0x680] sm:$0xff]
    %v306 = vld [vmem:[#allocation2 + $0x688] sm:$0xff]
    %v307 = vld [vmem:[#allocation2 + $0x690] sm:$0xff]
    %v308 = vld [vmem:[#allocation2 + $0x698] sm:$0xff]
    %v309 = vld [vmem:[#allocation2 + $0x6a0] sm:$0xff]
    %v310 = vld [vmem:[#allocation2 + $0x6a8] sm:$0xff]
    %v311 = vld [vmem:[#allocation2 + $0x6b0] sm:$0xff]
    %v312 = vld [vmem:[#allocation2 + $0x6b8] sm:$0xff]
    %v313 = vld [vmem:[#allocation2 + $0x6c0] sm:$0xff]
    %v314 = vld [vmem:[#allocation2 + $0x6c8] sm:$0xff]
    %v315 = vld [vmem:[#allocation2 + $0x6d0] sm:$0xff]
    %v316 = vld [vmem:[#allocation2 + $0x6d8] sm:$0xff]
    %v317 = vld [vmem:[#allocation2 + $0x6e0] sm:$0xff]
    %v318 = vld [vmem:[#allocation2 + $0x6e8] sm:$0xff]
    %v319 = vld [vmem:[#allocation2 + $0x6f0] sm:$0xff]
    %v320 = vld [vmem:[#allocation2 + $0x6f8] sm:$0xff]
    %v321 = vld [vmem:[#allocation2 + $0x700] sm:$0xff]
    %v322 = vld [vmem:[#allocation2 + $0x708] sm:$0xff]
    %v323 = vld [vmem:[#allocation2 + $0x710] sm:$0xff]
    %v324 = vld [vmem:[#allocation2 + $0x718] sm:$0xff]
    %v325 = vld [vmem:[#allocation2 + $0x720] sm:$0xff]
    %v326 = vld [vmem:[#allocation2 + $0x728] sm:$0xff]
    %v327 = vld [vmem:[#allocation2 + $0x730] sm:$0xff]
    %v328 = vld [vmem:[#allocation2 + $0x738] sm:$0xff]
    %v329 = vld [vmem:[#allocation2 + $0x740] sm:$0xff]
    %v330 = vld [vmem:[#allocation2 + $0x748] sm:$0xff]
    %v331 = vld [vmem:[#allocation2 + $0x750] sm:$0xff]
    %v332 = vld [vmem:[#allocation2 + $0x758] sm:$0xff]
    %v333 = vld [vmem:[#allocation2 + $0x760] sm:$0xff]
    %v334 = vld [vmem:[#allocation2 + $0x768] sm:$0xff]
    %v335 = vld [vmem:[#allocation2 + $0x770] sm:$0xff]
    %v336 = vld [vmem:[#allocation2 + $0x778] sm:$0xff]
    %v337 = vld [vmem:[#allocation2 + $0x780] sm:$0xff]
    %v338 = vld [vmem:[#allocation2 + $0x788] sm:$0xff]
    %v339 = vld [vmem:[#allocation2 + $0x790] sm:$0xff]
    %v340 = vld [vmem:[#allocation2 + $0x798] sm:$0xff]
    %v341 = vld [vmem:[#allocation2 + $0x7a0] sm:$0xff]
    %v342 = vld [vmem:[#allocation2 + $0x7a8] sm:$0xff]
    %v343 = vld [vmem:[#allocation2 + $0x7b0] sm:$0xff]
    %v344 = vld [vmem:[#allocation2 + $0x7b8] sm:$0xff]
    %v345 = vld [vmem:[#allocation2 + $0x7c0] sm:$0xff]
    %v346 = vld [vmem:[#allocation2 + $0x7c8] sm:$0xff]
    %v347 = vld [vmem:[#allocation2 + $0x7d0] sm:$0xff]
    %v348 = vld [vmem:[#allocation2 + $0x7d8] sm:$0xff]
    %v349 = vld [vmem:[#allocation2 + $0x7e0] sm:$0xff]
    %v350 = vld [vmem:[#allocation2 + $0x7e8] sm:$0xff]
    %v351 = vld [vmem:[#allocation2 + $0x7f0] sm:$0xff]
    %v352 = vld [vmem:[#allocation2 + $0x7f8] sm:$0xff]
    %v353 = vld [vmem:[#allocation2 + $0x800] sm:$0xff]
    %v354 = vld [vmem:[#allocation2 + $0x808] sm:$0xff]
    %v355 = vld [vmem:[#allocation2 + $0x810] sm:$0xff]
    %v356 = vld [vmem:[#allocation2 + $0x818] sm:$0xff]
    %v357 = vld [vmem:[#allocation2 + $0x820] sm:$0xff]
    %v358 = vld [vmem:[#allocation2 + $0x828] sm:$0xff]
    %v359 = vld [vmem:[#allocation2 + $0x830] sm:$0xff]
    %v360 = vld [vmem:[#allocation2 + $0x838] sm:$0xff]
    %v361 = vld [vmem:[#allocation2 + $0x840] sm:$0xff]
    %v362 = vld [vmem:[#allocation2 + $0x848] sm:$0xff]
    %v363 = vld [vmem:[#allocation2 + $0x850] sm:$0xff]
    %v364 = vld [vmem:[#allocation2 + $0x858] sm:$0xff]
    %v365 = vld [vmem:[#allocation2 + $0x860] sm:$0xff]
    %v366 = vld [vmem:[#allocation2 + $0x868] sm:$0xff]
    %v367 = vld [vmem:[#allocation2 + $0x870] sm:$0xff]
    %v368 = vld [vmem:[#allocation2 + $0x878] sm:$0xff]
    %v369 = vld [vmem:[#allocation2 + $0x880] sm:$0xff]
    %v370 = vld [vmem:[#allocation2 + $0x888] sm:$0xff]
    %v371 = vld [vmem:[#allocation2 + $0x890] sm:$0xff]
    %v372 = vld [vmem:[#allocation2 + $0x898] sm:$0xff]
    %v373 = vld [vmem:[#allocation2 + $0x8a0] sm:$0xff]
    %v374 = vld [vmem:[#allocation2 + $0x8a8] sm:$0xff]
    %v375 = vld [vmem:[#allocation2 + $0x8b0] sm:$0xff]
    %v376 = vld [vmem:[#allocation2 + $0x8b8] sm:$0xff]
    %v377 = vld [vmem:[#allocation2 + $0x8c0] sm:$0xff]
    %v378 = vld [vmem:[#allocation2 + $0x8c8] sm:$0xff]
    %v379 = vld [vmem:[#allocation2 + $0x8d0] sm:$0xff]
    %v380 = vld [vmem:[#allocation2 + $0x8d8] sm:$0xff]
    %v381 = vld [vmem:[#allocation2 + $0x8e0] sm:$0xff]
    %v382 = vld [vmem:[#allocation2 + $0x8e8] sm:$0xff]
    %v383 = vld [vmem:[#allocation2 + $0x8f0] sm:$0xff]
    %v384 = vld [vmem:[#allocation2 + $0x8f8] sm:$0xff]
    %v385 = vld [vmem:[#allocation2 + $0x900] sm:$0xff]
    %v386 = vld [vmem:[#allocation2 + $0x908] sm:$0xff]
    %v387 = vld [vmem:[#allocation2 + $0x910] sm:$0xff]
    %v388 = vld [vmem:[#allocation2 + $0x918] sm:$0xff]
    %v389 = vld [vmem:[#allocation2 + $0x920] sm:$0xff]
    %v390 = vld [vmem:[#allocation2 + $0x928] sm:$0xff]
    %v391 = vld [vmem:[#allocation2 + $0x930] sm:$0xff]
    %v392 = vld [vmem:[#allocation2 + $0x938] sm:$0xff]
    %v393 = vld [vmem:[#allocation2 + $0x940] sm:$0xff]
    %v394 = vld [vmem:[#allocation2 + $0x948] sm:$0xff]
    %v395 = vld [vmem:[#allocation2 + $0x950] sm:$0xff]
    %v396 = vld [vmem:[#allocation2 + $0x958] sm:$0xff]
    %v397 = vld [vmem:[#allocation2 + $0x960] sm:$0xff]
    %v398 = vld [vmem:[#allocation2 + $0x968] sm:$0xff]
    %v399 = vld [vmem:[#allocation2 + $0x970] sm:$0xff]
    %v400 = vld [vmem:[#allocation2 + $0x978] sm:$0xff]
    %v401 = vld [vmem:[#allocation2 + $0x980] sm:$0xff]
    %v402 = vld [vmem:[#allocation2 + $0x988] sm:$0xff]
    %v403 = vld [vmem:[#allocation2 + $0x990] sm:$0xff]
    %v404 = vld [vmem:[#allocation2 + $0x998] sm:$0xff]
    %v405 = vld [vmem:[#allocation2 + $0x9a0] sm:$0xff]
    %v406 = vld [vmem:[#allocation2 + $0x9a8] sm:$0xff]
    %v407 = vld [vmem:[#allocation2 + $0x9b0] sm:$0xff]
    %v408 = vld [vmem:[#allocation2 + $0x9b8] sm:$0xff]
    %v409 = vld [vmem:[#allocation2 + $0x9c0] sm:$0xff]
    %v410 = vld [vmem:[#allocation2 + $0x9c8] sm:$0xff]
    %v411 = vld [vmem:[#allocation2 + $0x9d0] sm:$0xff]
    %v412 = vld [vmem:[#allocation2 + $0x9d8] sm:$0xff]
    %v413 = vld [vmem:[#allocation2 + $0x9e0] sm:$0xff]
    %v414 = vld [vmem:[#allocation2 + $0x9e8] sm:$0xff]
    %v415 = vld [vmem:[#allocation2 + $0x9f0] sm:$0xff]
    %v416 = vld [vmem:[#allocation2 + $0x9f8] sm:$0xff]
    %v417 = vld [vmem:[#allocation2 + $0xa00] sm:$0xff]
    %v418 = vld [vmem:[#allocation2 + $0xa08] sm:$0xff]
    %v419 = vld [vmem:[#allocation2 + $0xa10] sm:$0xff]
    %v420 = vld [vmem:[#allocation2 + $0xa18] sm:$0xff]
    %v421 = vld [vmem:[#allocation2 + $0xa20] sm:$0xff]
    %v422 = vld [vmem:[#allocation2 + $0xa28] sm:$0xff]
    %v423 = vld [vmem:[#allocation2 + $0xa30] sm:$0xff]
    %v424 = vld [vmem:[#allocation2 + $0xa38] sm:$0xff]
    %v425 = vld [vmem:[#allocation2 + $0xa40] sm:$0xff]
    %v426 = vld [vmem:[#allocation2 + $0xa48] sm:$0xff]
    %v427 = vld [vmem:[#allocation2 + $0xa50] sm:$0xff]
    %v428 = vld [vmem:[#allocation2 + $0xa58] sm:$0xff]
    %v429 = vld [vmem:[#allocation2 + $0xa60] sm:$0xff]
    %v430 = vld [vmem:[#allocation2 + $0xa68] sm:$0xff]
    %v431 = vld [vmem:[#allocation2 + $0xa70] sm:$0xff]
    %v432 = vld [vmem:[#allocation2 + $0xa78] sm:$0xff]
    %v433 = vld [vmem:[#allocation2 + $0xa80] sm:$0xff]
    %v434 = vld [vmem:[#allocation2 + $0xa88] sm:$0xff]
    %v435 = vld [vmem:[#allocation2 + $0xa90] sm:$0xff]
    %v436 = vld [vmem:[#allocation2 + $0xa98] sm:$0xff]
    %v437 = vld [vmem:[#allocation2 + $0xaa0] sm:$0xff]
    %v438 = vld [vmem:[#allocation2 + $0xaa8] sm:$0xff]
    %v439 = vld [vmem:[#allocation2 + $0xab0] sm:$0xff]
    %v440 = vld [vmem:[#allocation2 + $0xab8] sm:$0xff]
    %v441 = vld [vmem:[#allocation2 + $0xac0] sm:$0xff]
    %v442 = vld [vmem:[#allocation2 + $0xac8] sm:$0xff]
    %v443 = vld [vmem:[#allocation2 + $0xad0] sm:$0xff]
    %v444 = vld [vmem:[#allocation2 + $0xad8] sm:$0xff]
    %v445 = vld [vmem:[#allocation2 + $0xae0] sm:$0xff]
    %v446 = vld [vmem:[#allocation2 + $0xae8] sm:$0xff]
    %v447 = vld [vmem:[#allocation2 + $0xaf0] sm:$0xff]
    %v448 = vld [vmem:[#allocation2 + $0xaf8] sm:$0xff]
    %v449 = vld [vmem:[#allocation2 + $0xb00] sm:$0xff]
    %v450 = vld [vmem:[#allocation2 + $0xb08] sm:$0xff]
    %v451 = vld [vmem:[#allocation2 + $0xb10] sm:$0xff]
    %v452 = vld [vmem:[#allocation2 + $0xb18] sm:$0xff]
    %v453 = vld [vmem:[#allocation2 + $0xb20] sm:$0xff]
    %v454 = vld [vmem:[#allocation2 + $0xb28] sm:$0xff]
    %v455 = vld [vmem:[#allocation2 + $0xb30] sm:$0xff]
    %v456 = vld [vmem:[#allocation2 + $0xb38] sm:$0xff]
    %v457 = vld [vmem:[#allocation2 + $0xb40] sm:$0xff]
    %v458 = vld [vmem:[#allocation2 + $0xb48] sm:$0xff]
    %v459 = vld [vmem:[#allocation2 + $0xb50] sm:$0xff]
    %v460 = vld [vmem:[#allocation2 + $0xb58] sm:$0xff]
    %v461 = vld [vmem:[#allocation2 + $0xb60] sm:$0xff]
    %v462 = vld [vmem:[#allocation2 + $0xb68] sm:$0xff]
    %v463 = vld [vmem:[#allocation2 + $0xb70] sm:$0xff]
    %v464 = vld [vmem:[#allocation2 + $0xb78] sm:$0xff]
    %v465 = vld [vmem:[#allocation2 + $0xb80] sm:$0xff]
    %v466 = vld [vmem:[#allocation2 + $0xb88] sm:$0xff]
    %v467 = vld [vmem:[#allocation2 + $0xb90] sm:$0xff]
    %v468 = vld [vmem:[#allocation2 + $0xb98] sm:$0xff]
    %v469 = vld [vmem:[#allocation2 + $0xba0] sm:$0xff]
    %v470 = vld [vmem:[#allocation2 + $0xba8] sm:$0xff]
    %v471 = vld [vmem:[#allocation2 + $0xbb0] sm:$0xff]
    %v472 = vld [vmem:[#allocation2 + $0xbb8] sm:$0xff]
    %v473 = vld [vmem:[#allocation2 + $0xbc0] sm:$0xff]
    %v474 = vld [vmem:[#allocation2 + $0xbc8] sm:$0xff]
    %v475 = vld [vmem:[#allocation2 + $0xbd0] sm:$0xff]
    %v476 = vld [vmem:[#allocation2 + $0xbd8] sm:$0xff]
    %v477 = vld [vmem:[#allocation2 + $0xbe0] sm:$0xff]
    %v478 = vld [vmem:[#allocation2 + $0xbe8] sm:$0xff]
    %v479 = vld [vmem:[#allocation2 + $0xbf0] sm:$0xff]
    %v480 = vld [vmem:[#allocation2 + $0xbf8] sm:$0xff]
    %v481 = vld [vmem:[#allocation2 + $0xc00] sm:$0xff]
    %v482 = vld [vmem:[#allocation2 + $0xc08] sm:$0xff]
    %v483 = vld [vmem:[#allocation2 + $0xc10] sm:$0xff]
    %v484 = vld [vmem:[#allocation2 + $0xc18] sm:$0xff]
    %v485 = vld [vmem:[#allocation2 + $0xc20] sm:$0xff]
    %v486 = vld [vmem:[#allocation2 + $0xc28] sm:$0xff]
    %v487 = vld [vmem:[#allocation2 + $0xc30] sm:$0xff]
    %v488 = vld [vmem:[#allocation2 + $0xc38] sm:$0xff]
    %v489 = vld [vmem:[#allocation2 + $0xc40] sm:$0xff]
    %v490 = vld [vmem:[#allocation2 + $0xc48] sm:$0xff]
    %v491 = vld [vmem:[#allocation2 + $0xc50] sm:$0xff]
    %v492 = vld [vmem:[#allocation2 + $0xc58] sm:$0xff]
    %v493 = vld [vmem:[#allocation2 + $0xc60] sm:$0xff]
    %v494 = vld [vmem:[#allocation2 + $0xc68] sm:$0xff]
    %v495 = vld [vmem:[#allocation2 + $0xc70] sm:$0xff]
    %v496 = vld [vmem:[#allocation2 + $0xc78] sm:$0xff]
    %v497 = vld [vmem:[#allocation2 + $0xc80] sm:$0xff]
    %v498 = vld [vmem:[#allocation2 + $0xc88] sm:$0xff]
    %v499 = vld [vmem:[#allocation2 + $0xc90] sm:$0xff]
    %v500 = vld [vmem:[#allocation2 + $0xc98] sm:$0xff]
    %v501 = vld [vmem:[#allocation2 + $0xca0] sm:$0xff]
    %v502 = vld [vmem:[#allocation2 + $0xca8] sm:$0xff]
    %v503 = vld [vmem:[#allocation2 + $0xcb0] sm:$0xff]
    %v504 = vld [vmem:[#allocation2 + $0xcb8] sm:$0xff]
    %v505 = vld [vmem:[#allocation2 + $0xcc0] sm:$0xff]
    %v506 = vld [vmem:[#allocation2 + $0xcc8] sm:$0xff]
    %v507 = vld [vmem:[#allocation2 + $0xcd0] sm:$0xff]
    %v508 = vld [vmem:[#allocation2 + $0xcd8] sm:$0xff]
    %v509 = vld [vmem:[#allocation2 + $0xce0] sm:$0xff]
    %v510 = vld [vmem:[#allocation2 + $0xce8] sm:$0xff]
    %v511 = vld [vmem:[#allocation2 + $0xcf0] sm:$0xff]
    %v512 = vld [vmem:[#allocation2 + $0xcf8] sm:$0xff]
    %v513 = vld [vmem:[#allocation2 + $0xd00] sm:$0xff]
    %v514 = vld [vmem:[#allocation2 + $0xd08] sm:$0xff]
    %v515 = vld [vmem:[#allocation2 + $0xd10] sm:$0xff]
    %v516 = vld [vmem:[#allocation2 + $0xd18] sm:$0xff]
    %v517 = vld [vmem:[#allocation2 + $0xd20] sm:$0xff]
    %v518 = vld [vmem:[#allocation2 + $0xd28] sm:$0xff]
    %v519 = vld [vmem:[#allocation2 + $0xd30] sm:$0xff]
    %v520 = vld [vmem:[#allocation2 + $0xd38] sm:$0xff]
    %v521 = vld [vmem:[#allocation2 + $0xd40] sm:$0xff]
    %v522 = vld [vmem:[#allocation2 + $0xd48] sm:$0xff]
    %v523 = vld [vmem:[#allocation2 + $0xd50] sm:$0xff]
    %v524 = vld [vmem:[#allocation2 + $0xd58] sm:$0xff]
    %v525 = vld [vmem:[#allocation2 + $0xd60] sm:$0xff]
    %v526 = vld [vmem:[#allocation2 + $0xd68] sm:$0xff]
    %v527 = vld [vmem:[#allocation2 + $0xd70] sm:$0xff]
    %v528 = vld [vmem:[#allocation2 + $0xd78] sm:$0xff]
    %v529 = vld [vmem:[#allocation2 + $0xd80] sm:$0xff]
    %v530 = vld [vmem:[#allocation2 + $0xd88] sm:$0xff]
    %v531 = vld [vmem:[#allocation2 + $0xd90] sm:$0xff]
    %v532 = vld [vmem:[#allocation2 + $0xd98] sm:$0xff]
    %v533 = vld [vmem:[#allocation2 + $0xda0] sm:$0xff]
    %v534 = vld [vmem:[#allocation2 + $0xda8] sm:$0xff]
    %v535 = vld [vmem:[#allocation2 + $0xdb0] sm:$0xff]
    %v536 = vld [vmem:[#allocation2 + $0xdb8] sm:$0xff]
    %v537 = vld [vmem:[#allocation2 + $0xdc0] sm:$0xff]
    %v538 = vld [vmem:[#allocation2 + $0xdc8] sm:$0xff]
    %v539 = vld [vmem:[#allocation2 + $0xdd0] sm:$0xff]
    %v540 = vld [vmem:[#allocation2 + $0xdd8] sm:$0xff]
    %v541 = vld [vmem:[#allocation2 + $0xde0] sm:$0xff]
    %v542 = vld [vmem:[#allocation2 + $0xde8] sm:$0xff]
    %v543 = vld [vmem:[#allocation2 + $0xdf0] sm:$0xff]
    %v544 = vld [vmem:[#allocation2 + $0xdf8] sm:$0xff]
    %v545 = vld [vmem:[#allocation2 + $0xe00] sm:$0xff]
    %v546 = vld [vmem:[#allocation2 + $0xe08] sm:$0xff]
    %v547 = vld [vmem:[#allocation2 + $0xe10] sm:$0xff]
    %v548 = vld [vmem:[#allocation2 + $0xe18] sm:$0xff]
    %v549 = vld [vmem:[#allocation2 + $0xe20] sm:$0xff]
    %v550 = vld [vmem:[#allocation2 + $0xe28] sm:$0xff]
    %v551 = vld [vmem:[#allocation2 + $0xe30] sm:$0xff]
    %v552 = vld [vmem:[#allocation2 + $0xe38] sm:$0xff]
    %v553 = vld [vmem:[#allocation2 + $0xe40] sm:$0xff]
    %v554 = vld [vmem:[#allocation2 + $0xe48] sm:$0xff]
    %v555 = vld [vmem:[#allocation2 + $0xe50] sm:$0xff]
    %v556 = vld [vmem:[#allocation2 + $0xe58] sm:$0xff]
    %v557 = vld [vmem:[#allocation2 + $0xe60] sm:$0xff]
    %v558 = vld [vmem:[#allocation2 + $0xe68] sm:$0xff]
    %v559 = vld [vmem:[#allocation2 + $0xe70] sm:$0xff]
    %v560 = vld [vmem:[#allocation2 + $0xe78] sm:$0xff]
    %v561 = vld [vmem:[#allocation2 + $0xe80] sm:$0xff]
    %v562 = vld [vmem:[#allocation2 + $0xe88] sm:$0xff]
    %v563 = vld [vmem:[#allocation2 + $0xe90] sm:$0xff]
    %v564 = vld [vmem:[#allocation2 + $0xe98] sm:$0xff]
    %v565 = vld [vmem:[#allocation2 + $0xea0] sm:$0xff]
    %v566 = vld [vmem:[#allocation2 + $0xea8] sm:$0xff]
    %v567 = vld [vmem:[#allocation2 + $0xeb0] sm:$0xff]
    %v568 = vld [vmem:[#allocation2 + $0xeb8] sm:$0xff]
    %v569 = vld [vmem:[#allocation2 + $0xec0] sm:$0xff]
    %v570 = vld [vmem:[#allocation2 + $0xec8] sm:$0xff]
    %v571 = vld [vmem:[#allocation2 + $0xed0] sm:$0xff]
    %v572 = vld [vmem:[#allocation2 + $0xed8] sm:$0xff]
    %v573 = vld [vmem:[#allocation2 + $0xee0] sm:$0xff]
    %v574 = vld [vmem:[#allocation2 + $0xee8] sm:$0xff]
    %v575 = vld [vmem:[#allocation2 + $0xef0] sm:$0xff]
    %v576 = vld [vmem:[#allocation2 + $0xef8] sm:$0xff]
    %v577 = vld [vmem:[#allocation2 + $0xf00] sm:$0xff]
    %v578 = vld [vmem:[#allocation2 + $0xf08] sm:$0xff]
    %v579 = vld [vmem:[#allocation2 + $0xf10] sm:$0xff]
    %v580 = vld [vmem:[#allocation2 + $0xf18] sm:$0xff]
    %v581 = vld [vmem:[#allocation2 + $0xf20] sm:$0xff]
    %v582 = vld [vmem:[#allocation2 + $0xf28] sm:$0xff]
    %v583 = vld [vmem:[#allocation2 + $0xf30] sm:$0xff]
    %v584 = vld [vmem:[#allocation2 + $0xf38] sm:$0xff]
    %v585 = vld [vmem:[#allocation2 + $0xf40] sm:$0xff]
    %v586 = vld [vmem:[#allocation2 + $0xf48] sm:$0xff]
    %v587 = vld [vmem:[#allocation2 + $0xf50] sm:$0xff]
    %v588 = vld [vmem:[#allocation2 + $0xf58] sm:$0xff]
    %v589 = vld [vmem:[#allocation2 + $0xf60] sm:$0xff]
    %v590 = vld [vmem:[#allocation2 + $0xf68] sm:$0xff]
    %v591 = vld [vmem:[#allocation2 + $0xf70] sm:$0xff]
    %v592 = vld [vmem:[#allocation2 + $0xf78] sm:$0xff]
    %v593 = vld [vmem:[#allocation2 + $0xf80] sm:$0xff]
    %v594 = vld [vmem:[#allocation2 + $0xf88] sm:$0xff]
    %v595 = vld [vmem:[#allocation2 + $0xf90] sm:$0xff]
    %v596 = vld [vmem:[#allocation2 + $0xf98] sm:$0xff]
    %v597 = vld [vmem:[#allocation2 + $0xfa0] sm:$0xff]
    %v598 = vld [vmem:[#allocation2 + $0xfa8] sm:$0xff]
    %v599 = vld [vmem:[#allocation2 + $0xfb0] sm:$0xff]
    %v600 = vld [vmem:[#allocation2 + $0xfb8] sm:$0xff]
    %v601 = vld [vmem:[#allocation2 + $0xfc0] sm:$0xff]
    %v602 = vld [vmem:[#allocation2 + $0xfc8] sm:$0xff]
    %v603 = vld [vmem:[#allocation2 + $0xfd0] sm:$0xff]
    %v604 = vld [vmem:[#allocation2 + $0xfd8] sm:$0xff]
    %v605 = vld [vmem:[#allocation2 + $0xfe0] sm:$0xff]
    %v606 = vld [vmem:[#allocation2 + $0xfe8] sm:$0xff]
    %v607 = vld [vmem:[#allocation2 + $0xff0] sm:$0xff]
    %v608 = vld [vmem:[#allocation2 + $0xff8] sm:$0xff]
    %v609 = vld [vmem:[#allocation2 + $0x1000] sm:$0xff]
    %v610 = vld [vmem:[#allocation2 + $0x1008] sm:$0xff]
    %v611 = vld [vmem:[#allocation2 + $0x1010] sm:$0xff]
    %v612 = vld [vmem:[#allocation2 + $0x1018] sm:$0xff]
    %v613 = vld [vmem:[#allocation2 + $0x1020] sm:$0xff]
    %v614 = vld [vmem:[#allocation2 + $0x1028] sm:$0xff]
    %v615 = vld [vmem:[#allocation2 + $0x1030] sm:$0xff]
    %v616 = vld [vmem:[#allocation2 + $0x1038] sm:$0xff]
    %v617 = vld [vmem:[#allocation2 + $0x1040] sm:$0xff]
    %v618 = vld [vmem:[#allocation2 + $0x1048] sm:$0xff]
    %v619 = vld [vmem:[#allocation2 + $0x1050] sm:$0xff]
    %v620 = vld [vmem:[#allocation2 + $0x1058] sm:$0xff]
    %v621 = vld [vmem:[#allocation2 + $0x1060] sm:$0xff]
    %v622 = vld [vmem:[#allocation2 + $0x1068] sm:$0xff]
    %v623 = vld [vmem:[#allocation2 + $0x1070] sm:$0xff]
    %v624 = vld [vmem:[#allocation2 + $0x1078] sm:$0xff]
    %v625 = vld [vmem:[#allocation2 + $0x1080] sm:$0xff]
    %v626 = vld [vmem:[#allocation2 + $0x1088] sm:$0xff]
    %v627 = vld [vmem:[#allocation2 + $0x1090] sm:$0xff]
    %v628 = vld [vmem:[#allocation2 + $0x1098] sm:$0xff]
    %v629 = vld [vmem:[#allocation2 + $0x10a0] sm:$0xff]
    %v630 = vld [vmem:[#allocation2 + $0x10a8] sm:$0xff]
    %v631 = vld [vmem:[#allocation2 + $0x10b0] sm:$0xff]
    %v632 = vld [vmem:[#allocation2 + $0x10b8] sm:$0xff]
    %v633 = vld [vmem:[#allocation2 + $0x10c0] sm:$0xff]
    %v634 = vld [vmem:[#allocation2 + $0x10c8] sm:$0xff]
    %v635 = vld [vmem:[#allocation2 + $0x10d0] sm:$0xff]
    %v636 = vld [vmem:[#allocation2 + $0x10d8] sm:$0xff]
    %v637 = vld [vmem:[#allocation2 + $0x10e0] sm:$0xff]
    %v638 = vld [vmem:[#allocation2 + $0x10e8] sm:$0xff]
    %v639 = vld [vmem:[#allocation2 + $0x10f0] sm:$0xff]
    %v640 = vld [vmem:[#allocation2 + $0x10f8] sm:$0xff]
    %v641 = vld [vmem:[#allocation2 + $0x1100] sm:$0xff]
    %v642 = vld [vmem:[#allocation2 + $0x1108] sm:$0xff]
    %v643 = vld [vmem:[#allocation2 + $0x1110] sm:$0xff]
    %v644 = vld [vmem:[#allocation2 + $0x1118] sm:$0xff]
    %v645 = vld [vmem:[#allocation2 + $0x1120] sm:$0xff]
    %v646 = vld [vmem:[#allocation2 + $0x1128] sm:$0xff]
    %v647 = vld [vmem:[#allocation2 + $0x1130] sm:$0xff]
    %v648 = vld [vmem:[#allocation2 + $0x1138] sm:$0xff]
    %v649 = vld [vmem:[#allocation2 + $0x1140] sm:$0xff]
    %v650 = vld [vmem:[#allocation2 + $0x1148] sm:$0xff]
    %v651 = vld [vmem:[#allocation2 + $0x1150] sm:$0xff]
    %v652 = vld [vmem:[#allocation2 + $0x1158] sm:$0xff]
    %v653 = vld [vmem:[#allocation2 + $0x1160] sm:$0xff]
    %v654 = vld [vmem:[#allocation2 + $0x1168] sm:$0xff]
    %v655 = vld [vmem:[#allocation2 + $0x1170] sm:$0xff]
    %v656 = vld [vmem:[#allocation2 + $0x1178] sm:$0xff]
    %v657 = vld [vmem:[#allocation2 + $0x1180] sm:$0xff]
    %v658 = vld [vmem:[#allocation2 + $0x1188] sm:$0xff]
    %v659 = vld [vmem:[#allocation2 + $0x1190] sm:$0xff]
    %v660 = vld [vmem:[#allocation2 + $0x1198] sm:$0xff]
    %v661 = vld [vmem:[#allocation2 + $0x11a0] sm:$0xff]
    %v662 = vld [vmem:[#allocation2 + $0x11a8] sm:$0xff]
    %v663 = vld [vmem:[#allocation2 + $0x11b0] sm:$0xff]
    %v664 = vld [vmem:[#allocation2 + $0x11b8] sm:$0xff]
    %v665 = vld [vmem:[#allocation2 + $0x11c0] sm:$0xff]
    %v666 = vld [vmem:[#allocation2 + $0x11c8] sm:$0xff]
    %v667 = vld [vmem:[#allocation2 + $0x11d0] sm:$0xff]
    %v668 = vld [vmem:[#allocation2 + $0x11d8] sm:$0xff]
    %v669 = vld [vmem:[#allocation2 + $0x11e0] sm:$0xff]
    %v670 = vld [vmem:[#allocation2 + $0x11e8] sm:$0xff]
    %v671 = vld [vmem:[#allocation2 + $0x11f0] sm:$0xff]
    %v672 = vld [vmem:[#allocation2 + $0x11f8] sm:$0xff]
    %v673 = vld [vmem:[#allocation2 + $0x1200] sm:$0xff]
    %v674 = vld [vmem:[#allocation2 + $0x1208] sm:$0xff]
    %v675 = vld [vmem:[#allocation2 + $0x1210] sm:$0xff]
    %v676 = vld [vmem:[#allocation2 + $0x1218] sm:$0xff]
    %v677 = vld [vmem:[#allocation2 + $0x1220] sm:$0xff]
    %v678 = vld [vmem:[#allocation2 + $0x1228] sm:$0xff]
    %v679 = vld [vmem:[#allocation2 + $0x1230] sm:$0xff]
    %v680 = vld [vmem:[#allocation2 + $0x1238] sm:$0xff]
    %v681 = vld [vmem:[#allocation2 + $0x1240] sm:$0xff]
    %v682 = vld [vmem:[#allocation2 + $0x1248] sm:$0xff]
    %v683 = vld [vmem:[#allocation2 + $0x1250] sm:$0xff]
    %v684 = vld [vmem:[#allocation2 + $0x1258] sm:$0xff]
    %v685 = vld [vmem:[#allocation2 + $0x1260] sm:$0xff]
    %v686 = vld [vmem:[#allocation2 + $0x1268] sm:$0xff]
    %v687 = vld [vmem:[#allocation2 + $0x1270] sm:$0xff]
    %v688 = vld [vmem:[#allocation2 + $0x1278] sm:$0xff]
    %v689 = vld [vmem:[#allocation2 + $0x1280] sm:$0xff]
    %v690 = vld [vmem:[#allocation2 + $0x1288] sm:$0xff]
    %v691 = vld [vmem:[#allocation2 + $0x1290] sm:$0xff]
    %v692 = vld [vmem:[#allocation2 + $0x1298] sm:$0xff]
    %v693 = vld [vmem:[#allocation2 + $0x12a0] sm:$0xff]
    %v694 = vld [vmem:[#allocation2 + $0x12a8] sm:$0xff]
    %v695 = vld [vmem:[#allocation2 + $0x12b0] sm:$0xff]
    %v696 = vld [vmem:[#allocation2 + $0x12b8] sm:$0xff]
    %v697 = vld [vmem:[#allocation2 + $0x12c0] sm:$0xff]
    %v698 = vld [vmem:[#allocation2 + $0x12c8] sm:$0xff]
    %v699 = vld [vmem:[#allocation2 + $0x12d0] sm:$0xff]
    %v700 = vld [vmem:[#allocation2 + $0x12d8] sm:$0xff]
    %v701 = vld [vmem:[#allocation2 + $0x12e0] sm:$0xff]
    %v702 = vld [vmem:[#allocation2 + $0x12e8] sm:$0xff]
    %v703 = vld [vmem:[#allocation2 + $0x12f0] sm:$0xff]
    %v704 = vld [vmem:[#allocation2 + $0x12f8] sm:$0xff]
    %v705 = vld [vmem:[#allocation2 + $0x1300] sm:$0xff]
    %v706 = vld [vmem:[#allocation2 + $0x1308] sm:$0xff]
    %v707 = vld [vmem:[#allocation2 + $0x1310] sm:$0xff]
    %v708 = vld [vmem:[#allocation2 + $0x1318] sm:$0xff]
    %v709 = vld [vmem:[#allocation2 + $0x1320] sm:$0xff]
    %v710 = vld [vmem:[#allocation2 + $0x1328] sm:$0xff]
    %v711 = vld [vmem:[#allocation2 + $0x1330] sm:$0xff]
    %v712 = vld [vmem:[#allocation2 + $0x1338] sm:$0xff]
    %v713 = vld [vmem:[#allocation2 + $0x1340] sm:$0xff]
    %v714 = vld [vmem:[#allocation2 + $0x1348] sm:$0xff]
    %v715 = vld [vmem:[#allocation2 + $0x1350] sm:$0xff]
    %v716 = vld [vmem:[#allocation2 + $0x1358] sm:$0xff]
    %v717 = vld [vmem:[#allocation2 + $0x1360] sm:$0xff]
    %v718 = vld [vmem:[#allocation2 + $0x1368] sm:$0xff]
    %v719 = vld [vmem:[#allocation2 + $0x1370] sm:$0xff]
    %v720 = vld [vmem:[#allocation2 + $0x1378] sm:$0xff]
    %v721 = vld [vmem:[#allocation2 + $0x1380] sm:$0xff]
    %v722 = vld [vmem:[#allocation2 + $0x1388] sm:$0xff]
    %v723 = vld [vmem:[#allocation2 + $0x1390] sm:$0xff]
    %v724 = vld [vmem:[#allocation2 + $0x1398] sm:$0xff]
    %v725 = vld [vmem:[#allocation2 + $0x13a0] sm:$0xff]
    %v726 = vld [vmem:[#allocation2 + $0x13a8] sm:$0xff]
    %v727 = vld [vmem:[#allocation2 + $0x13b0] sm:$0xff]
    %v728 = vld [vmem:[#allocation2 + $0x13b8] sm:$0xff]
    %v729 = vld [vmem:[#allocation2 + $0x13c0] sm:$0xff]
    %v730 = vld [vmem:[#allocation2 + $0x13c8] sm:$0xff]
    %v731 = vld [vmem:[#allocation2 + $0x13d0] sm:$0xff]
    %v732 = vld [vmem:[#allocation2 + $0x13d8] sm:$0xff]
    %v733 = vld [vmem:[#allocation2 + $0x13e0] sm:$0xff]
    %v734 = vld [vmem:[#allocation2 + $0x13e8] sm:$0xff]
    %v735 = vld [vmem:[#allocation2 + $0x13f0] sm:$0xff]
    %v736 = vld [vmem:[#allocation2 + $0x13f8] sm:$0xff]
    %v737 = vld [vmem:[#allocation2 + $0x1400] sm:$0xff]
    %v738 = vld [vmem:[#allocation2 + $0x1408] sm:$0xff]
    %v739 = vld [vmem:[#allocation2 + $0x1410] sm:$0xff]
    %v740 = vld [vmem:[#allocation2 + $0x1418] sm:$0xff]
    %v741 = vld [vmem:[#allocation2 + $0x1420] sm:$0xff]
    %v742 = vld [vmem:[#allocation2 + $0x1428] sm:$0xff]
    %v743 = vld [vmem:[#allocation2 + $0x1430] sm:$0xff]
    %v744 = vld [vmem:[#allocation2 + $0x1438] sm:$0xff]
    %v745 = vld [vmem:[#allocation2 + $0x1440] sm:$0xff]
    %v746 = vld [vmem:[#allocation2 + $0x1448] sm:$0xff]
    %v747 = vld [vmem:[#allocation2 + $0x1450] sm:$0xff]
    %v748 = vld [vmem:[#allocation2 + $0x1458] sm:$0xff]
    %v749 = vld [vmem:[#allocation2 + $0x1460] sm:$0xff]
    %v750 = vld [vmem:[#allocation2 + $0x1468] sm:$0xff]
    %v751 = vld [vmem:[#allocation2 + $0x1470] sm:$0xff]
    %v752 = vld [vmem:[#allocation2 + $0x1478] sm:$0xff]
    %v753 = vld [vmem:[#allocation2 + $0x1480] sm:$0xff]
    %v754 = vld [vmem:[#allocation2 + $0x1488] sm:$0xff]
    %v755 = vld [vmem:[#allocation2 + $0x1490] sm:$0xff]
    %v756 = vld [vmem:[#allocation2 + $0x1498] sm:$0xff]
    %v757 = vld [vmem:[#allocation2 + $0x14a0] sm:$0xff]
    %v758 = vld [vmem:[#allocation2 + $0x14a8] sm:$0xff]
    %v759 = vld [vmem:[#allocation2 + $0x14b0] sm:$0xff]
    %v760 = vld [vmem:[#allocation2 + $0x14b8] sm:$0xff]
    %v761 = vld [vmem:[#allocation2 + $0x14c0] sm:$0xff]
    %v762 = vld [vmem:[#allocation2 + $0x14c8] sm:$0xff]
    %v763 = vld [vmem:[#allocation2 + $0x14d0] sm:$0xff]
    %v764 = vld [vmem:[#allocation2 + $0x14d8] sm:$0xff]
    %v765 = vld [vmem:[#allocation2 + $0x14e0] sm:$0xff]
    %v766 = vld [vmem:[#allocation2 + $0x14e8] sm:$0xff]
    %v767 = vld [vmem:[#allocation2 + $0x14f0] sm:$0xff]
    %v768 = vld [vmem:[#allocation2 + $0x14f8] sm:$0xff]
    %v769 = vld [vmem:[#allocation2 + $0x1500] sm:$0xff]
    %v770 = vld [vmem:[#allocation2 + $0x1508] sm:$0xff]
    %v771 = vld [vmem:[#allocation2 + $0x1510] sm:$0xff]
    %v772 = vld [vmem:[#allocation2 + $0x1518] sm:$0xff]
    %v773 = vld [vmem:[#allocation2 + $0x1520] sm:$0xff]
    %v774 = vld [vmem:[#allocation2 + $0x1528] sm:$0xff]
    %v775 = vld [vmem:[#allocation2 + $0x1530] sm:$0xff]
    %v776 = vld [vmem:[#allocation2 + $0x1538] sm:$0xff]
    %v777 = vld [vmem:[#allocation2 + $0x1540] sm:$0xff]
    %v778 = vld [vmem:[#allocation2 + $0x1548] sm:$0xff]
    %v779 = vld [vmem:[#allocation2 + $0x1550] sm:$0xff]
    %v780 = vld [vmem:[#allocation2 + $0x1558] sm:$0xff]
    %v781 = vld [vmem:[#allocation2 + $0x1560] sm:$0xff]
    %v782 = vld [vmem:[#allocation2 + $0x1568] sm:$0xff]
    %v783 = vld [vmem:[#allocation2 + $0x1570] sm:$0xff]
    %v784 = vld [vmem:[#allocation2 + $0x1578] sm:$0xff]
    %v785 = vld [vmem:[#allocation2 + $0x1580] sm:$0xff]
    %v786 = vld [vmem:[#allocation2 + $0x1588] sm:$0xff]
    %v787 = vld [vmem:[#allocation2 + $0x1590] sm:$0xff]
    %v788 = vld [vmem:[#allocation2 + $0x1598] sm:$0xff]
    %v789 = vld [vmem:[#allocation2 + $0x15a0] sm:$0xff]
    %v790 = vld [vmem:[#allocation2 + $0x15a8] sm:$0xff]
    %v791 = vld [vmem:[#allocation2 + $0x15b0] sm:$0xff]
    %v792 = vld [vmem:[#allocation2 + $0x15b8] sm:$0xff]
    %v793 = vld [vmem:[#allocation2 + $0x15c0] sm:$0xff]
    %v794 = vld [vmem:[#allocation2 + $0x15c8] sm:$0xff]
    %v795 = vld [vmem:[#allocation2 + $0x15d0] sm:$0xff]
    %v796 = vld [vmem:[#allocation2 + $0x15d8] sm:$0xff]
    %v797 = vld [vmem:[#allocation2 + $0x15e0] sm:$0xff]
    %v798 = vld [vmem:[#allocation2 + $0x15e8] sm:$0xff]
    %v799 = vld [vmem:[#allocation2 + $0x15f0] sm:$0xff]
    %v800 = vld [vmem:[#allocation2 + $0x15f8] sm:$0xff]
    %v801 = vld [vmem:[#allocation2 + $0x1600] sm:$0xff]
    %v802 = vld [vmem:[#allocation2 + $0x1608] sm:$0xff]
    %v803 = vld [vmem:[#allocation2 + $0x1610] sm:$0xff]
    %v804 = vld [vmem:[#allocation2 + $0x1618] sm:$0xff]
    %v805 = vld [vmem:[#allocation2 + $0x1620] sm:$0xff]
    %v806 = vld [vmem:[#allocation2 + $0x1628] sm:$0xff]
    %v807 = vld [vmem:[#allocation2 + $0x1630] sm:$0xff]
    %v808 = vld [vmem:[#allocation2 + $0x1638] sm:$0xff]
    %v809 = vld [vmem:[#allocation2 + $0x1640] sm:$0xff]
    %v810 = vld [vmem:[#allocation2 + $0x1648] sm:$0xff]
    %v811 = vld [vmem:[#allocation2 + $0x1650] sm:$0xff]
    %v812 = vld [vmem:[#allocation2 + $0x1658] sm:$0xff]
    %v813 = vld [vmem:[#allocation2 + $0x1660] sm:$0xff]
    %v814 = vld [vmem:[#allocation2 + $0x1668] sm:$0xff]
    %v815 = vld [vmem:[#allocation2 + $0x1670] sm:$0xff]
    %v816 = vld [vmem:[#allocation2 + $0x1678] sm:$0xff]
    %v817 = vld [vmem:[#allocation2 + $0x1680] sm:$0xff]
    %v818 = vld [vmem:[#allocation2 + $0x1688] sm:$0xff]
    %v819 = vld [vmem:[#allocation2 + $0x1690] sm:$0xff]
    %v820 = vld [vmem:[#allocation2 + $0x1698] sm:$0xff]
    %v821 = vld [vmem:[#allocation2 + $0x16a0] sm:$0xff]
    %v822 = vld [vmem:[#allocation2 + $0x16a8] sm:$0xff]
    %v823 = vld [vmem:[#allocation2 + $0x16b0] sm:$0xff]
    %v824 = vld [vmem:[#allocation2 + $0x16b8] sm:$0xff]
    %v825 = vld [vmem:[#allocation2 + $0x16c0] sm:$0xff]
    %v826 = vld [vmem:[#allocation2 + $0x16c8] sm:$0xff]
    %v827 = vld [vmem:[#allocation2 + $0x16d0] sm:$0xff]
    %v828 = vld [vmem:[#allocation2 + $0x16d8] sm:$0xff]
    %v829 = vld [vmem:[#allocation2 + $0x16e0] sm:$0xff]
    %v830 = vld [vmem:[#allocation2 + $0x16e8] sm:$0xff]
    %v831 = vld [vmem:[#allocation2 + $0x16f0] sm:$0xff]
    %v832 = vld [vmem:[#allocation2 + $0x16f8] sm:$0xff]
    %v833 = vld [vmem:[#allocation2 + $0x1700] sm:$0xff]
    %v834 = vld [vmem:[#allocation2 + $0x1708] sm:$0xff]
    %v835 = vld [vmem:[#allocation2 + $0x1710] sm:$0xff]
    %v836 = vld [vmem:[#allocation2 + $0x1718] sm:$0xff]
    %v837 = vld [vmem:[#allocation2 + $0x1720] sm:$0xff]
    %v838 = vld [vmem:[#allocation2 + $0x1728] sm:$0xff]
    %v839 = vld [vmem:[#allocation2 + $0x1730] sm:$0xff]
    %v840 = vld [vmem:[#allocation2 + $0x1738] sm:$0xff]
    %v841 = vld [vmem:[#allocation2 + $0x1740] sm:$0xff]
    %v842 = vld [vmem:[#allocation2 + $0x1748] sm:$0xff]
    %v843 = vld [vmem:[#allocation2 + $0x1750] sm:$0xff]
    %v844 = vld [vmem:[#allocation2 + $0x1758] sm:$0xff]
    %v845 = vld [vmem:[#allocation2 + $0x1760] sm:$0xff]
    %v846 = vld [vmem:[#allocation2 + $0x1768] sm:$0xff]
    %v847 = vld [vmem:[#allocation2 + $0x1770] sm:$0xff]
    %v848 = vld [vmem:[#allocation2 + $0x1778] sm:$0xff]
    %v849 = vld [vmem:[#allocation2 + $0x1780] sm:$0xff]
    %v850 = vld [vmem:[#allocation2 + $0x1788] sm:$0xff]
    %v851 = vld [vmem:[#allocation2 + $0x1790] sm:$0xff]
    %v852 = vld [vmem:[#allocation2 + $0x1798] sm:$0xff]
    %v853 = vld [vmem:[#allocation2 + $0x17a0] sm:$0xff]
    %v854 = vld [vmem:[#allocation2 + $0x17a8] sm:$0xff]
    %v855 = vld [vmem:[#allocation2 + $0x17b0] sm:$0xff]
    %v856 = vld [vmem:[#allocation2 + $0x17b8] sm:$0xff]
    %v857 = vld [vmem:[#allocation2 + $0x17c0] sm:$0xff]
    %v858 = vld [vmem:[#allocation2 + $0x17c8] sm:$0xff]
    %v859 = vld [vmem:[#allocation2 + $0x17d0] sm:$0xff]
    %v860 = vld [vmem:[#allocation2 + $0x17d8] sm:$0xff]
    %v861 = vld [vmem:[#allocation2 + $0x17e0] sm:$0xff]
    %v862 = vld [vmem:[#allocation2 + $0x17e8] sm:$0xff]
    %v863 = vld [vmem:[#allocation2 + $0x17f0] sm:$0xff]
    %v864 = vld [vmem:[#allocation2 + $0x17f8] sm:$0xff]
    %v865 = vlaneseq
    %v866 = vshrl.u32 %v865, 7
    %v867 = vsub.s32 0, %v866
    %v868 = vrot.slane %v80, %v867
    %v869 = vlaneseq
    %v870 = vshrl.u32 %v869, 7
    %v871 = vsub.s32 0, %v870
    %v872 = vrot.slane %v81, %v871
    %v873 = vlaneseq
    %v874 = vshrl.u32 %v873, 7
    %v875 = vsub.s32 0, %v874
    %v876 = vrot.slane %v82, %v875
    %v877 = vlaneseq
    %v878 = vshrl.u32 %v877, 7
    %v879 = vsub.s32 0, %v878
    %v880 = vrot.slane %v83, %v879
    %v893 = vunpack.c.l.b16 %v85
    %v894 = vunpack.c.h.b16 %v85
    %v895 = vunpack.c.l.b16 %v86
    %v896 = vunpack.c.h.b16 %v86
    %v897 = vunpack.c.l.b16 %v87
    %v898 = vunpack.c.h.b16 %v87
    %v899 = vunpack.c.l.b16 %v88
    %v900 = vunpack.c.h.b16 %v88
    %v901 = vunpack.c.l.b16 %v89
    %v902 = vunpack.c.h.b16 %v89
    %v903 = vunpack.c.l.b16 %v90
    %v904 = vunpack.c.h.b16 %v90
    %v905 = vunpack.c.l.b16 %v91
    %v906 = vunpack.c.h.b16 %v91
    %v907 = vunpack.c.l.b16 %v92
    %v908 = vunpack.c.h.b16 %v92
    %v909 = vunpack.c.l.b16 %v93
    %v910 = vunpack.c.h.b16 %v93
    %v911 = vunpack.c.l.b16 %v94
    %v912 = vunpack.c.h.b16 %v94
    %v913 = vunpack.c.l.b16 %v95
    %v914 = vunpack.c.h.b16 %v95
    %v915 = vunpack.c.l.b16 %v96
    %v916 = vunpack.c.h.b16 %v96
    %v917 = vpack.c.b16 %v893, %v893
    %v918 = vpack.c.b16 %v894, %v894
    %v919 = vpack.c.b16 %v895, %v895
    %v920 = vpack.c.b16 %v896, %v896
    %v921 = vpack.c.b16 %v897, %v897
    %v922 = vpack.c.b16 %v898, %v898
    %v923 = vpack.c.b16 %v899, %v899
    %v924 = vpack.c.b16 %v900, %v900
    %v925 = vpack.c.b16 %v901, %v901
    %v926 = vpack.c.b16 %v902, %v902
    %v927 = vpack.c.b16 %v903, %v903
    %v928 = vpack.c.b16 %v904, %v904
    %v929 = vpack.c.b16 %v905, %v905
    %v930 = vpack.c.b16 %v906, %v906
    %v931 = vpack.c.b16 %v907, %v907
    %v932 = vpack.c.b16 %v908, %v908
    %v933 = vpack.c.b16 %v909, %v909
    %v934 = vpack.c.b16 %v910, %v910
    %v935 = vpack.c.b16 %v911, %v911
    %v936 = vpack.c.b16 %v912, %v912
    %v937 = vpack.c.b16 %v913, %v913
    %v938 = vpack.c.b16 %v914, %v914
    %v939 = vpack.c.b16 %v915, %v915
    %v940 = vpack.c.b16 %v916, %v916
    %v1733 = vunpack.c.l.b16 %v97
    %v1734 = vunpack.c.h.b16 %v97
    %v1735 = vunpack.c.l.b16 %v98
    %v1736 = vunpack.c.h.b16 %v98
    %v1737 = vunpack.c.l.b16 %v99
    %v1738 = vunpack.c.h.b16 %v99
    %v1739 = vunpack.c.l.b16 %v100
    %v1740 = vunpack.c.h.b16 %v100
    %v1741 = vunpack.c.l.b16 %v101
    %v1742 = vunpack.c.h.b16 %v101
    %v1743 = vunpack.c.l.b16 %v102
    %v1744 = vunpack.c.h.b16 %v102
    %v1745 = vunpack.c.l.b16 %v103
    %v1746 = vunpack.c.h.b16 %v103
    %v1747 = vunpack.c.l.b16 %v104
    %v1748 = vunpack.c.h.b16 %v104
    %v1749 = vunpack.c.l.b16 %v105
    %v1750 = vunpack.c.h.b16 %v105
    %v1751 = vunpack.c.l.b16 %v106
    %v1752 = vunpack.c.h.b16 %v106
    %v1753 = vunpack.c.l.b16 %v107
    %v1754 = vunpack.c.h.b16 %v107
    %v1755 = vunpack.c.l.b16 %v108
    %v1756 = vunpack.c.h.b16 %v108
    %v1757 = vunpack.c.l.b16 %v109
    %v1758 = vunpack.c.h.b16 %v109
    %v1759 = vunpack.c.l.b16 %v110
    %v1760 = vunpack.c.h.b16 %v110
    %v1761 = vunpack.c.l.b16 %v111
    %v1762 = vunpack.c.h.b16 %v111
    %v1763 = vunpack.c.l.b16 %v112
    %v1764 = vunpack.c.h.b16 %v112
    %v1765 = vunpack.c.l.b16 %v113
    %v1766 = vunpack.c.h.b16 %v113
    %v1767 = vunpack.c.l.b16 %v114
    %v1768 = vunpack.c.h.b16 %v114
    %v1769 = vunpack.c.l.b16 %v115
    %v1770 = vunpack.c.h.b16 %v115
    %v1771 = vunpack.c.l.b16 %v116
    %v1772 = vunpack.c.h.b16 %v116
    %v1773 = vunpack.c.l.b16 %v117
    %v1774 = vunpack.c.h.b16 %v117
    %v1775 = vunpack.c.l.b16 %v118
    %v1776 = vunpack.c.h.b16 %v118
    %v1777 = vunpack.c.l.b16 %v119
    %v1778 = vunpack.c.h.b16 %v119
    %v1779 = vunpack.c.l.b16 %v120
    %v1780 = vunpack.c.h.b16 %v120
    %v1781 = vunpack.c.l.b16 %v121
    %v1782 = vunpack.c.h.b16 %v121
    %v1783 = vunpack.c.l.b16 %v122
    %v1784 = vunpack.c.h.b16 %v122
    %v1785 = vunpack.c.l.b16 %v123
    %v1786 = vunpack.c.h.b16 %v123
    %v1787 = vunpack.c.l.b16 %v124
    %v1788 = vunpack.c.h.b16 %v124
    %v1789 = vunpack.c.l.b16 %v125
    %v1790 = vunpack.c.h.b16 %v125
    %v1791 = vunpack.c.l.b16 %v126
    %v1792 = vunpack.c.h.b16 %v126
    %v1793 = vunpack.c.l.b16 %v127
    %v1794 = vunpack.c.h.b16 %v127
    %v1795 = vunpack.c.l.b16 %v128
    %v1796 = vunpack.c.h.b16 %v128
    %v1797 = vunpack.c.l.b16 %v129
    %v1798 = vunpack.c.h.b16 %v129
    %v1799 = vunpack.c.l.b16 %v130
    %v1800 = vunpack.c.h.b16 %v130
    %v1801 = vunpack.c.l.b16 %v131
    %v1802 = vunpack.c.h.b16 %v131
    %v1803 = vunpack.c.l.b16 %v132
    %v1804 = vunpack.c.h.b16 %v132
    %v1805 = vunpack.c.l.b16 %v133
    %v1806 = vunpack.c.h.b16 %v133
    %v1807 = vunpack.c.l.b16 %v134
    %v1808 = vunpack.c.h.b16 %v134
    %v1809 = vunpack.c.l.b16 %v135
    %v1810 = vunpack.c.h.b16 %v135
    %v1811 = vunpack.c.l.b16 %v136
    %v1812 = vunpack.c.h.b16 %v136
    %v1813 = vunpack.c.l.b16 %v137
    %v1814 = vunpack.c.h.b16 %v137
    %v1815 = vunpack.c.l.b16 %v138
    %v1816 = vunpack.c.h.b16 %v138
    %v1817 = vunpack.c.l.b16 %v139
    %v1818 = vunpack.c.h.b16 %v139
    %v1819 = vunpack.c.l.b16 %v140
    %v1820 = vunpack.c.h.b16 %v140
    %v1821 = vunpack.c.l.b16 %v141
    %v1822 = vunpack.c.h.b16 %v141
    %v1823 = vunpack.c.l.b16 %v142
    %v1824 = vunpack.c.h.b16 %v142
    %v1825 = vunpack.c.l.b16 %v143
    %v1826 = vunpack.c.h.b16 %v143
    %v1827 = vunpack.c.l.b16 %v144
    %v1828 = vunpack.c.h.b16 %v144
    %v1829 = vunpack.c.l.b16 %v145
    %v1830 = vunpack.c.h.b16 %v145
    %v1831 = vunpack.c.l.b16 %v146
    %v1832 = vunpack.c.h.b16 %v146
    %v1833 = vunpack.c.l.b16 %v147
    %v1834 = vunpack.c.h.b16 %v147
    %v1835 = vunpack.c.l.b16 %v148
    %v1836 = vunpack.c.h.b16 %v148
    %v1837 = vunpack.c.l.b16 %v149
    %v1838 = vunpack.c.h.b16 %v149
    %v1839 = vunpack.c.l.b16 %v150
    %v1840 = vunpack.c.h.b16 %v150
    %v1841 = vunpack.c.l.b16 %v151
    %v1842 = vunpack.c.h.b16 %v151
    %v1843 = vunpack.c.l.b16 %v152
    %v1844 = vunpack.c.h.b16 %v152
    %v1845 = vunpack.c.l.b16 %v153
    %v1846 = vunpack.c.h.b16 %v153
    %v1847 = vunpack.c.l.b16 %v154
    %v1848 = vunpack.c.h.b16 %v154
    %v1849 = vunpack.c.l.b16 %v155
    %v1850 = vunpack.c.h.b16 %v155
    %v1851 = vunpack.c.l.b16 %v156
    %v1852 = vunpack.c.h.b16 %v156
    %v1853 = vunpack.c.l.b16 %v157
    %v1854 = vunpack.c.h.b16 %v157
    %v1855 = vunpack.c.l.b16 %v158
    %v1856 = vunpack.c.h.b16 %v158
    %v1857 = vunpack.c.l.b16 %v159
    %v1858 = vunpack.c.h.b16 %v159
    %v1859 = vunpack.c.l.b16 %v160
    %v1860 = vunpack.c.h.b16 %v160
    %v1861 = vunpack.c.l.b16 %v161
    %v1862 = vunpack.c.h.b16 %v161
    %v1863 = vunpack.c.l.b16 %v162
    %v1864 = vunpack.c.h.b16 %v162
    %v1865 = vunpack.c.l.b16 %v163
    %v1866 = vunpack.c.h.b16 %v163
    %v1867 = vunpack.c.l.b16 %v164
    %v1868 = vunpack.c.h.b16 %v164
    %v1869 = vunpack.c.l.b16 %v165
    %v1870 = vunpack.c.h.b16 %v165
    %v1871 = vunpack.c.l.b16 %v166
    %v1872 = vunpack.c.h.b16 %v166
    %v1873 = vunpack.c.l.b16 %v167
    %v1874 = vunpack.c.h.b16 %v167
    %v1875 = vunpack.c.l.b16 %v168
    %v1876 = vunpack.c.h.b16 %v168
    %v1877 = vunpack.c.l.b16 %v169
    %v1878 = vunpack.c.h.b16 %v169
    %v1879 = vunpack.c.l.b16 %v170
    %v1880 = vunpack.c.h.b16 %v170
    %v1881 = vunpack.c.l.b16 %v171
    %v1882 = vunpack.c.h.b16 %v171
    %v1883 = vunpack.c.l.b16 %v172
    %v1884 = vunpack.c.h.b16 %v172
    %v1885 = vunpack.c.l.b16 %v173
    %v1886 = vunpack.c.h.b16 %v173
    %v1887 = vunpack.c.l.b16 %v174
    %v1888 = vunpack.c.h.b16 %v174
    %v1889 = vunpack.c.l.b16 %v175
    %v1890 = vunpack.c.h.b16 %v175
    %v1891 = vunpack.c.l.b16 %v176
    %v1892 = vunpack.c.h.b16 %v176
    %v1893 = vunpack.c.l.b16 %v177
    %v1894 = vunpack.c.h.b16 %v177
    %v1895 = vunpack.c.l.b16 %v178
    %v1896 = vunpack.c.h.b16 %v178
    %v1897 = vunpack.c.l.b16 %v179
    %v1898 = vunpack.c.h.b16 %v179
    %v1899 = vunpack.c.l.b16 %v180
    %v1900 = vunpack.c.h.b16 %v180
    %v1901 = vunpack.c.l.b16 %v181
    %v1902 = vunpack.c.h.b16 %v181
    %v1903 = vunpack.c.l.b16 %v182
    %v1904 = vunpack.c.h.b16 %v182
    %v1905 = vunpack.c.l.b16 %v183
    %v1906 = vunpack.c.h.b16 %v183
    %v1907 = vunpack.c.l.b16 %v184
    %v1908 = vunpack.c.h.b16 %v184
    %v1909 = vunpack.c.l.b16 %v185
    %v1910 = vunpack.c.h.b16 %v185
    %v1911 = vunpack.c.l.b16 %v186
    %v1912 = vunpack.c.h.b16 %v186
    %v1913 = vunpack.c.l.b16 %v187
    %v1914 = vunpack.c.h.b16 %v187
    %v1915 = vunpack.c.l.b16 %v188
    %v1916 = vunpack.c.h.b16 %v188
    %v1917 = vunpack.c.l.b16 %v189
    %v1918 = vunpack.c.h.b16 %v189
    %v1919 = vunpack.c.l.b16 %v190
    %v1920 = vunpack.c.h.b16 %v190
    %v1921 = vunpack.c.l.b16 %v191
    %v1922 = vunpack.c.h.b16 %v191
    %v1923 = vunpack.c.l.b16 %v192
    %v1924 = vunpack.c.h.b16 %v192
    %v1925 = vunpack.c.l.b16 %v193
    %v1926 = vunpack.c.h.b16 %v193
    %v1927 = vunpack.c.l.b16 %v194
    %v1928 = vunpack.c.h.b16 %v194
    %v1929 = vunpack.c.l.b16 %v195
    %v1930 = vunpack.c.h.b16 %v195
    %v1931 = vunpack.c.l.b16 %v196
    %v1932 = vunpack.c.h.b16 %v196
    %v1933 = vunpack.c.l.b16 %v197
    %v1934 = vunpack.c.h.b16 %v197
    %v1935 = vunpack.c.l.b16 %v198
    %v1936 = vunpack.c.h.b16 %v198
    %v1937 = vunpack.c.l.b16 %v199
    %v1938 = vunpack.c.h.b16 %v199
    %v1939 = vunpack.c.l.b16 %v200
    %v1940 = vunpack.c.h.b16 %v200
    %v1941 = vunpack.c.l.b16 %v201
    %v1942 = vunpack.c.h.b16 %v201
    %v1943 = vunpack.c.l.b16 %v202
    %v1944 = vunpack.c.h.b16 %v202
    %v1945 = vunpack.c.l.b16 %v203
    %v1946 = vunpack.c.h.b16 %v203
    %v1947 = vunpack.c.l.b16 %v204
    %v1948 = vunpack.c.h.b16 %v204
    %v1949 = vunpack.c.l.b16 %v205
    %v1950 = vunpack.c.h.b16 %v205
    %v1951 = vunpack.c.l.b16 %v206
    %v1952 = vunpack.c.h.b16 %v206
    %v1953 = vunpack.c.l.b16 %v207
    %v1954 = vunpack.c.h.b16 %v207
    %v1955 = vunpack.c.l.b16 %v208
    %v1956 = vunpack.c.h.b16 %v208
    %v1957 = vunpack.c.l.b16 %v209
    %v1958 = vunpack.c.h.b16 %v209
    %v1959 = vunpack.c.l.b16 %v210
    %v1960 = vunpack.c.h.b16 %v210
    %v1961 = vunpack.c.l.b16 %v211
    %v1962 = vunpack.c.h.b16 %v211
    %v1963 = vunpack.c.l.b16 %v212
    %v1964 = vunpack.c.h.b16 %v212
    %v1965 = vunpack.c.l.b16 %v213
    %v1966 = vunpack.c.h.b16 %v213
    %v1967 = vunpack.c.l.b16 %v214
    %v1968 = vunpack.c.h.b16 %v214
    %v1969 = vunpack.c.l.b16 %v215
    %v1970 = vunpack.c.h.b16 %v215
    %v1971 = vunpack.c.l.b16 %v216
    %v1972 = vunpack.c.h.b16 %v216
    %v1973 = vunpack.c.l.b16 %v217
    %v1974 = vunpack.c.h.b16 %v217
    %v1975 = vunpack.c.l.b16 %v218
    %v1976 = vunpack.c.h.b16 %v218
    %v1977 = vunpack.c.l.b16 %v219
    %v1978 = vunpack.c.h.b16 %v219
    %v1979 = vunpack.c.l.b16 %v220
    %v1980 = vunpack.c.h.b16 %v220
    %v1981 = vunpack.c.l.b16 %v221
    %v1982 = vunpack.c.h.b16 %v221
    %v1983 = vunpack.c.l.b16 %v222
    %v1984 = vunpack.c.h.b16 %v222
    %v1985 = vunpack.c.l.b16 %v223
    %v1986 = vunpack.c.h.b16 %v223
    %v1987 = vunpack.c.l.b16 %v224
    %v1988 = vunpack.c.h.b16 %v224
    %v1989 = vunpack.c.l.b16 %v225
    %v1990 = vunpack.c.h.b16 %v225
    %v1991 = vunpack.c.l.b16 %v226
    %v1992 = vunpack.c.h.b16 %v226
    %v1993 = vunpack.c.l.b16 %v227
    %v1994 = vunpack.c.h.b16 %v227
    %v1995 = vunpack.c.l.b16 %v228
    %v1996 = vunpack.c.h.b16 %v228
    %v1997 = vunpack.c.l.b16 %v229
    %v1998 = vunpack.c.h.b16 %v229
    %v1999 = vunpack.c.l.b16 %v230
    %v2000 = vunpack.c.h.b16 %v230
    %v2001 = vunpack.c.l.b16 %v231
    %v2002 = vunpack.c.h.b16 %v231
    %v2003 = vunpack.c.l.b16 %v232
    %v2004 = vunpack.c.h.b16 %v232
    %v2005 = vunpack.c.l.b16 %v233
    %v2006 = vunpack.c.h.b16 %v233
    %v2007 = vunpack.c.l.b16 %v234
    %v2008 = vunpack.c.h.b16 %v234
    %v2009 = vunpack.c.l.b16 %v235
    %v2010 = vunpack.c.h.b16 %v235
    %v2011 = vunpack.c.l.b16 %v236
    %v2012 = vunpack.c.h.b16 %v236
    %v2013 = vunpack.c.l.b16 %v237
    %v2014 = vunpack.c.h.b16 %v237
    %v2015 = vunpack.c.l.b16 %v238
    %v2016 = vunpack.c.h.b16 %v238
    %v2017 = vunpack.c.l.b16 %v239
    %v2018 = vunpack.c.h.b16 %v239
    %v2019 = vunpack.c.l.b16 %v240
    %v2020 = vunpack.c.h.b16 %v240
    %v2021 = vunpack.c.l.b16 %v241
    %v2022 = vunpack.c.h.b16 %v241
    %v2023 = vunpack.c.l.b16 %v242
    %v2024 = vunpack.c.h.b16 %v242
    %v2025 = vunpack.c.l.b16 %v243
    %v2026 = vunpack.c.h.b16 %v243
    %v2027 = vunpack.c.l.b16 %v244
    %v2028 = vunpack.c.h.b16 %v244
    %v2029 = vunpack.c.l.b16 %v245
    %v2030 = vunpack.c.h.b16 %v245
    %v2031 = vunpack.c.l.b16 %v246
    %v2032 = vunpack.c.h.b16 %v246
    %v2033 = vunpack.c.l.b16 %v247
    %v2034 = vunpack.c.h.b16 %v247
    %v2035 = vunpack.c.l.b16 %v248
    %v2036 = vunpack.c.h.b16 %v248
    %v2037 = vunpack.c.l.b16 %v249
    %v2038 = vunpack.c.h.b16 %v249
    %v2039 = vunpack.c.l.b16 %v250
    %v2040 = vunpack.c.h.b16 %v250
    %v2041 = vunpack.c.l.b16 %v251
    %v2042 = vunpack.c.h.b16 %v251
    %v2043 = vunpack.c.l.b16 %v252
    %v2044 = vunpack.c.h.b16 %v252
    %v2045 = vunpack.c.l.b16 %v253
    %v2046 = vunpack.c.h.b16 %v253
    %v2047 = vunpack.c.l.b16 %v254
    %v2048 = vunpack.c.h.b16 %v254
    %v2049 = vunpack.c.l.b16 %v255
    %v2050 = vunpack.c.h.b16 %v255
    %v2051 = vunpack.c.l.b16 %v256
    %v2052 = vunpack.c.h.b16 %v256
    %v2053 = vunpack.c.l.b16 %v257
    %v2054 = vunpack.c.h.b16 %v257
    %v2055 = vunpack.c.l.b16 %v258
    %v2056 = vunpack.c.h.b16 %v258
    %v2057 = vunpack.c.l.b16 %v259
    %v2058 = vunpack.c.h.b16 %v259
    %v2059 = vunpack.c.l.b16 %v260
    %v2060 = vunpack.c.h.b16 %v260
    %v2061 = vunpack.c.l.b16 %v261
    %v2062 = vunpack.c.h.b16 %v261
    %v2063 = vunpack.c.l.b16 %v262
    %v2064 = vunpack.c.h.b16 %v262
    %v2065 = vunpack.c.l.b16 %v263
    %v2066 = vunpack.c.h.b16 %v263
    %v2067 = vunpack.c.l.b16 %v264
    %v2068 = vunpack.c.h.b16 %v264
    %v2069 = vunpack.c.l.b16 %v265
    %v2070 = vunpack.c.h.b16 %v265
    %v2071 = vunpack.c.l.b16 %v266
    %v2072 = vunpack.c.h.b16 %v266
    %v2073 = vunpack.c.l.b16 %v267
    %v2074 = vunpack.c.h.b16 %v267
    %v2075 = vunpack.c.l.b16 %v268
    %v2076 = vunpack.c.h.b16 %v268
    %v2077 = vunpack.c.l.b16 %v269
    %v2078 = vunpack.c.h.b16 %v269
    %v2079 = vunpack.c.l.b16 %v270
    %v2080 = vunpack.c.h.b16 %v270
    %v2081 = vunpack.c.l.b16 %v271
    %v2082 = vunpack.c.h.b16 %v271
    %v2083 = vunpack.c.l.b16 %v272
    %v2084 = vunpack.c.h.b16 %v272
    %v2085 = vunpack.c.l.b16 %v273
    %v2086 = vunpack.c.h.b16 %v273
    %v2087 = vunpack.c.l.b16 %v274
    %v2088 = vunpack.c.h.b16 %v274
    %v2089 = vunpack.c.l.b16 %v275
    %v2090 = vunpack.c.h.b16 %v275
    %v2091 = vunpack.c.l.b16 %v276
    %v2092 = vunpack.c.h.b16 %v276
    %v2093 = vunpack.c.l.b16 %v277
    %v2094 = vunpack.c.h.b16 %v277
    %v2095 = vunpack.c.l.b16 %v278
    %v2096 = vunpack.c.h.b16 %v278
    %v2097 = vunpack.c.l.b16 %v279
    %v2098 = vunpack.c.h.b16 %v279
    %v2099 = vunpack.c.l.b16 %v280
    %v2100 = vunpack.c.h.b16 %v280
    %v2101 = vunpack.c.l.b16 %v281
    %v2102 = vunpack.c.h.b16 %v281
    %v2103 = vunpack.c.l.b16 %v282
    %v2104 = vunpack.c.h.b16 %v282
    %v2105 = vunpack.c.l.b16 %v283
    %v2106 = vunpack.c.h.b16 %v283
    %v2107 = vunpack.c.l.b16 %v284
    %v2108 = vunpack.c.h.b16 %v284
    %v2109 = vunpack.c.l.b16 %v285
    %v2110 = vunpack.c.h.b16 %v285
    %v2111 = vunpack.c.l.b16 %v286
    %v2112 = vunpack.c.h.b16 %v286
    %v2113 = vunpack.c.l.b16 %v287
    %v2114 = vunpack.c.h.b16 %v287
    %v2115 = vunpack.c.l.b16 %v288
    %v2116 = vunpack.c.h.b16 %v288
    %v2117 = vunpack.c.l.b16 %v289
    %v2118 = vunpack.c.h.b16 %v289
    %v2119 = vunpack.c.l.b16 %v290
    %v2120 = vunpack.c.h.b16 %v290
    %v2121 = vunpack.c.l.b16 %v291
    %v2122 = vunpack.c.h.b16 %v291
    %v2123 = vunpack.c.l.b16 %v292
    %v2124 = vunpack.c.h.b16 %v292
    %v2125 = vunpack.c.l.b16 %v293
    %v2126 = vunpack.c.h.b16 %v293
    %v2127 = vunpack.c.l.b16 %v294
    %v2128 = vunpack.c.h.b16 %v294
    %v2129 = vunpack.c.l.b16 %v295
    %v2130 = vunpack.c.h.b16 %v295
    %v2131 = vunpack.c.l.b16 %v296
    %v2132 = vunpack.c.h.b16 %v296
    %v2133 = vunpack.c.l.b16 %v297
    %v2134 = vunpack.c.h.b16 %v297
    %v2135 = vunpack.c.l.b16 %v298
    %v2136 = vunpack.c.h.b16 %v298
    %v2137 = vunpack.c.l.b16 %v299
    %v2138 = vunpack.c.h.b16 %v299
    %v2139 = vunpack.c.l.b16 %v300
    %v2140 = vunpack.c.h.b16 %v300
    %v2141 = vunpack.c.l.b16 %v301
    %v2142 = vunpack.c.h.b16 %v301
    %v2143 = vunpack.c.l.b16 %v302
    %v2144 = vunpack.c.h.b16 %v302
    %v2145 = vunpack.c.l.b16 %v303
    %v2146 = vunpack.c.h.b16 %v303
    %v2147 = vunpack.c.l.b16 %v304
    %v2148 = vunpack.c.h.b16 %v304
    %v2149 = vunpack.c.l.b16 %v305
    %v2150 = vunpack.c.h.b16 %v305
    %v2151 = vunpack.c.l.b16 %v306
    %v2152 = vunpack.c.h.b16 %v306
    %v2153 = vunpack.c.l.b16 %v307
    %v2154 = vunpack.c.h.b16 %v307
    %v2155 = vunpack.c.l.b16 %v308
    %v2156 = vunpack.c.h.b16 %v308
    %v2157 = vunpack.c.l.b16 %v309
    %v2158 = vunpack.c.h.b16 %v309
    %v2159 = vunpack.c.l.b16 %v310
    %v2160 = vunpack.c.h.b16 %v310
    %v2161 = vunpack.c.l.b16 %v311
    %v2162 = vunpack.c.h.b16 %v311
    %v2163 = vunpack.c.l.b16 %v312
    %v2164 = vunpack.c.h.b16 %v312
    %v2165 = vunpack.c.l.b16 %v313
    %v2166 = vunpack.c.h.b16 %v313
    %v2167 = vunpack.c.l.b16 %v314
    %v2168 = vunpack.c.h.b16 %v314
    %v2169 = vunpack.c.l.b16 %v315
    %v2170 = vunpack.c.h.b16 %v315
    %v2171 = vunpack.c.l.b16 %v316
    %v2172 = vunpack.c.h.b16 %v316
    %v2173 = vunpack.c.l.b16 %v317
    %v2174 = vunpack.c.h.b16 %v317
    %v2175 = vunpack.c.l.b16 %v318
    %v2176 = vunpack.c.h.b16 %v318
    %v2177 = vunpack.c.l.b16 %v319
    %v2178 = vunpack.c.h.b16 %v319
    %v2179 = vunpack.c.l.b16 %v320
    %v2180 = vunpack.c.h.b16 %v320
    %v2181 = vunpack.c.l.b16 %v321
    %v2182 = vunpack.c.h.b16 %v321
    %v2183 = vunpack.c.l.b16 %v322
    %v2184 = vunpack.c.h.b16 %v322
    %v2185 = vunpack.c.l.b16 %v323
    %v2186 = vunpack.c.h.b16 %v323
    %v2187 = vunpack.c.l.b16 %v324
    %v2188 = vunpack.c.h.b16 %v324
    %v2189 = vunpack.c.l.b16 %v325
    %v2190 = vunpack.c.h.b16 %v325
    %v2191 = vunpack.c.l.b16 %v326
    %v2192 = vunpack.c.h.b16 %v326
    %v2193 = vunpack.c.l.b16 %v327
    %v2194 = vunpack.c.h.b16 %v327
    %v2195 = vunpack.c.l.b16 %v328
    %v2196 = vunpack.c.h.b16 %v328
    %v2197 = vunpack.c.l.b16 %v329
    %v2198 = vunpack.c.h.b16 %v329
    %v2199 = vunpack.c.l.b16 %v330
    %v2200 = vunpack.c.h.b16 %v330
    %v2201 = vunpack.c.l.b16 %v331
    %v2202 = vunpack.c.h.b16 %v331
    %v2203 = vunpack.c.l.b16 %v332
    %v2204 = vunpack.c.h.b16 %v332
    %v2205 = vunpack.c.l.b16 %v333
    %v2206 = vunpack.c.h.b16 %v333
    %v2207 = vunpack.c.l.b16 %v334
    %v2208 = vunpack.c.h.b16 %v334
    %v2209 = vunpack.c.l.b16 %v335
    %v2210 = vunpack.c.h.b16 %v335
    %v2211 = vunpack.c.l.b16 %v336
    %v2212 = vunpack.c.h.b16 %v336
    %v2213 = vunpack.c.l.b16 %v337
    %v2214 = vunpack.c.h.b16 %v337
    %v2215 = vunpack.c.l.b16 %v338
    %v2216 = vunpack.c.h.b16 %v338
    %v2217 = vunpack.c.l.b16 %v339
    %v2218 = vunpack.c.h.b16 %v339
    %v2219 = vunpack.c.l.b16 %v340
    %v2220 = vunpack.c.h.b16 %v340
    %v2221 = vunpack.c.l.b16 %v341
    %v2222 = vunpack.c.h.b16 %v341
    %v2223 = vunpack.c.l.b16 %v342
    %v2224 = vunpack.c.h.b16 %v342
    %v2225 = vunpack.c.l.b16 %v343
    %v2226 = vunpack.c.h.b16 %v343
    %v2227 = vunpack.c.l.b16 %v344
    %v2228 = vunpack.c.h.b16 %v344
    %v2229 = vunpack.c.l.b16 %v345
    %v2230 = vunpack.c.h.b16 %v345
    %v2231 = vunpack.c.l.b16 %v346
    %v2232 = vunpack.c.h.b16 %v346
    %v2233 = vunpack.c.l.b16 %v347
    %v2234 = vunpack.c.h.b16 %v347
    %v2235 = vunpack.c.l.b16 %v348
    %v2236 = vunpack.c.h.b16 %v348
    %v2237 = vunpack.c.l.b16 %v349
    %v2238 = vunpack.c.h.b16 %v349
    %v2239 = vunpack.c.l.b16 %v350
    %v2240 = vunpack.c.h.b16 %v350
    %v2241 = vunpack.c.l.b16 %v351
    %v2242 = vunpack.c.h.b16 %v351
    %v2243 = vunpack.c.l.b16 %v352
    %v2244 = vunpack.c.h.b16 %v352
    %v2245 = vunpack.c.l.b16 %v353
    %v2246 = vunpack.c.h.b16 %v353
    %v2247 = vunpack.c.l.b16 %v354
    %v2248 = vunpack.c.h.b16 %v354
    %v2249 = vunpack.c.l.b16 %v355
    %v2250 = vunpack.c.h.b16 %v355
    %v2251 = vunpack.c.l.b16 %v356
    %v2252 = vunpack.c.h.b16 %v356
    %v2253 = vunpack.c.l.b16 %v357
    %v2254 = vunpack.c.h.b16 %v357
    %v2255 = vunpack.c.l.b16 %v358
    %v2256 = vunpack.c.h.b16 %v358
    %v2257 = vunpack.c.l.b16 %v359
    %v2258 = vunpack.c.h.b16 %v359
    %v2259 = vunpack.c.l.b16 %v360
    %v2260 = vunpack.c.h.b16 %v360
    %v2261 = vunpack.c.l.b16 %v361
    %v2262 = vunpack.c.h.b16 %v361
    %v2263 = vunpack.c.l.b16 %v362
    %v2264 = vunpack.c.h.b16 %v362
    %v2265 = vunpack.c.l.b16 %v363
    %v2266 = vunpack.c.h.b16 %v363
    %v2267 = vunpack.c.l.b16 %v364
    %v2268 = vunpack.c.h.b16 %v364
    %v2269 = vunpack.c.l.b16 %v365
    %v2270 = vunpack.c.h.b16 %v365
    %v2271 = vunpack.c.l.b16 %v366
    %v2272 = vunpack.c.h.b16 %v366
    %v2273 = vunpack.c.l.b16 %v367
    %v2274 = vunpack.c.h.b16 %v367
    %v2275 = vunpack.c.l.b16 %v368
    %v2276 = vunpack.c.h.b16 %v368
    %v2277 = vunpack.c.l.b16 %v369
    %v2278 = vunpack.c.h.b16 %v369
    %v2279 = vunpack.c.l.b16 %v370
    %v2280 = vunpack.c.h.b16 %v370
    %v2281 = vunpack.c.l.b16 %v371
    %v2282 = vunpack.c.h.b16 %v371
    %v2283 = vunpack.c.l.b16 %v372
    %v2284 = vunpack.c.h.b16 %v372
    %v2285 = vunpack.c.l.b16 %v373
    %v2286 = vunpack.c.h.b16 %v373
    %v2287 = vunpack.c.l.b16 %v374
    %v2288 = vunpack.c.h.b16 %v374
    %v2289 = vunpack.c.l.b16 %v375
    %v2290 = vunpack.c.h.b16 %v375
    %v2291 = vunpack.c.l.b16 %v376
    %v2292 = vunpack.c.h.b16 %v376
    %v2293 = vunpack.c.l.b16 %v377
    %v2294 = vunpack.c.h.b16 %v377
    %v2295 = vunpack.c.l.b16 %v378
    %v2296 = vunpack.c.h.b16 %v378
    %v2297 = vunpack.c.l.b16 %v379
    %v2298 = vunpack.c.h.b16 %v379
    %v2299 = vunpack.c.l.b16 %v380
    %v2300 = vunpack.c.h.b16 %v380
    %v2301 = vunpack.c.l.b16 %v381
    %v2302 = vunpack.c.h.b16 %v381
    %v2303 = vunpack.c.l.b16 %v382
    %v2304 = vunpack.c.h.b16 %v382
    %v2305 = vunpack.c.l.b16 %v383
    %v2306 = vunpack.c.h.b16 %v383
    %v2307 = vunpack.c.l.b16 %v384
    %v2308 = vunpack.c.h.b16 %v384
    %v2309 = vunpack.c.l.b16 %v385
    %v2310 = vunpack.c.h.b16 %v385
    %v2311 = vunpack.c.l.b16 %v386
    %v2312 = vunpack.c.h.b16 %v386
    %v2313 = vunpack.c.l.b16 %v387
    %v2314 = vunpack.c.h.b16 %v387
    %v2315 = vunpack.c.l.b16 %v388
    %v2316 = vunpack.c.h.b16 %v388
    %v2317 = vunpack.c.l.b16 %v389
    %v2318 = vunpack.c.h.b16 %v389
    %v2319 = vunpack.c.l.b16 %v390
    %v2320 = vunpack.c.h.b16 %v390
    %v2321 = vunpack.c.l.b16 %v391
    %v2322 = vunpack.c.h.b16 %v391
    %v2323 = vunpack.c.l.b16 %v392
    %v2324 = vunpack.c.h.b16 %v392
    %v2325 = vunpack.c.l.b16 %v393
    %v2326 = vunpack.c.h.b16 %v393
    %v2327 = vunpack.c.l.b16 %v394
    %v2328 = vunpack.c.h.b16 %v394
    %v2329 = vunpack.c.l.b16 %v395
    %v2330 = vunpack.c.h.b16 %v395
    %v2331 = vunpack.c.l.b16 %v396
    %v2332 = vunpack.c.h.b16 %v396
    %v2333 = vunpack.c.l.b16 %v397
    %v2334 = vunpack.c.h.b16 %v397
    %v2335 = vunpack.c.l.b16 %v398
    %v2336 = vunpack.c.h.b16 %v398
    %v2337 = vunpack.c.l.b16 %v399
    %v2338 = vunpack.c.h.b16 %v399
    %v2339 = vunpack.c.l.b16 %v400
    %v2340 = vunpack.c.h.b16 %v400
    %v2341 = vunpack.c.l.b16 %v401
    %v2342 = vunpack.c.h.b16 %v401
    %v2343 = vunpack.c.l.b16 %v402
    %v2344 = vunpack.c.h.b16 %v402
    %v2345 = vunpack.c.l.b16 %v403
    %v2346 = vunpack.c.h.b16 %v403
    %v2347 = vunpack.c.l.b16 %v404
    %v2348 = vunpack.c.h.b16 %v404
    %v2349 = vunpack.c.l.b16 %v405
    %v2350 = vunpack.c.h.b16 %v405
    %v2351 = vunpack.c.l.b16 %v406
    %v2352 = vunpack.c.h.b16 %v406
    %v2353 = vunpack.c.l.b16 %v407
    %v2354 = vunpack.c.h.b16 %v407
    %v2355 = vunpack.c.l.b16 %v408
    %v2356 = vunpack.c.h.b16 %v408
    %v2357 = vunpack.c.l.b16 %v409
    %v2358 = vunpack.c.h.b16 %v409
    %v2359 = vunpack.c.l.b16 %v410
    %v2360 = vunpack.c.h.b16 %v410
    %v2361 = vunpack.c.l.b16 %v411
    %v2362 = vunpack.c.h.b16 %v411
    %v2363 = vunpack.c.l.b16 %v412
    %v2364 = vunpack.c.h.b16 %v412
    %v2365 = vunpack.c.l.b16 %v413
    %v2366 = vunpack.c.h.b16 %v413
    %v2367 = vunpack.c.l.b16 %v414
    %v2368 = vunpack.c.h.b16 %v414
    %v2369 = vunpack.c.l.b16 %v415
    %v2370 = vunpack.c.h.b16 %v415
    %v2371 = vunpack.c.l.b16 %v416
    %v2372 = vunpack.c.h.b16 %v416
    %v2373 = vunpack.c.l.b16 %v417
    %v2374 = vunpack.c.h.b16 %v417
    %v2375 = vunpack.c.l.b16 %v418
    %v2376 = vunpack.c.h.b16 %v418
    %v2377 = vunpack.c.l.b16 %v419
    %v2378 = vunpack.c.h.b16 %v419
    %v2379 = vunpack.c.l.b16 %v420
    %v2380 = vunpack.c.h.b16 %v420
    %v2381 = vunpack.c.l.b16 %v421
    %v2382 = vunpack.c.h.b16 %v421
    %v2383 = vunpack.c.l.b16 %v422
    %v2384 = vunpack.c.h.b16 %v422
    %v2385 = vunpack.c.l.b16 %v423
    %v2386 = vunpack.c.h.b16 %v423
    %v2387 = vunpack.c.l.b16 %v424
    %v2388 = vunpack.c.h.b16 %v424
    %v2389 = vunpack.c.l.b16 %v425
    %v2390 = vunpack.c.h.b16 %v425
    %v2391 = vunpack.c.l.b16 %v426
    %v2392 = vunpack.c.h.b16 %v426
    %v2393 = vunpack.c.l.b16 %v427
    %v2394 = vunpack.c.h.b16 %v427
    %v2395 = vunpack.c.l.b16 %v428
    %v2396 = vunpack.c.h.b16 %v428
    %v2397 = vunpack.c.l.b16 %v429
    %v2398 = vunpack.c.h.b16 %v429
    %v2399 = vunpack.c.l.b16 %v430
    %v2400 = vunpack.c.h.b16 %v430
    %v2401 = vunpack.c.l.b16 %v431
    %v2402 = vunpack.c.h.b16 %v431
    %v2403 = vunpack.c.l.b16 %v432
    %v2404 = vunpack.c.h.b16 %v432
    %v2405 = vunpack.c.l.b16 %v433
    %v2406 = vunpack.c.h.b16 %v433
    %v2407 = vunpack.c.l.b16 %v434
    %v2408 = vunpack.c.h.b16 %v434
    %v2409 = vunpack.c.l.b16 %v435
    %v2410 = vunpack.c.h.b16 %v435
    %v2411 = vunpack.c.l.b16 %v436
    %v2412 = vunpack.c.h.b16 %v436
    %v2413 = vunpack.c.l.b16 %v437
    %v2414 = vunpack.c.h.b16 %v437
    %v2415 = vunpack.c.l.b16 %v438
    %v2416 = vunpack.c.h.b16 %v438
    %v2417 = vunpack.c.l.b16 %v439
    %v2418 = vunpack.c.h.b16 %v439
    %v2419 = vunpack.c.l.b16 %v440
    %v2420 = vunpack.c.h.b16 %v440
    %v2421 = vunpack.c.l.b16 %v441
    %v2422 = vunpack.c.h.b16 %v441
    %v2423 = vunpack.c.l.b16 %v442
    %v2424 = vunpack.c.h.b16 %v442
    %v2425 = vunpack.c.l.b16 %v443
    %v2426 = vunpack.c.h.b16 %v443
    %v2427 = vunpack.c.l.b16 %v444
    %v2428 = vunpack.c.h.b16 %v444
    %v2429 = vunpack.c.l.b16 %v445
    %v2430 = vunpack.c.h.b16 %v445
    %v2431 = vunpack.c.l.b16 %v446
    %v2432 = vunpack.c.h.b16 %v446
    %v2433 = vunpack.c.l.b16 %v447
    %v2434 = vunpack.c.h.b16 %v447
    %v2435 = vunpack.c.l.b16 %v448
    %v2436 = vunpack.c.h.b16 %v448
    %v2437 = vunpack.c.l.b16 %v449
    %v2438 = vunpack.c.h.b16 %v449
    %v2439 = vunpack.c.l.b16 %v450
    %v2440 = vunpack.c.h.b16 %v450
    %v2441 = vunpack.c.l.b16 %v451
    %v2442 = vunpack.c.h.b16 %v451
    %v2443 = vunpack.c.l.b16 %v452
    %v2444 = vunpack.c.h.b16 %v452
    %v2445 = vunpack.c.l.b16 %v453
    %v2446 = vunpack.c.h.b16 %v453
    %v2447 = vunpack.c.l.b16 %v454
    %v2448 = vunpack.c.h.b16 %v454
    %v2449 = vunpack.c.l.b16 %v455
    %v2450 = vunpack.c.h.b16 %v455
    %v2451 = vunpack.c.l.b16 %v456
    %v2452 = vunpack.c.h.b16 %v456
    %v2453 = vunpack.c.l.b16 %v457
    %v2454 = vunpack.c.h.b16 %v457
    %v2455 = vunpack.c.l.b16 %v458
    %v2456 = vunpack.c.h.b16 %v458
    %v2457 = vunpack.c.l.b16 %v459
    %v2458 = vunpack.c.h.b16 %v459
    %v2459 = vunpack.c.l.b16 %v460
    %v2460 = vunpack.c.h.b16 %v460
    %v2461 = vunpack.c.l.b16 %v461
    %v2462 = vunpack.c.h.b16 %v461
    %v2463 = vunpack.c.l.b16 %v462
    %v2464 = vunpack.c.h.b16 %v462
    %v2465 = vunpack.c.l.b16 %v463
    %v2466 = vunpack.c.h.b16 %v463
    %v2467 = vunpack.c.l.b16 %v464
    %v2468 = vunpack.c.h.b16 %v464
    %v2469 = vunpack.c.l.b16 %v465
    %v2470 = vunpack.c.h.b16 %v465
    %v2471 = vunpack.c.l.b16 %v466
    %v2472 = vunpack.c.h.b16 %v466
    %v2473 = vunpack.c.l.b16 %v467
    %v2474 = vunpack.c.h.b16 %v467
    %v2475 = vunpack.c.l.b16 %v468
    %v2476 = vunpack.c.h.b16 %v468
    %v2477 = vunpack.c.l.b16 %v469
    %v2478 = vunpack.c.h.b16 %v469
    %v2479 = vunpack.c.l.b16 %v470
    %v2480 = vunpack.c.h.b16 %v470
    %v2481 = vunpack.c.l.b16 %v471
    %v2482 = vunpack.c.h.b16 %v471
    %v2483 = vunpack.c.l.b16 %v472
    %v2484 = vunpack.c.h.b16 %v472
    %v2485 = vunpack.c.l.b16 %v473
    %v2486 = vunpack.c.h.b16 %v473
    %v2487 = vunpack.c.l.b16 %v474
    %v2488 = vunpack.c.h.b16 %v474
    %v2489 = vunpack.c.l.b16 %v475
    %v2490 = vunpack.c.h.b16 %v475
    %v2491 = vunpack.c.l.b16 %v476
    %v2492 = vunpack.c.h.b16 %v476
    %v2493 = vunpack.c.l.b16 %v477
    %v2494 = vunpack.c.h.b16 %v477
    %v2495 = vunpack.c.l.b16 %v478
    %v2496 = vunpack.c.h.b16 %v478
    %v2497 = vunpack.c.l.b16 %v479
    %v2498 = vunpack.c.h.b16 %v479
    %v2499 = vunpack.c.l.b16 %v480
    %v2500 = vunpack.c.h.b16 %v480
    %v2501 = vunpack.c.l.b16 %v481
    %v2502 = vunpack.c.h.b16 %v481
    %v2503 = vunpack.c.l.b16 %v482
    %v2504 = vunpack.c.h.b16 %v482
    %v2505 = vunpack.c.l.b16 %v483
    %v2506 = vunpack.c.h.b16 %v483
    %v2507 = vunpack.c.l.b16 %v484
    %v2508 = vunpack.c.h.b16 %v484
    %v2509 = vunpack.c.l.b16 %v485
    %v2510 = vunpack.c.h.b16 %v485
    %v2511 = vunpack.c.l.b16 %v486
    %v2512 = vunpack.c.h.b16 %v486
    %v2513 = vunpack.c.l.b16 %v487
    %v2514 = vunpack.c.h.b16 %v487
    %v2515 = vunpack.c.l.b16 %v488
    %v2516 = vunpack.c.h.b16 %v488
    %v2517 = vunpack.c.l.b16 %v489
    %v2518 = vunpack.c.h.b16 %v489
    %v2519 = vunpack.c.l.b16 %v490
    %v2520 = vunpack.c.h.b16 %v490
    %v2521 = vunpack.c.l.b16 %v491
    %v2522 = vunpack.c.h.b16 %v491
    %v2523 = vunpack.c.l.b16 %v492
    %v2524 = vunpack.c.h.b16 %v492
    %v2525 = vunpack.c.l.b16 %v493
    %v2526 = vunpack.c.h.b16 %v493
    %v2527 = vunpack.c.l.b16 %v494
    %v2528 = vunpack.c.h.b16 %v494
    %v2529 = vunpack.c.l.b16 %v495
    %v2530 = vunpack.c.h.b16 %v495
    %v2531 = vunpack.c.l.b16 %v496
    %v2532 = vunpack.c.h.b16 %v496
    %v2533 = vunpack.c.l.b16 %v497
    %v2534 = vunpack.c.h.b16 %v497
    %v2535 = vunpack.c.l.b16 %v498
    %v2536 = vunpack.c.h.b16 %v498
    %v2537 = vunpack.c.l.b16 %v499
    %v2538 = vunpack.c.h.b16 %v499
    %v2539 = vunpack.c.l.b16 %v500
    %v2540 = vunpack.c.h.b16 %v500
    %v2541 = vunpack.c.l.b16 %v501
    %v2542 = vunpack.c.h.b16 %v501
    %v2543 = vunpack.c.l.b16 %v502
    %v2544 = vunpack.c.h.b16 %v502
    %v2545 = vunpack.c.l.b16 %v503
    %v2546 = vunpack.c.h.b16 %v503
    %v2547 = vunpack.c.l.b16 %v504
    %v2548 = vunpack.c.h.b16 %v504
    %v2549 = vunpack.c.l.b16 %v505
    %v2550 = vunpack.c.h.b16 %v505
    %v2551 = vunpack.c.l.b16 %v506
    %v2552 = vunpack.c.h.b16 %v506
    %v2553 = vunpack.c.l.b16 %v507
    %v2554 = vunpack.c.h.b16 %v507
    %v2555 = vunpack.c.l.b16 %v508
    %v2556 = vunpack.c.h.b16 %v508
    %v2557 = vunpack.c.l.b16 %v509
    %v2558 = vunpack.c.h.b16 %v509
    %v2559 = vunpack.c.l.b16 %v510
    %v2560 = vunpack.c.h.b16 %v510
    %v2561 = vunpack.c.l.b16 %v511
    %v2562 = vunpack.c.h.b16 %v511
    %v2563 = vunpack.c.l.b16 %v512
    %v2564 = vunpack.c.h.b16 %v512
    %v2565 = vunpack.c.l.b16 %v513
    %v2566 = vunpack.c.h.b16 %v513
    %v2567 = vunpack.c.l.b16 %v514
    %v2568 = vunpack.c.h.b16 %v514
    %v2569 = vunpack.c.l.b16 %v515
    %v2570 = vunpack.c.h.b16 %v515
    %v2571 = vunpack.c.l.b16 %v516
    %v2572 = vunpack.c.h.b16 %v516
    %v2573 = vunpack.c.l.b16 %v517
    %v2574 = vunpack.c.h.b16 %v517
    %v2575 = vunpack.c.l.b16 %v518
    %v2576 = vunpack.c.h.b16 %v518
    %v2577 = vunpack.c.l.b16 %v519
    %v2578 = vunpack.c.h.b16 %v519
    %v2579 = vunpack.c.l.b16 %v520
    %v2580 = vunpack.c.h.b16 %v520
    %v2581 = vunpack.c.l.b16 %v521
    %v2582 = vunpack.c.h.b16 %v521
    %v2583 = vunpack.c.l.b16 %v522
    %v2584 = vunpack.c.h.b16 %v522
    %v2585 = vunpack.c.l.b16 %v523
    %v2586 = vunpack.c.h.b16 %v523
    %v2587 = vunpack.c.l.b16 %v524
    %v2588 = vunpack.c.h.b16 %v524
    %v2589 = vunpack.c.l.b16 %v525
    %v2590 = vunpack.c.h.b16 %v525
    %v2591 = vunpack.c.l.b16 %v526
    %v2592 = vunpack.c.h.b16 %v526
    %v2593 = vunpack.c.l.b16 %v527
    %v2594 = vunpack.c.h.b16 %v527
    %v2595 = vunpack.c.l.b16 %v528
    %v2596 = vunpack.c.h.b16 %v528
    %v2597 = vunpack.c.l.b16 %v529
    %v2598 = vunpack.c.h.b16 %v529
    %v2599 = vunpack.c.l.b16 %v530
    %v2600 = vunpack.c.h.b16 %v530
    %v2601 = vunpack.c.l.b16 %v531
    %v2602 = vunpack.c.h.b16 %v531
    %v2603 = vunpack.c.l.b16 %v532
    %v2604 = vunpack.c.h.b16 %v532
    %v2605 = vunpack.c.l.b16 %v533
    %v2606 = vunpack.c.h.b16 %v533
    %v2607 = vunpack.c.l.b16 %v534
    %v2608 = vunpack.c.h.b16 %v534
    %v2609 = vunpack.c.l.b16 %v535
    %v2610 = vunpack.c.h.b16 %v535
    %v2611 = vunpack.c.l.b16 %v536
    %v2612 = vunpack.c.h.b16 %v536
    %v2613 = vunpack.c.l.b16 %v537
    %v2614 = vunpack.c.h.b16 %v537
    %v2615 = vunpack.c.l.b16 %v538
    %v2616 = vunpack.c.h.b16 %v538
    %v2617 = vunpack.c.l.b16 %v539
    %v2618 = vunpack.c.h.b16 %v539
    %v2619 = vunpack.c.l.b16 %v540
    %v2620 = vunpack.c.h.b16 %v540
    %v2621 = vunpack.c.l.b16 %v541
    %v2622 = vunpack.c.h.b16 %v541
    %v2623 = vunpack.c.l.b16 %v542
    %v2624 = vunpack.c.h.b16 %v542
    %v2625 = vunpack.c.l.b16 %v543
    %v2626 = vunpack.c.h.b16 %v543
    %v2627 = vunpack.c.l.b16 %v544
    %v2628 = vunpack.c.h.b16 %v544
    %v2629 = vunpack.c.l.b16 %v545
    %v2630 = vunpack.c.h.b16 %v545
    %v2631 = vunpack.c.l.b16 %v546
    %v2632 = vunpack.c.h.b16 %v546
    %v2633 = vunpack.c.l.b16 %v547
    %v2634 = vunpack.c.h.b16 %v547
    %v2635 = vunpack.c.l.b16 %v548
    %v2636 = vunpack.c.h.b16 %v548
    %v2637 = vunpack.c.l.b16 %v549
    %v2638 = vunpack.c.h.b16 %v549
    %v2639 = vunpack.c.l.b16 %v550
    %v2640 = vunpack.c.h.b16 %v550
    %v2641 = vunpack.c.l.b16 %v551
    %v2642 = vunpack.c.h.b16 %v551
    %v2643 = vunpack.c.l.b16 %v552
    %v2644 = vunpack.c.h.b16 %v552
    %v2645 = vunpack.c.l.b16 %v553
    %v2646 = vunpack.c.h.b16 %v553
    %v2647 = vunpack.c.l.b16 %v554
    %v2648 = vunpack.c.h.b16 %v554
    %v2649 = vunpack.c.l.b16 %v555
    %v2650 = vunpack.c.h.b16 %v555
    %v2651 = vunpack.c.l.b16 %v556
    %v2652 = vunpack.c.h.b16 %v556
    %v2653 = vunpack.c.l.b16 %v557
    %v2654 = vunpack.c.h.b16 %v557
    %v2655 = vunpack.c.l.b16 %v558
    %v2656 = vunpack.c.h.b16 %v558
    %v2657 = vunpack.c.l.b16 %v559
    %v2658 = vunpack.c.h.b16 %v559
    %v2659 = vunpack.c.l.b16 %v560
    %v2660 = vunpack.c.h.b16 %v560
    %v2661 = vunpack.c.l.b16 %v561
    %v2662 = vunpack.c.h.b16 %v561
    %v2663 = vunpack.c.l.b16 %v562
    %v2664 = vunpack.c.h.b16 %v562
    %v2665 = vunpack.c.l.b16 %v563
    %v2666 = vunpack.c.h.b16 %v563
    %v2667 = vunpack.c.l.b16 %v564
    %v2668 = vunpack.c.h.b16 %v564
    %v2669 = vunpack.c.l.b16 %v565
    %v2670 = vunpack.c.h.b16 %v565
    %v2671 = vunpack.c.l.b16 %v566
    %v2672 = vunpack.c.h.b16 %v566
    %v2673 = vunpack.c.l.b16 %v567
    %v2674 = vunpack.c.h.b16 %v567
    %v2675 = vunpack.c.l.b16 %v568
    %v2676 = vunpack.c.h.b16 %v568
    %v2677 = vunpack.c.l.b16 %v569
    %v2678 = vunpack.c.h.b16 %v569
    %v2679 = vunpack.c.l.b16 %v570
    %v2680 = vunpack.c.h.b16 %v570
    %v2681 = vunpack.c.l.b16 %v571
    %v2682 = vunpack.c.h.b16 %v571
    %v2683 = vunpack.c.l.b16 %v572
    %v2684 = vunpack.c.h.b16 %v572
    %v2685 = vunpack.c.l.b16 %v573
    %v2686 = vunpack.c.h.b16 %v573
    %v2687 = vunpack.c.l.b16 %v574
    %v2688 = vunpack.c.h.b16 %v574
    %v2689 = vunpack.c.l.b16 %v575
    %v2690 = vunpack.c.h.b16 %v575
    %v2691 = vunpack.c.l.b16 %v576
    %v2692 = vunpack.c.h.b16 %v576
    %v2693 = vunpack.c.l.b16 %v577
    %v2694 = vunpack.c.h.b16 %v577
    %v2695 = vunpack.c.l.b16 %v578
    %v2696 = vunpack.c.h.b16 %v578
    %v2697 = vunpack.c.l.b16 %v579
    %v2698 = vunpack.c.h.b16 %v579
    %v2699 = vunpack.c.l.b16 %v580
    %v2700 = vunpack.c.h.b16 %v580
    %v2701 = vunpack.c.l.b16 %v581
    %v2702 = vunpack.c.h.b16 %v581
    %v2703 = vunpack.c.l.b16 %v582
    %v2704 = vunpack.c.h.b16 %v582
    %v2705 = vunpack.c.l.b16 %v583
    %v2706 = vunpack.c.h.b16 %v583
    %v2707 = vunpack.c.l.b16 %v584
    %v2708 = vunpack.c.h.b16 %v584
    %v2709 = vunpack.c.l.b16 %v585
    %v2710 = vunpack.c.h.b16 %v585
    %v2711 = vunpack.c.l.b16 %v586
    %v2712 = vunpack.c.h.b16 %v586
    %v2713 = vunpack.c.l.b16 %v587
    %v2714 = vunpack.c.h.b16 %v587
    %v2715 = vunpack.c.l.b16 %v588
    %v2716 = vunpack.c.h.b16 %v588
    %v2717 = vunpack.c.l.b16 %v589
    %v2718 = vunpack.c.h.b16 %v589
    %v2719 = vunpack.c.l.b16 %v590
    %v2720 = vunpack.c.h.b16 %v590
    %v2721 = vunpack.c.l.b16 %v591
    %v2722 = vunpack.c.h.b16 %v591
    %v2723 = vunpack.c.l.b16 %v592
    %v2724 = vunpack.c.h.b16 %v592
    %v2725 = vunpack.c.l.b16 %v593
    %v2726 = vunpack.c.h.b16 %v593
    %v2727 = vunpack.c.l.b16 %v594
    %v2728 = vunpack.c.h.b16 %v594
    %v2729 = vunpack.c.l.b16 %v595
    %v2730 = vunpack.c.h.b16 %v595
    %v2731 = vunpack.c.l.b16 %v596
    %v2732 = vunpack.c.h.b16 %v596
    %v2733 = vunpack.c.l.b16 %v597
    %v2734 = vunpack.c.h.b16 %v597
    %v2735 = vunpack.c.l.b16 %v598
    %v2736 = vunpack.c.h.b16 %v598
    %v2737 = vunpack.c.l.b16 %v599
    %v2738 = vunpack.c.h.b16 %v599
    %v2739 = vunpack.c.l.b16 %v600
    %v2740 = vunpack.c.h.b16 %v600
    %v2741 = vunpack.c.l.b16 %v601
    %v2742 = vunpack.c.h.b16 %v601
    %v2743 = vunpack.c.l.b16 %v602
    %v2744 = vunpack.c.h.b16 %v602
    %v2745 = vunpack.c.l.b16 %v603
    %v2746 = vunpack.c.h.b16 %v603
    %v2747 = vunpack.c.l.b16 %v604
    %v2748 = vunpack.c.h.b16 %v604
    %v2749 = vunpack.c.l.b16 %v605
    %v2750 = vunpack.c.h.b16 %v605
    %v2751 = vunpack.c.l.b16 %v606
    %v2752 = vunpack.c.h.b16 %v606
    %v2753 = vunpack.c.l.b16 %v607
    %v2754 = vunpack.c.h.b16 %v607
    %v2755 = vunpack.c.l.b16 %v608
    %v2756 = vunpack.c.h.b16 %v608
    %v2757 = vunpack.c.l.b16 %v609
    %v2758 = vunpack.c.h.b16 %v609
    %v2759 = vunpack.c.l.b16 %v610
    %v2760 = vunpack.c.h.b16 %v610
    %v2761 = vunpack.c.l.b16 %v611
    %v2762 = vunpack.c.h.b16 %v611
    %v2763 = vunpack.c.l.b16 %v612
    %v2764 = vunpack.c.h.b16 %v612
    %v2765 = vunpack.c.l.b16 %v613
    %v2766 = vunpack.c.h.b16 %v613
    %v2767 = vunpack.c.l.b16 %v614
    %v2768 = vunpack.c.h.b16 %v614
    %v2769 = vunpack.c.l.b16 %v615
    %v2770 = vunpack.c.h.b16 %v615
    %v2771 = vunpack.c.l.b16 %v616
    %v2772 = vunpack.c.h.b16 %v616
    %v2773 = vunpack.c.l.b16 %v617
    %v2774 = vunpack.c.h.b16 %v617
    %v2775 = vunpack.c.l.b16 %v618
    %v2776 = vunpack.c.h.b16 %v618
    %v2777 = vunpack.c.l.b16 %v619
    %v2778 = vunpack.c.h.b16 %v619
    %v2779 = vunpack.c.l.b16 %v620
    %v2780 = vunpack.c.h.b16 %v620
    %v2781 = vunpack.c.l.b16 %v621
    %v2782 = vunpack.c.h.b16 %v621
    %v2783 = vunpack.c.l.b16 %v622
    %v2784 = vunpack.c.h.b16 %v622
    %v2785 = vunpack.c.l.b16 %v623
    %v2786 = vunpack.c.h.b16 %v623
    %v2787 = vunpack.c.l.b16 %v624
    %v2788 = vunpack.c.h.b16 %v624
    %v2789 = vunpack.c.l.b16 %v625
    %v2790 = vunpack.c.h.b16 %v625
    %v2791 = vunpack.c.l.b16 %v626
    %v2792 = vunpack.c.h.b16 %v626
    %v2793 = vunpack.c.l.b16 %v627
    %v2794 = vunpack.c.h.b16 %v627
    %v2795 = vunpack.c.l.b16 %v628
    %v2796 = vunpack.c.h.b16 %v628
    %v2797 = vunpack.c.l.b16 %v629
    %v2798 = vunpack.c.h.b16 %v629
    %v2799 = vunpack.c.l.b16 %v630
    %v2800 = vunpack.c.h.b16 %v630
    %v2801 = vunpack.c.l.b16 %v631
    %v2802 = vunpack.c.h.b16 %v631
    %v2803 = vunpack.c.l.b16 %v632
    %v2804 = vunpack.c.h.b16 %v632
    %v2805 = vunpack.c.l.b16 %v633
    %v2806 = vunpack.c.h.b16 %v633
    %v2807 = vunpack.c.l.b16 %v634
    %v2808 = vunpack.c.h.b16 %v634
    %v2809 = vunpack.c.l.b16 %v635
    %v2810 = vunpack.c.h.b16 %v635
    %v2811 = vunpack.c.l.b16 %v636
    %v2812 = vunpack.c.h.b16 %v636
    %v2813 = vunpack.c.l.b16 %v637
    %v2814 = vunpack.c.h.b16 %v637
    %v2815 = vunpack.c.l.b16 %v638
    %v2816 = vunpack.c.h.b16 %v638
    %v2817 = vunpack.c.l.b16 %v639
    %v2818 = vunpack.c.h.b16 %v639
    %v2819 = vunpack.c.l.b16 %v640
    %v2820 = vunpack.c.h.b16 %v640
    %v2821 = vunpack.c.l.b16 %v641
    %v2822 = vunpack.c.h.b16 %v641
    %v2823 = vunpack.c.l.b16 %v642
    %v2824 = vunpack.c.h.b16 %v642
    %v2825 = vunpack.c.l.b16 %v643
    %v2826 = vunpack.c.h.b16 %v643
    %v2827 = vunpack.c.l.b16 %v644
    %v2828 = vunpack.c.h.b16 %v644
    %v2829 = vunpack.c.l.b16 %v645
    %v2830 = vunpack.c.h.b16 %v645
    %v2831 = vunpack.c.l.b16 %v646
    %v2832 = vunpack.c.h.b16 %v646
    %v2833 = vunpack.c.l.b16 %v647
    %v2834 = vunpack.c.h.b16 %v647
    %v2835 = vunpack.c.l.b16 %v648
    %v2836 = vunpack.c.h.b16 %v648
    %v2837 = vunpack.c.l.b16 %v649
    %v2838 = vunpack.c.h.b16 %v649
    %v2839 = vunpack.c.l.b16 %v650
    %v2840 = vunpack.c.h.b16 %v650
    %v2841 = vunpack.c.l.b16 %v651
    %v2842 = vunpack.c.h.b16 %v651
    %v2843 = vunpack.c.l.b16 %v652
    %v2844 = vunpack.c.h.b16 %v652
    %v2845 = vunpack.c.l.b16 %v653
    %v2846 = vunpack.c.h.b16 %v653
    %v2847 = vunpack.c.l.b16 %v654
    %v2848 = vunpack.c.h.b16 %v654
    %v2849 = vunpack.c.l.b16 %v655
    %v2850 = vunpack.c.h.b16 %v655
    %v2851 = vunpack.c.l.b16 %v656
    %v2852 = vunpack.c.h.b16 %v656
    %v2853 = vunpack.c.l.b16 %v657
    %v2854 = vunpack.c.h.b16 %v657
    %v2855 = vunpack.c.l.b16 %v658
    %v2856 = vunpack.c.h.b16 %v658
    %v2857 = vunpack.c.l.b16 %v659
    %v2858 = vunpack.c.h.b16 %v659
    %v2859 = vunpack.c.l.b16 %v660
    %v2860 = vunpack.c.h.b16 %v660
    %v2861 = vunpack.c.l.b16 %v661
    %v2862 = vunpack.c.h.b16 %v661
    %v2863 = vunpack.c.l.b16 %v662
    %v2864 = vunpack.c.h.b16 %v662
    %v2865 = vunpack.c.l.b16 %v663
    %v2866 = vunpack.c.h.b16 %v663
    %v2867 = vunpack.c.l.b16 %v664
    %v2868 = vunpack.c.h.b16 %v664
    %v2869 = vunpack.c.l.b16 %v665
    %v2870 = vunpack.c.h.b16 %v665
    %v2871 = vunpack.c.l.b16 %v666
    %v2872 = vunpack.c.h.b16 %v666
    %v2873 = vunpack.c.l.b16 %v667
    %v2874 = vunpack.c.h.b16 %v667
    %v2875 = vunpack.c.l.b16 %v668
    %v2876 = vunpack.c.h.b16 %v668
    %v2877 = vunpack.c.l.b16 %v669
    %v2878 = vunpack.c.h.b16 %v669
    %v2879 = vunpack.c.l.b16 %v670
    %v2880 = vunpack.c.h.b16 %v670
    %v2881 = vunpack.c.l.b16 %v671
    %v2882 = vunpack.c.h.b16 %v671
    %v2883 = vunpack.c.l.b16 %v672
    %v2884 = vunpack.c.h.b16 %v672
    %v2885 = vunpack.c.l.b16 %v673
    %v2886 = vunpack.c.h.b16 %v673
    %v2887 = vunpack.c.l.b16 %v674
    %v2888 = vunpack.c.h.b16 %v674
    %v2889 = vunpack.c.l.b16 %v675
    %v2890 = vunpack.c.h.b16 %v675
    %v2891 = vunpack.c.l.b16 %v676
    %v2892 = vunpack.c.h.b16 %v676
    %v2893 = vunpack.c.l.b16 %v677
    %v2894 = vunpack.c.h.b16 %v677
    %v2895 = vunpack.c.l.b16 %v678
    %v2896 = vunpack.c.h.b16 %v678
    %v2897 = vunpack.c.l.b16 %v679
    %v2898 = vunpack.c.h.b16 %v679
    %v2899 = vunpack.c.l.b16 %v680
    %v2900 = vunpack.c.h.b16 %v680
    %v2901 = vunpack.c.l.b16 %v681
    %v2902 = vunpack.c.h.b16 %v681
    %v2903 = vunpack.c.l.b16 %v682
    %v2904 = vunpack.c.h.b16 %v682
    %v2905 = vunpack.c.l.b16 %v683
    %v2906 = vunpack.c.h.b16 %v683
    %v2907 = vunpack.c.l.b16 %v684
    %v2908 = vunpack.c.h.b16 %v684
    %v2909 = vunpack.c.l.b16 %v685
    %v2910 = vunpack.c.h.b16 %v685
    %v2911 = vunpack.c.l.b16 %v686
    %v2912 = vunpack.c.h.b16 %v686
    %v2913 = vunpack.c.l.b16 %v687
    %v2914 = vunpack.c.h.b16 %v687
    %v2915 = vunpack.c.l.b16 %v688
    %v2916 = vunpack.c.h.b16 %v688
    %v2917 = vunpack.c.l.b16 %v689
    %v2918 = vunpack.c.h.b16 %v689
    %v2919 = vunpack.c.l.b16 %v690
    %v2920 = vunpack.c.h.b16 %v690
    %v2921 = vunpack.c.l.b16 %v691
    %v2922 = vunpack.c.h.b16 %v691
    %v2923 = vunpack.c.l.b16 %v692
    %v2924 = vunpack.c.h.b16 %v692
    %v2925 = vunpack.c.l.b16 %v693
    %v2926 = vunpack.c.h.b16 %v693
    %v2927 = vunpack.c.l.b16 %v694
    %v2928 = vunpack.c.h.b16 %v694
    %v2929 = vunpack.c.l.b16 %v695
    %v2930 = vunpack.c.h.b16 %v695
    %v2931 = vunpack.c.l.b16 %v696
    %v2932 = vunpack.c.h.b16 %v696
    %v2933 = vunpack.c.l.b16 %v697
    %v2934 = vunpack.c.h.b16 %v697
    %v2935 = vunpack.c.l.b16 %v698
    %v2936 = vunpack.c.h.b16 %v698
    %v2937 = vunpack.c.l.b16 %v699
    %v2938 = vunpack.c.h.b16 %v699
    %v2939 = vunpack.c.l.b16 %v700
    %v2940 = vunpack.c.h.b16 %v700
    %v2941 = vunpack.c.l.b16 %v701
    %v2942 = vunpack.c.h.b16 %v701
    %v2943 = vunpack.c.l.b16 %v702
    %v2944 = vunpack.c.h.b16 %v702
    %v2945 = vunpack.c.l.b16 %v703
    %v2946 = vunpack.c.h.b16 %v703
    %v2947 = vunpack.c.l.b16 %v704
    %v2948 = vunpack.c.h.b16 %v704
    %v2949 = vunpack.c.l.b16 %v705
    %v2950 = vunpack.c.h.b16 %v705
    %v2951 = vunpack.c.l.b16 %v706
    %v2952 = vunpack.c.h.b16 %v706
    %v2953 = vunpack.c.l.b16 %v707
    %v2954 = vunpack.c.h.b16 %v707
    %v2955 = vunpack.c.l.b16 %v708
    %v2956 = vunpack.c.h.b16 %v708
    %v2957 = vunpack.c.l.b16 %v709
    %v2958 = vunpack.c.h.b16 %v709
    %v2959 = vunpack.c.l.b16 %v710
    %v2960 = vunpack.c.h.b16 %v710
    %v2961 = vunpack.c.l.b16 %v711
    %v2962 = vunpack.c.h.b16 %v711
    %v2963 = vunpack.c.l.b16 %v712
    %v2964 = vunpack.c.h.b16 %v712
    %v2965 = vunpack.c.l.b16 %v713
    %v2966 = vunpack.c.h.b16 %v713
    %v2967 = vunpack.c.l.b16 %v714
    %v2968 = vunpack.c.h.b16 %v714
    %v2969 = vunpack.c.l.b16 %v715
    %v2970 = vunpack.c.h.b16 %v715
    %v2971 = vunpack.c.l.b16 %v716
    %v2972 = vunpack.c.h.b16 %v716
    %v2973 = vunpack.c.l.b16 %v717
    %v2974 = vunpack.c.h.b16 %v717
    %v2975 = vunpack.c.l.b16 %v718
    %v2976 = vunpack.c.h.b16 %v718
    %v2977 = vunpack.c.l.b16 %v719
    %v2978 = vunpack.c.h.b16 %v719
    %v2979 = vunpack.c.l.b16 %v720
    %v2980 = vunpack.c.h.b16 %v720
    %v2981 = vunpack.c.l.b16 %v721
    %v2982 = vunpack.c.h.b16 %v721
    %v2983 = vunpack.c.l.b16 %v722
    %v2984 = vunpack.c.h.b16 %v722
    %v2985 = vunpack.c.l.b16 %v723
    %v2986 = vunpack.c.h.b16 %v723
    %v2987 = vunpack.c.l.b16 %v724
    %v2988 = vunpack.c.h.b16 %v724
    %v2989 = vunpack.c.l.b16 %v725
    %v2990 = vunpack.c.h.b16 %v725
    %v2991 = vunpack.c.l.b16 %v726
    %v2992 = vunpack.c.h.b16 %v726
    %v2993 = vunpack.c.l.b16 %v727
    %v2994 = vunpack.c.h.b16 %v727
    %v2995 = vunpack.c.l.b16 %v728
    %v2996 = vunpack.c.h.b16 %v728
    %v2997 = vunpack.c.l.b16 %v729
    %v2998 = vunpack.c.h.b16 %v729
    %v2999 = vunpack.c.l.b16 %v730
    %v3000 = vunpack.c.h.b16 %v730
    %v3001 = vunpack.c.l.b16 %v731
    %v3002 = vunpack.c.h.b16 %v731
    %v3003 = vunpack.c.l.b16 %v732
    %v3004 = vunpack.c.h.b16 %v732
    %v3005 = vunpack.c.l.b16 %v733
    %v3006 = vunpack.c.h.b16 %v733
    %v3007 = vunpack.c.l.b16 %v734
    %v3008 = vunpack.c.h.b16 %v734
    %v3009 = vunpack.c.l.b16 %v735
    %v3010 = vunpack.c.h.b16 %v735
    %v3011 = vunpack.c.l.b16 %v736
    %v3012 = vunpack.c.h.b16 %v736
    %v3013 = vunpack.c.l.b16 %v737
    %v3014 = vunpack.c.h.b16 %v737
    %v3015 = vunpack.c.l.b16 %v738
    %v3016 = vunpack.c.h.b16 %v738
    %v3017 = vunpack.c.l.b16 %v739
    %v3018 = vunpack.c.h.b16 %v739
    %v3019 = vunpack.c.l.b16 %v740
    %v3020 = vunpack.c.h.b16 %v740
    %v3021 = vunpack.c.l.b16 %v741
    %v3022 = vunpack.c.h.b16 %v741
    %v3023 = vunpack.c.l.b16 %v742
    %v3024 = vunpack.c.h.b16 %v742
    %v3025 = vunpack.c.l.b16 %v743
    %v3026 = vunpack.c.h.b16 %v743
    %v3027 = vunpack.c.l.b16 %v744
    %v3028 = vunpack.c.h.b16 %v744
    %v3029 = vunpack.c.l.b16 %v745
    %v3030 = vunpack.c.h.b16 %v745
    %v3031 = vunpack.c.l.b16 %v746
    %v3032 = vunpack.c.h.b16 %v746
    %v3033 = vunpack.c.l.b16 %v747
    %v3034 = vunpack.c.h.b16 %v747
    %v3035 = vunpack.c.l.b16 %v748
    %v3036 = vunpack.c.h.b16 %v748
    %v3037 = vunpack.c.l.b16 %v749
    %v3038 = vunpack.c.h.b16 %v749
    %v3039 = vunpack.c.l.b16 %v750
    %v3040 = vunpack.c.h.b16 %v750
    %v3041 = vunpack.c.l.b16 %v751
    %v3042 = vunpack.c.h.b16 %v751
    %v3043 = vunpack.c.l.b16 %v752
    %v3044 = vunpack.c.h.b16 %v752
    %v3045 = vunpack.c.l.b16 %v753
    %v3046 = vunpack.c.h.b16 %v753
    %v3047 = vunpack.c.l.b16 %v754
    %v3048 = vunpack.c.h.b16 %v754
    %v3049 = vunpack.c.l.b16 %v755
    %v3050 = vunpack.c.h.b16 %v755
    %v3051 = vunpack.c.l.b16 %v756
    %v3052 = vunpack.c.h.b16 %v756
    %v3053 = vunpack.c.l.b16 %v757
    %v3054 = vunpack.c.h.b16 %v757
    %v3055 = vunpack.c.l.b16 %v758
    %v3056 = vunpack.c.h.b16 %v758
    %v3057 = vunpack.c.l.b16 %v759
    %v3058 = vunpack.c.h.b16 %v759
    %v3059 = vunpack.c.l.b16 %v760
    %v3060 = vunpack.c.h.b16 %v760
    %v3061 = vunpack.c.l.b16 %v761
    %v3062 = vunpack.c.h.b16 %v761
    %v3063 = vunpack.c.l.b16 %v762
    %v3064 = vunpack.c.h.b16 %v762
    %v3065 = vunpack.c.l.b16 %v763
    %v3066 = vunpack.c.h.b16 %v763
    %v3067 = vunpack.c.l.b16 %v764
    %v3068 = vunpack.c.h.b16 %v764
    %v3069 = vunpack.c.l.b16 %v765
    %v3070 = vunpack.c.h.b16 %v765
    %v3071 = vunpack.c.l.b16 %v766
    %v3072 = vunpack.c.h.b16 %v766
    %v3073 = vunpack.c.l.b16 %v767
    %v3074 = vunpack.c.h.b16 %v767
    %v3075 = vunpack.c.l.b16 %v768
    %v3076 = vunpack.c.h.b16 %v768
    %v3077 = vunpack.c.l.b16 %v769
    %v3078 = vunpack.c.h.b16 %v769
    %v3079 = vunpack.c.l.b16 %v770
    %v3080 = vunpack.c.h.b16 %v770
    %v3081 = vunpack.c.l.b16 %v771
    %v3082 = vunpack.c.h.b16 %v771
    %v3083 = vunpack.c.l.b16 %v772
    %v3084 = vunpack.c.h.b16 %v772
    %v3085 = vunpack.c.l.b16 %v773
    %v3086 = vunpack.c.h.b16 %v773
    %v3087 = vunpack.c.l.b16 %v774
    %v3088 = vunpack.c.h.b16 %v774
    %v3089 = vunpack.c.l.b16 %v775
    %v3090 = vunpack.c.h.b16 %v775
    %v3091 = vunpack.c.l.b16 %v776
    %v3092 = vunpack.c.h.b16 %v776
    %v3093 = vunpack.c.l.b16 %v777
    %v3094 = vunpack.c.h.b16 %v777
    %v3095 = vunpack.c.l.b16 %v778
    %v3096 = vunpack.c.h.b16 %v778
    %v3097 = vunpack.c.l.b16 %v779
    %v3098 = vunpack.c.h.b16 %v779
    %v3099 = vunpack.c.l.b16 %v780
    %v3100 = vunpack.c.h.b16 %v780
    %v3101 = vunpack.c.l.b16 %v781
    %v3102 = vunpack.c.h.b16 %v781
    %v3103 = vunpack.c.l.b16 %v782
    %v3104 = vunpack.c.h.b16 %v782
    %v3105 = vunpack.c.l.b16 %v783
    %v3106 = vunpack.c.h.b16 %v783
    %v3107 = vunpack.c.l.b16 %v784
    %v3108 = vunpack.c.h.b16 %v784
    %v3109 = vunpack.c.l.b16 %v785
    %v3110 = vunpack.c.h.b16 %v785
    %v3111 = vunpack.c.l.b16 %v786
    %v3112 = vunpack.c.h.b16 %v786
    %v3113 = vunpack.c.l.b16 %v787
    %v3114 = vunpack.c.h.b16 %v787
    %v3115 = vunpack.c.l.b16 %v788
    %v3116 = vunpack.c.h.b16 %v788
    %v3117 = vunpack.c.l.b16 %v789
    %v3118 = vunpack.c.h.b16 %v789
    %v3119 = vunpack.c.l.b16 %v790
    %v3120 = vunpack.c.h.b16 %v790
    %v3121 = vunpack.c.l.b16 %v791
    %v3122 = vunpack.c.h.b16 %v791
    %v3123 = vunpack.c.l.b16 %v792
    %v3124 = vunpack.c.h.b16 %v792
    %v3125 = vunpack.c.l.b16 %v793
    %v3126 = vunpack.c.h.b16 %v793
    %v3127 = vunpack.c.l.b16 %v794
    %v3128 = vunpack.c.h.b16 %v794
    %v3129 = vunpack.c.l.b16 %v795
    %v3130 = vunpack.c.h.b16 %v795
    %v3131 = vunpack.c.l.b16 %v796
    %v3132 = vunpack.c.h.b16 %v796
    %v3133 = vunpack.c.l.b16 %v797
    %v3134 = vunpack.c.h.b16 %v797
    %v3135 = vunpack.c.l.b16 %v798
    %v3136 = vunpack.c.h.b16 %v798
    %v3137 = vunpack.c.l.b16 %v799
    %v3138 = vunpack.c.h.b16 %v799
    %v3139 = vunpack.c.l.b16 %v800
    %v3140 = vunpack.c.h.b16 %v800
    %v3141 = vunpack.c.l.b16 %v801
    %v3142 = vunpack.c.h.b16 %v801
    %v3143 = vunpack.c.l.b16 %v802
    %v3144 = vunpack.c.h.b16 %v802
    %v3145 = vunpack.c.l.b16 %v803
    %v3146 = vunpack.c.h.b16 %v803
    %v3147 = vunpack.c.l.b16 %v804
    %v3148 = vunpack.c.h.b16 %v804
    %v3149 = vunpack.c.l.b16 %v805
    %v3150 = vunpack.c.h.b16 %v805
    %v3151 = vunpack.c.l.b16 %v806
    %v3152 = vunpack.c.h.b16 %v806
    %v3153 = vunpack.c.l.b16 %v807
    %v3154 = vunpack.c.h.b16 %v807
    %v3155 = vunpack.c.l.b16 %v808
    %v3156 = vunpack.c.h.b16 %v808
    %v3157 = vunpack.c.l.b16 %v809
    %v3158 = vunpack.c.h.b16 %v809
    %v3159 = vunpack.c.l.b16 %v810
    %v3160 = vunpack.c.h.b16 %v810
    %v3161 = vunpack.c.l.b16 %v811
    %v3162 = vunpack.c.h.b16 %v811
    %v3163 = vunpack.c.l.b16 %v812
    %v3164 = vunpack.c.h.b16 %v812
    %v3165 = vunpack.c.l.b16 %v813
    %v3166 = vunpack.c.h.b16 %v813
    %v3167 = vunpack.c.l.b16 %v814
    %v3168 = vunpack.c.h.b16 %v814
    %v3169 = vunpack.c.l.b16 %v815
    %v3170 = vunpack.c.h.b16 %v815
    %v3171 = vunpack.c.l.b16 %v816
    %v3172 = vunpack.c.h.b16 %v816
    %v3173 = vunpack.c.l.b16 %v817
    %v3174 = vunpack.c.h.b16 %v817
    %v3175 = vunpack.c.l.b16 %v818
    %v3176 = vunpack.c.h.b16 %v818
    %v3177 = vunpack.c.l.b16 %v819
    %v3178 = vunpack.c.h.b16 %v819
    %v3179 = vunpack.c.l.b16 %v820
    %v3180 = vunpack.c.h.b16 %v820
    %v3181 = vunpack.c.l.b16 %v821
    %v3182 = vunpack.c.h.b16 %v821
    %v3183 = vunpack.c.l.b16 %v822
    %v3184 = vunpack.c.h.b16 %v822
    %v3185 = vunpack.c.l.b16 %v823
    %v3186 = vunpack.c.h.b16 %v823
    %v3187 = vunpack.c.l.b16 %v824
    %v3188 = vunpack.c.h.b16 %v824
    %v3189 = vunpack.c.l.b16 %v825
    %v3190 = vunpack.c.h.b16 %v825
    %v3191 = vunpack.c.l.b16 %v826
    %v3192 = vunpack.c.h.b16 %v826
    %v3193 = vunpack.c.l.b16 %v827
    %v3194 = vunpack.c.h.b16 %v827
    %v3195 = vunpack.c.l.b16 %v828
    %v3196 = vunpack.c.h.b16 %v828
    %v3197 = vunpack.c.l.b16 %v829
    %v3198 = vunpack.c.h.b16 %v829
    %v3199 = vunpack.c.l.b16 %v830
    %v3200 = vunpack.c.h.b16 %v830
    %v3201 = vunpack.c.l.b16 %v831
    %v3202 = vunpack.c.h.b16 %v831
    %v3203 = vunpack.c.l.b16 %v832
    %v3204 = vunpack.c.h.b16 %v832
    %v3205 = vunpack.c.l.b16 %v833
    %v3206 = vunpack.c.h.b16 %v833
    %v3207 = vunpack.c.l.b16 %v834
    %v3208 = vunpack.c.h.b16 %v834
    %v3209 = vunpack.c.l.b16 %v835
    %v3210 = vunpack.c.h.b16 %v835
    %v3211 = vunpack.c.l.b16 %v836
    %v3212 = vunpack.c.h.b16 %v836
    %v3213 = vunpack.c.l.b16 %v837
    %v3214 = vunpack.c.h.b16 %v837
    %v3215 = vunpack.c.l.b16 %v838
    %v3216 = vunpack.c.h.b16 %v838
    %v3217 = vunpack.c.l.b16 %v839
    %v3218 = vunpack.c.h.b16 %v839
    %v3219 = vunpack.c.l.b16 %v840
    %v3220 = vunpack.c.h.b16 %v840
    %v3221 = vunpack.c.l.b16 %v841
    %v3222 = vunpack.c.h.b16 %v841
    %v3223 = vunpack.c.l.b16 %v842
    %v3224 = vunpack.c.h.b16 %v842
    %v3225 = vunpack.c.l.b16 %v843
    %v3226 = vunpack.c.h.b16 %v843
    %v3227 = vunpack.c.l.b16 %v844
    %v3228 = vunpack.c.h.b16 %v844
    %v3229 = vunpack.c.l.b16 %v845
    %v3230 = vunpack.c.h.b16 %v845
    %v3231 = vunpack.c.l.b16 %v846
    %v3232 = vunpack.c.h.b16 %v846
    %v3233 = vunpack.c.l.b16 %v847
    %v3234 = vunpack.c.h.b16 %v847
    %v3235 = vunpack.c.l.b16 %v848
    %v3236 = vunpack.c.h.b16 %v848
    %v3237 = vunpack.c.l.b16 %v849
    %v3238 = vunpack.c.h.b16 %v849
    %v3239 = vunpack.c.l.b16 %v850
    %v3240 = vunpack.c.h.b16 %v850
    %v3241 = vunpack.c.l.b16 %v851
    %v3242 = vunpack.c.h.b16 %v851
    %v3243 = vunpack.c.l.b16 %v852
    %v3244 = vunpack.c.h.b16 %v852
    %v3245 = vunpack.c.l.b16 %v853
    %v3246 = vunpack.c.h.b16 %v853
    %v3247 = vunpack.c.l.b16 %v854
    %v3248 = vunpack.c.h.b16 %v854
    %v3249 = vunpack.c.l.b16 %v855
    %v3250 = vunpack.c.h.b16 %v855
    %v3251 = vunpack.c.l.b16 %v856
    %v3252 = vunpack.c.h.b16 %v856
    %v3253 = vunpack.c.l.b16 %v857
    %v3254 = vunpack.c.h.b16 %v857
    %v3255 = vunpack.c.l.b16 %v858
    %v3256 = vunpack.c.h.b16 %v858
    %v3257 = vunpack.c.l.b16 %v859
    %v3258 = vunpack.c.h.b16 %v859
    %v3259 = vunpack.c.l.b16 %v860
    %v3260 = vunpack.c.h.b16 %v860
    %v3261 = vunpack.c.l.b16 %v861
    %v3262 = vunpack.c.h.b16 %v861
    %v3263 = vunpack.c.l.b16 %v862
    %v3264 = vunpack.c.h.b16 %v862
    %v3265 = vunpack.c.l.b16 %v863
    %v3266 = vunpack.c.h.b16 %v863
    %v3267 = vunpack.c.l.b16 %v864
    %v3268 = vunpack.c.h.b16 %v864
    %v3269 = vpack.c.b16 %v1737, %v1733
    %v3270 = vpack.c.b16 %v1738, %v1734
    %v3271 = vpack.c.b16 %v1739, %v1735
    %v3272 = vpack.c.b16 %v1740, %v1736
    %v3273 = vpack.c.b16 %v1745, %v1741
    %v3274 = vpack.c.b16 %v1746, %v1742
    %v3275 = vpack.c.b16 %v1747, %v1743
    %v3276 = vpack.c.b16 %v1748, %v1744
    %v3277 = vpack.c.b16 %v1753, %v1749
    %v3278 = vpack.c.b16 %v1754, %v1750
    %v3279 = vpack.c.b16 %v1755, %v1751
    %v3280 = vpack.c.b16 %v1756, %v1752
    %v3281 = vpack.c.b16 %v1761, %v1757
    %v3282 = vpack.c.b16 %v1762, %v1758
    %v3283 = vpack.c.b16 %v1763, %v1759
    %v3284 = vpack.c.b16 %v1764, %v1760
    %v3285 = vpack.c.b16 %v1769, %v1765
    %v3286 = vpack.c.b16 %v1770, %v1766
    %v3287 = vpack.c.b16 %v1771, %v1767
    %v3288 = vpack.c.b16 %v1772, %v1768
    %v3289 = vpack.c.b16 %v1777, %v1773
    %v3290 = vpack.c.b16 %v1778, %v1774
    %v3291 = vpack.c.b16 %v1779, %v1775
    %v3292 = vpack.c.b16 %v1780, %v1776
    %v3293 = vpack.c.b16 %v1785, %v1781
    %v3294 = vpack.c.b16 %v1786, %v1782
    %v3295 = vpack.c.b16 %v1787, %v1783
    %v3296 = vpack.c.b16 %v1788, %v1784
    %v3297 = vpack.c.b16 %v1793, %v1789
    %v3298 = vpack.c.b16 %v1794, %v1790
    %v3299 = vpack.c.b16 %v1795, %v1791
    %v3300 = vpack.c.b16 %v1796, %v1792
    %v3301 = vpack.c.b16 %v1801, %v1797
    %v3302 = vpack.c.b16 %v1802, %v1798
    %v3303 = vpack.c.b16 %v1803, %v1799
    %v3304 = vpack.c.b16 %v1804, %v1800
    %v3305 = vpack.c.b16 %v1809, %v1805
    %v3306 = vpack.c.b16 %v1810, %v1806
    %v3307 = vpack.c.b16 %v1811, %v1807
    %v3308 = vpack.c.b16 %v1812, %v1808
    %v3309 = vpack.c.b16 %v1817, %v1813
    %v3310 = vpack.c.b16 %v1818, %v1814
    %v3311 = vpack.c.b16 %v1819, %v1815
    %v3312 = vpack.c.b16 %v1820, %v1816
    %v3313 = vpack.c.b16 %v1825, %v1821
    %v3314 = vpack.c.b16 %v1826, %v1822
    %v3315 = vpack.c.b16 %v1827, %v1823
    %v3316 = vpack.c.b16 %v1828, %v1824
    %v3317 = vpack.c.b16 %v1833, %v1829
    %v3318 = vpack.c.b16 %v1834, %v1830
    %v3319 = vpack.c.b16 %v1835, %v1831
    %v3320 = vpack.c.b16 %v1836, %v1832
    %v3321 = vpack.c.b16 %v1841, %v1837
    %v3322 = vpack.c.b16 %v1842, %v1838
    %v3323 = vpack.c.b16 %v1843, %v1839
    %v3324 = vpack.c.b16 %v1844, %v1840
    %v3325 = vpack.c.b16 %v1849, %v1845
    %v3326 = vpack.c.b16 %v1850, %v1846
    %v3327 = vpack.c.b16 %v1851, %v1847
    %v3328 = vpack.c.b16 %v1852, %v1848
    %v3329 = vpack.c.b16 %v1857, %v1853
    %v3330 = vpack.c.b16 %v1858, %v1854
    %v3331 = vpack.c.b16 %v1859, %v1855
    %v3332 = vpack.c.b16 %v1860, %v1856
    %v3333 = vpack.c.b16 %v1865, %v1861
    %v3334 = vpack.c.b16 %v1866, %v1862
    %v3335 = vpack.c.b16 %v1867, %v1863
    %v3336 = vpack.c.b16 %v1868, %v1864
    %v3337 = vpack.c.b16 %v1873, %v1869
    %v3338 = vpack.c.b16 %v1874, %v1870
    %v3339 = vpack.c.b16 %v1875, %v1871
    %v3340 = vpack.c.b16 %v1876, %v1872
    %v3341 = vpack.c.b16 %v1881, %v1877
    %v3342 = vpack.c.b16 %v1882, %v1878
    %v3343 = vpack.c.b16 %v1883, %v1879
    %v3344 = vpack.c.b16 %v1884, %v1880
    %v3345 = vpack.c.b16 %v1889, %v1885
    %v3346 = vpack.c.b16 %v1890, %v1886
    %v3347 = vpack.c.b16 %v1891, %v1887
    %v3348 = vpack.c.b16 %v1892, %v1888
    %v3349 = vpack.c.b16 %v1897, %v1893
    %v3350 = vpack.c.b16 %v1898, %v1894
    %v3351 = vpack.c.b16 %v1899, %v1895
    %v3352 = vpack.c.b16 %v1900, %v1896
    %v3353 = vpack.c.b16 %v1905, %v1901
    %v3354 = vpack.c.b16 %v1906, %v1902
    %v3355 = vpack.c.b16 %v1907, %v1903
    %v3356 = vpack.c.b16 %v1908, %v1904
    %v3357 = vpack.c.b16 %v1913, %v1909
    %v3358 = vpack.c.b16 %v1914, %v1910
    %v3359 = vpack.c.b16 %v1915, %v1911
    %v3360 = vpack.c.b16 %v1916, %v1912
    %v3361 = vpack.c.b16 %v1921, %v1917
    %v3362 = vpack.c.b16 %v1922, %v1918
    %v3363 = vpack.c.b16 %v1923, %v1919
    %v3364 = vpack.c.b16 %v1924, %v1920
    %v3365 = vpack.c.b16 %v1929, %v1925
    %v3366 = vpack.c.b16 %v1930, %v1926
    %v3367 = vpack.c.b16 %v1931, %v1927
    %v3368 = vpack.c.b16 %v1932, %v1928
    %v3369 = vpack.c.b16 %v1937, %v1933
    %v3370 = vpack.c.b16 %v1938, %v1934
    %v3371 = vpack.c.b16 %v1939, %v1935
    %v3372 = vpack.c.b16 %v1940, %v1936
    %v3373 = vpack.c.b16 %v1945, %v1941
    %v3374 = vpack.c.b16 %v1946, %v1942
    %v3375 = vpack.c.b16 %v1947, %v1943
    %v3376 = vpack.c.b16 %v1948, %v1944
    %v3377 = vpack.c.b16 %v1953, %v1949
    %v3378 = vpack.c.b16 %v1954, %v1950
    %v3379 = vpack.c.b16 %v1955, %v1951
    %v3380 = vpack.c.b16 %v1956, %v1952
    %v3381 = vpack.c.b16 %v1961, %v1957
    %v3382 = vpack.c.b16 %v1962, %v1958
    %v3383 = vpack.c.b16 %v1963, %v1959
    %v3384 = vpack.c.b16 %v1964, %v1960
    %v3385 = vpack.c.b16 %v1969, %v1965
    %v3386 = vpack.c.b16 %v1970, %v1966
    %v3387 = vpack.c.b16 %v1971, %v1967
    %v3388 = vpack.c.b16 %v1972, %v1968
    %v3389 = vpack.c.b16 %v1977, %v1973
    %v3390 = vpack.c.b16 %v1978, %v1974
    %v3391 = vpack.c.b16 %v1979, %v1975
    %v3392 = vpack.c.b16 %v1980, %v1976
    %v3393 = vpack.c.b16 %v1985, %v1981
    %v3394 = vpack.c.b16 %v1986, %v1982
    %v3395 = vpack.c.b16 %v1987, %v1983
    %v3396 = vpack.c.b16 %v1988, %v1984
    %v3397 = vpack.c.b16 %v1993, %v1989
    %v3398 = vpack.c.b16 %v1994, %v1990
    %v3399 = vpack.c.b16 %v1995, %v1991
    %v3400 = vpack.c.b16 %v1996, %v1992
    %v3401 = vpack.c.b16 %v2001, %v1997
    %v3402 = vpack.c.b16 %v2002, %v1998
    %v3403 = vpack.c.b16 %v2003, %v1999
    %v3404 = vpack.c.b16 %v2004, %v2000
    %v3405 = vpack.c.b16 %v2009, %v2005
    %v3406 = vpack.c.b16 %v2010, %v2006
    %v3407 = vpack.c.b16 %v2011, %v2007
    %v3408 = vpack.c.b16 %v2012, %v2008
    %v3409 = vpack.c.b16 %v2017, %v2013
    %v3410 = vpack.c.b16 %v2018, %v2014
    %v3411 = vpack.c.b16 %v2019, %v2015
    %v3412 = vpack.c.b16 %v2020, %v2016
    %v3413 = vpack.c.b16 %v2025, %v2021
    %v3414 = vpack.c.b16 %v2026, %v2022
    %v3415 = vpack.c.b16 %v2027, %v2023
    %v3416 = vpack.c.b16 %v2028, %v2024
    %v3417 = vpack.c.b16 %v2033, %v2029
    %v3418 = vpack.c.b16 %v2034, %v2030
    %v3419 = vpack.c.b16 %v2035, %v2031
    %v3420 = vpack.c.b16 %v2036, %v2032
    %v3421 = vpack.c.b16 %v2041, %v2037
    %v3422 = vpack.c.b16 %v2042, %v2038
    %v3423 = vpack.c.b16 %v2043, %v2039
    %v3424 = vpack.c.b16 %v2044, %v2040
    %v3425 = vpack.c.b16 %v2049, %v2045
    %v3426 = vpack.c.b16 %v2050, %v2046
    %v3427 = vpack.c.b16 %v2051, %v2047
    %v3428 = vpack.c.b16 %v2052, %v2048
    %v3429 = vpack.c.b16 %v2057, %v2053
    %v3430 = vpack.c.b16 %v2058, %v2054
    %v3431 = vpack.c.b16 %v2059, %v2055
    %v3432 = vpack.c.b16 %v2060, %v2056
    %v3433 = vpack.c.b16 %v2065, %v2061
    %v3434 = vpack.c.b16 %v2066, %v2062
    %v3435 = vpack.c.b16 %v2067, %v2063
    %v3436 = vpack.c.b16 %v2068, %v2064
    %v3437 = vpack.c.b16 %v2073, %v2069
    %v3438 = vpack.c.b16 %v2074, %v2070
    %v3439 = vpack.c.b16 %v2075, %v2071
    %v3440 = vpack.c.b16 %v2076, %v2072
    %v3441 = vpack.c.b16 %v2081, %v2077
    %v3442 = vpack.c.b16 %v2082, %v2078
    %v3443 = vpack.c.b16 %v2083, %v2079
    %v3444 = vpack.c.b16 %v2084, %v2080
    %v3445 = vpack.c.b16 %v2089, %v2085
    %v3446 = vpack.c.b16 %v2090, %v2086
    %v3447 = vpack.c.b16 %v2091, %v2087
    %v3448 = vpack.c.b16 %v2092, %v2088
    %v3449 = vpack.c.b16 %v2097, %v2093
    %v3450 = vpack.c.b16 %v2098, %v2094
    %v3451 = vpack.c.b16 %v2099, %v2095
    %v3452 = vpack.c.b16 %v2100, %v2096
    %v3453 = vpack.c.b16 %v2105, %v2101
    %v3454 = vpack.c.b16 %v2106, %v2102
    %v3455 = vpack.c.b16 %v2107, %v2103
    %v3456 = vpack.c.b16 %v2108, %v2104
    %v3457 = vpack.c.b16 %v2113, %v2109
    %v3458 = vpack.c.b16 %v2114, %v2110
    %v3459 = vpack.c.b16 %v2115, %v2111
    %v3460 = vpack.c.b16 %v2116, %v2112
    %v3461 = vpack.c.b16 %v2121, %v2117
    %v3462 = vpack.c.b16 %v2122, %v2118
    %v3463 = vpack.c.b16 %v2123, %v2119
    %v3464 = vpack.c.b16 %v2124, %v2120
    %v3465 = vpack.c.b16 %v2129, %v2125
    %v3466 = vpack.c.b16 %v2130, %v2126
    %v3467 = vpack.c.b16 %v2131, %v2127
    %v3468 = vpack.c.b16 %v2132, %v2128
    %v3469 = vpack.c.b16 %v2137, %v2133
    %v3470 = vpack.c.b16 %v2138, %v2134
    %v3471 = vpack.c.b16 %v2139, %v2135
    %v3472 = vpack.c.b16 %v2140, %v2136
    %v3473 = vpack.c.b16 %v2145, %v2141
    %v3474 = vpack.c.b16 %v2146, %v2142
    %v3475 = vpack.c.b16 %v2147, %v2143
    %v3476 = vpack.c.b16 %v2148, %v2144
    %v3477 = vpack.c.b16 %v2153, %v2149
    %v3478 = vpack.c.b16 %v2154, %v2150
    %v3479 = vpack.c.b16 %v2155, %v2151
    %v3480 = vpack.c.b16 %v2156, %v2152
    %v3481 = vpack.c.b16 %v2161, %v2157
    %v3482 = vpack.c.b16 %v2162, %v2158
    %v3483 = vpack.c.b16 %v2163, %v2159
    %v3484 = vpack.c.b16 %v2164, %v2160
    %v3485 = vpack.c.b16 %v2169, %v2165
    %v3486 = vpack.c.b16 %v2170, %v2166
    %v3487 = vpack.c.b16 %v2171, %v2167
    %v3488 = vpack.c.b16 %v2172, %v2168
    %v3489 = vpack.c.b16 %v2177, %v2173
    %v3490 = vpack.c.b16 %v2178, %v2174
    %v3491 = vpack.c.b16 %v2179, %v2175
    %v3492 = vpack.c.b16 %v2180, %v2176
    %v3493 = vpack.c.b16 %v2185, %v2181
    %v3494 = vpack.c.b16 %v2186, %v2182
    %v3495 = vpack.c.b16 %v2187, %v2183
    %v3496 = vpack.c.b16 %v2188, %v2184
    %v3497 = vpack.c.b16 %v2193, %v2189
    %v3498 = vpack.c.b16 %v2194, %v2190
    %v3499 = vpack.c.b16 %v2195, %v2191
    %v3500 = vpack.c.b16 %v2196, %v2192
    %v3501 = vpack.c.b16 %v2201, %v2197
    %v3502 = vpack.c.b16 %v2202, %v2198
    %v3503 = vpack.c.b16 %v2203, %v2199
    %v3504 = vpack.c.b16 %v2204, %v2200
    %v3505 = vpack.c.b16 %v2209, %v2205
    %v3506 = vpack.c.b16 %v2210, %v2206
    %v3507 = vpack.c.b16 %v2211, %v2207
    %v3508 = vpack.c.b16 %v2212, %v2208
    %v3509 = vpack.c.b16 %v2217, %v2213
    %v3510 = vpack.c.b16 %v2218, %v2214
    %v3511 = vpack.c.b16 %v2219, %v2215
    %v3512 = vpack.c.b16 %v2220, %v2216
    %v3513 = vpack.c.b16 %v2225, %v2221
    %v3514 = vpack.c.b16 %v2226, %v2222
    %v3515 = vpack.c.b16 %v2227, %v2223
    %v3516 = vpack.c.b16 %v2228, %v2224
    %v3517 = vpack.c.b16 %v2233, %v2229
    %v3518 = vpack.c.b16 %v2234, %v2230
    %v3519 = vpack.c.b16 %v2235, %v2231
    %v3520 = vpack.c.b16 %v2236, %v2232
    %v3521 = vpack.c.b16 %v2241, %v2237
    %v3522 = vpack.c.b16 %v2242, %v2238
    %v3523 = vpack.c.b16 %v2243, %v2239
    %v3524 = vpack.c.b16 %v2244, %v2240
    %v3525 = vpack.c.b16 %v2249, %v2245
    %v3526 = vpack.c.b16 %v2250, %v2246
    %v3527 = vpack.c.b16 %v2251, %v2247
    %v3528 = vpack.c.b16 %v2252, %v2248
    %v3529 = vpack.c.b16 %v2257, %v2253
    %v3530 = vpack.c.b16 %v2258, %v2254
    %v3531 = vpack.c.b16 %v2259, %v2255
    %v3532 = vpack.c.b16 %v2260, %v2256
    %v3533 = vpack.c.b16 %v2265, %v2261
    %v3534 = vpack.c.b16 %v2266, %v2262
    %v3535 = vpack.c.b16 %v2267, %v2263
    %v3536 = vpack.c.b16 %v2268, %v2264
    %v3537 = vpack.c.b16 %v2273, %v2269
    %v3538 = vpack.c.b16 %v2274, %v2270
    %v3539 = vpack.c.b16 %v2275, %v2271
    %v3540 = vpack.c.b16 %v2276, %v2272
    %v3541 = vpack.c.b16 %v2281, %v2277
    %v3542 = vpack.c.b16 %v2282, %v2278
    %v3543 = vpack.c.b16 %v2283, %v2279
    %v3544 = vpack.c.b16 %v2284, %v2280
    %v3545 = vpack.c.b16 %v2289, %v2285
    %v3546 = vpack.c.b16 %v2290, %v2286
    %v3547 = vpack.c.b16 %v2291, %v2287
    %v3548 = vpack.c.b16 %v2292, %v2288
    %v3549 = vpack.c.b16 %v2297, %v2293
    %v3550 = vpack.c.b16 %v2298, %v2294
    %v3551 = vpack.c.b16 %v2299, %v2295
    %v3552 = vpack.c.b16 %v2300, %v2296
    %v3553 = vpack.c.b16 %v2305, %v2301
    %v3554 = vpack.c.b16 %v2306, %v2302
    %v3555 = vpack.c.b16 %v2307, %v2303
    %v3556 = vpack.c.b16 %v2308, %v2304
    %v3557 = vpack.c.b16 %v2313, %v2309
    %v3558 = vpack.c.b16 %v2314, %v2310
    %v3559 = vpack.c.b16 %v2315, %v2311
    %v3560 = vpack.c.b16 %v2316, %v2312
    %v3561 = vpack.c.b16 %v2321, %v2317
    %v3562 = vpack.c.b16 %v2322, %v2318
    %v3563 = vpack.c.b16 %v2323, %v2319
    %v3564 = vpack.c.b16 %v2324, %v2320
    %v3565 = vpack.c.b16 %v2329, %v2325
    %v3566 = vpack.c.b16 %v2330, %v2326
    %v3567 = vpack.c.b16 %v2331, %v2327
    %v3568 = vpack.c.b16 %v2332, %v2328
    %v3569 = vpack.c.b16 %v2337, %v2333
    %v3570 = vpack.c.b16 %v2338, %v2334
    %v3571 = vpack.c.b16 %v2339, %v2335
    %v3572 = vpack.c.b16 %v2340, %v2336
    %v3573 = vpack.c.b16 %v2345, %v2341
    %v3574 = vpack.c.b16 %v2346, %v2342
    %v3575 = vpack.c.b16 %v2347, %v2343
    %v3576 = vpack.c.b16 %v2348, %v2344
    %v3577 = vpack.c.b16 %v2353, %v2349
    %v3578 = vpack.c.b16 %v2354, %v2350
    %v3579 = vpack.c.b16 %v2355, %v2351
    %v3580 = vpack.c.b16 %v2356, %v2352
    %v3581 = vpack.c.b16 %v2361, %v2357
    %v3582 = vpack.c.b16 %v2362, %v2358
    %v3583 = vpack.c.b16 %v2363, %v2359
    %v3584 = vpack.c.b16 %v2364, %v2360
    %v3585 = vpack.c.b16 %v2369, %v2365
    %v3586 = vpack.c.b16 %v2370, %v2366
    %v3587 = vpack.c.b16 %v2371, %v2367
    %v3588 = vpack.c.b16 %v2372, %v2368
    %v3589 = vpack.c.b16 %v2377, %v2373
    %v3590 = vpack.c.b16 %v2378, %v2374
    %v3591 = vpack.c.b16 %v2379, %v2375
    %v3592 = vpack.c.b16 %v2380, %v2376
    %v3593 = vpack.c.b16 %v2385, %v2381
    %v3594 = vpack.c.b16 %v2386, %v2382
    %v3595 = vpack.c.b16 %v2387, %v2383
    %v3596 = vpack.c.b16 %v2388, %v2384
    %v3597 = vpack.c.b16 %v2393, %v2389
    %v3598 = vpack.c.b16 %v2394, %v2390
    %v3599 = vpack.c.b16 %v2395, %v2391
    %v3600 = vpack.c.b16 %v2396, %v2392
    %v3601 = vpack.c.b16 %v2401, %v2397
    %v3602 = vpack.c.b16 %v2402, %v2398
    %v3603 = vpack.c.b16 %v2403, %v2399
    %v3604 = vpack.c.b16 %v2404, %v2400
    %v3605 = vpack.c.b16 %v2409, %v2405
    %v3606 = vpack.c.b16 %v2410, %v2406
    %v3607 = vpack.c.b16 %v2411, %v2407
    %v3608 = vpack.c.b16 %v2412, %v2408
    %v3609 = vpack.c.b16 %v2417, %v2413
    %v3610 = vpack.c.b16 %v2418, %v2414
    %v3611 = vpack.c.b16 %v2419, %v2415
    %v3612 = vpack.c.b16 %v2420, %v2416
    %v3613 = vpack.c.b16 %v2425, %v2421
    %v3614 = vpack.c.b16 %v2426, %v2422
    %v3615 = vpack.c.b16 %v2427, %v2423
    %v3616 = vpack.c.b16 %v2428, %v2424
    %v3617 = vpack.c.b16 %v2433, %v2429
    %v3618 = vpack.c.b16 %v2434, %v2430
    %v3619 = vpack.c.b16 %v2435, %v2431
    %v3620 = vpack.c.b16 %v2436, %v2432
    %v3621 = vpack.c.b16 %v2441, %v2437
    %v3622 = vpack.c.b16 %v2442, %v2438
    %v3623 = vpack.c.b16 %v2443, %v2439
    %v3624 = vpack.c.b16 %v2444, %v2440
    %v3625 = vpack.c.b16 %v2449, %v2445
    %v3626 = vpack.c.b16 %v2450, %v2446
    %v3627 = vpack.c.b16 %v2451, %v2447
    %v3628 = vpack.c.b16 %v2452, %v2448
    %v3629 = vpack.c.b16 %v2457, %v2453
    %v3630 = vpack.c.b16 %v2458, %v2454
    %v3631 = vpack.c.b16 %v2459, %v2455
    %v3632 = vpack.c.b16 %v2460, %v2456
    %v3633 = vpack.c.b16 %v2465, %v2461
    %v3634 = vpack.c.b16 %v2466, %v2462
    %v3635 = vpack.c.b16 %v2467, %v2463
    %v3636 = vpack.c.b16 %v2468, %v2464
    %v3637 = vpack.c.b16 %v2473, %v2469
    %v3638 = vpack.c.b16 %v2474, %v2470
    %v3639 = vpack.c.b16 %v2475, %v2471
    %v3640 = vpack.c.b16 %v2476, %v2472
    %v3641 = vpack.c.b16 %v2481, %v2477
    %v3642 = vpack.c.b16 %v2482, %v2478
    %v3643 = vpack.c.b16 %v2483, %v2479
    %v3644 = vpack.c.b16 %v2484, %v2480
    %v3645 = vpack.c.b16 %v2489, %v2485
    %v3646 = vpack.c.b16 %v2490, %v2486
    %v3647 = vpack.c.b16 %v2491, %v2487
    %v3648 = vpack.c.b16 %v2492, %v2488
    %v3649 = vpack.c.b16 %v2497, %v2493
    %v3650 = vpack.c.b16 %v2498, %v2494
    %v3651 = vpack.c.b16 %v2499, %v2495
    %v3652 = vpack.c.b16 %v2500, %v2496
    %v3653 = vpack.c.b16 %v2505, %v2501
    %v3654 = vpack.c.b16 %v2506, %v2502
    %v3655 = vpack.c.b16 %v2507, %v2503
    %v3656 = vpack.c.b16 %v2508, %v2504
    %v3657 = vpack.c.b16 %v2513, %v2509
    %v3658 = vpack.c.b16 %v2514, %v2510
    %v3659 = vpack.c.b16 %v2515, %v2511
    %v3660 = vpack.c.b16 %v2516, %v2512
    %v3661 = vpack.c.b16 %v2521, %v2517
    %v3662 = vpack.c.b16 %v2522, %v2518
    %v3663 = vpack.c.b16 %v2523, %v2519
    %v3664 = vpack.c.b16 %v2524, %v2520
    %v3665 = vpack.c.b16 %v2529, %v2525
    %v3666 = vpack.c.b16 %v2530, %v2526
    %v3667 = vpack.c.b16 %v2531, %v2527
    %v3668 = vpack.c.b16 %v2532, %v2528
    %v3669 = vpack.c.b16 %v2537, %v2533
    %v3670 = vpack.c.b16 %v2538, %v2534
    %v3671 = vpack.c.b16 %v2539, %v2535
    %v3672 = vpack.c.b16 %v2540, %v2536
    %v3673 = vpack.c.b16 %v2545, %v2541
    %v3674 = vpack.c.b16 %v2546, %v2542
    %v3675 = vpack.c.b16 %v2547, %v2543
    %v3676 = vpack.c.b16 %v2548, %v2544
    %v3677 = vpack.c.b16 %v2553, %v2549
    %v3678 = vpack.c.b16 %v2554, %v2550
    %v3679 = vpack.c.b16 %v2555, %v2551
    %v3680 = vpack.c.b16 %v2556, %v2552
    %v3681 = vpack.c.b16 %v2561, %v2557
    %v3682 = vpack.c.b16 %v2562, %v2558
    %v3683 = vpack.c.b16 %v2563, %v2559
    %v3684 = vpack.c.b16 %v2564, %v2560
    %v3685 = vpack.c.b16 %v2569, %v2565
    %v3686 = vpack.c.b16 %v2570, %v2566
    %v3687 = vpack.c.b16 %v2571, %v2567
    %v3688 = vpack.c.b16 %v2572, %v2568
    %v3689 = vpack.c.b16 %v2577, %v2573
    %v3690 = vpack.c.b16 %v2578, %v2574
    %v3691 = vpack.c.b16 %v2579, %v2575
    %v3692 = vpack.c.b16 %v2580, %v2576
    %v3693 = vpack.c.b16 %v2585, %v2581
    %v3694 = vpack.c.b16 %v2586, %v2582
    %v3695 = vpack.c.b16 %v2587, %v2583
    %v3696 = vpack.c.b16 %v2588, %v2584
    %v3697 = vpack.c.b16 %v2593, %v2589
    %v3698 = vpack.c.b16 %v2594, %v2590
    %v3699 = vpack.c.b16 %v2595, %v2591
    %v3700 = vpack.c.b16 %v2596, %v2592
    %v3701 = vpack.c.b16 %v2601, %v2597
    %v3702 = vpack.c.b16 %v2602, %v2598
    %v3703 = vpack.c.b16 %v2603, %v2599
    %v3704 = vpack.c.b16 %v2604, %v2600
    %v3705 = vpack.c.b16 %v2609, %v2605
    %v3706 = vpack.c.b16 %v2610, %v2606
    %v3707 = vpack.c.b16 %v2611, %v2607
    %v3708 = vpack.c.b16 %v2612, %v2608
    %v3709 = vpack.c.b16 %v2617, %v2613
    %v3710 = vpack.c.b16 %v2618, %v2614
    %v3711 = vpack.c.b16 %v2619, %v2615
    %v3712 = vpack.c.b16 %v2620, %v2616
    %v3713 = vpack.c.b16 %v2625, %v2621
    %v3714 = vpack.c.b16 %v2626, %v2622
    %v3715 = vpack.c.b16 %v2627, %v2623
    %v3716 = vpack.c.b16 %v2628, %v2624
    %v3717 = vpack.c.b16 %v2633, %v2629
    %v3718 = vpack.c.b16 %v2634, %v2630
    %v3719 = vpack.c.b16 %v2635, %v2631
    %v3720 = vpack.c.b16 %v2636, %v2632
    %v3721 = vpack.c.b16 %v2641, %v2637
    %v3722 = vpack.c.b16 %v2642, %v2638
    %v3723 = vpack.c.b16 %v2643, %v2639
    %v3724 = vpack.c.b16 %v2644, %v2640
    %v3725 = vpack.c.b16 %v2649, %v2645
    %v3726 = vpack.c.b16 %v2650, %v2646
    %v3727 = vpack.c.b16 %v2651, %v2647
    %v3728 = vpack.c.b16 %v2652, %v2648
    %v3729 = vpack.c.b16 %v2657, %v2653
    %v3730 = vpack.c.b16 %v2658, %v2654
    %v3731 = vpack.c.b16 %v2659, %v2655
    %v3732 = vpack.c.b16 %v2660, %v2656
    %v3733 = vpack.c.b16 %v2665, %v2661
    %v3734 = vpack.c.b16 %v2666, %v2662
    %v3735 = vpack.c.b16 %v2667, %v2663
    %v3736 = vpack.c.b16 %v2668, %v2664
    %v3737 = vpack.c.b16 %v2673, %v2669
    %v3738 = vpack.c.b16 %v2674, %v2670
    %v3739 = vpack.c.b16 %v2675, %v2671
    %v3740 = vpack.c.b16 %v2676, %v2672
    %v3741 = vpack.c.b16 %v2681, %v2677
    %v3742 = vpack.c.b16 %v2682, %v2678
    %v3743 = vpack.c.b16 %v2683, %v2679
    %v3744 = vpack.c.b16 %v2684, %v2680
    %v3745 = vpack.c.b16 %v2689, %v2685
    %v3746 = vpack.c.b16 %v2690, %v2686
    %v3747 = vpack.c.b16 %v2691, %v2687
    %v3748 = vpack.c.b16 %v2692, %v2688
    %v3749 = vpack.c.b16 %v2697, %v2693
    %v3750 = vpack.c.b16 %v2698, %v2694
    %v3751 = vpack.c.b16 %v2699, %v2695
    %v3752 = vpack.c.b16 %v2700, %v2696
    %v3753 = vpack.c.b16 %v2705, %v2701
    %v3754 = vpack.c.b16 %v2706, %v2702
    %v3755 = vpack.c.b16 %v2707, %v2703
    %v3756 = vpack.c.b16 %v2708, %v2704
    %v3757 = vpack.c.b16 %v2713, %v2709
    %v3758 = vpack.c.b16 %v2714, %v2710
    %v3759 = vpack.c.b16 %v2715, %v2711
    %v3760 = vpack.c.b16 %v2716, %v2712
    %v3761 = vpack.c.b16 %v2721, %v2717
    %v3762 = vpack.c.b16 %v2722, %v2718
    %v3763 = vpack.c.b16 %v2723, %v2719
    %v3764 = vpack.c.b16 %v2724, %v2720
    %v3765 = vpack.c.b16 %v2729, %v2725
    %v3766 = vpack.c.b16 %v2730, %v2726
    %v3767 = vpack.c.b16 %v2731, %v2727
    %v3768 = vpack.c.b16 %v2732, %v2728
    %v3769 = vpack.c.b16 %v2737, %v2733
    %v3770 = vpack.c.b16 %v2738, %v2734
    %v3771 = vpack.c.b16 %v2739, %v2735
    %v3772 = vpack.c.b16 %v2740, %v2736
    %v3773 = vpack.c.b16 %v2745, %v2741
    %v3774 = vpack.c.b16 %v2746, %v2742
    %v3775 = vpack.c.b16 %v2747, %v2743
    %v3776 = vpack.c.b16 %v2748, %v2744
    %v3777 = vpack.c.b16 %v2753, %v2749
    %v3778 = vpack.c.b16 %v2754, %v2750
    %v3779 = vpack.c.b16 %v2755, %v2751
    %v3780 = vpack.c.b16 %v2756, %v2752
    %v3781 = vpack.c.b16 %v2761, %v2757
    %v3782 = vpack.c.b16 %v2762, %v2758
    %v3783 = vpack.c.b16 %v2763, %v2759
    %v3784 = vpack.c.b16 %v2764, %v2760
    %v3785 = vpack.c.b16 %v2769, %v2765
    %v3786 = vpack.c.b16 %v2770, %v2766
    %v3787 = vpack.c.b16 %v2771, %v2767
    %v3788 = vpack.c.b16 %v2772, %v2768
    %v3789 = vpack.c.b16 %v2777, %v2773
    %v3790 = vpack.c.b16 %v2778, %v2774
    %v3791 = vpack.c.b16 %v2779, %v2775
    %v3792 = vpack.c.b16 %v2780, %v2776
    %v3793 = vpack.c.b16 %v2785, %v2781
    %v3794 = vpack.c.b16 %v2786, %v2782
    %v3795 = vpack.c.b16 %v2787, %v2783
    %v3796 = vpack.c.b16 %v2788, %v2784
    %v3797 = vpack.c.b16 %v2793, %v2789
    %v3798 = vpack.c.b16 %v2794, %v2790
    %v3799 = vpack.c.b16 %v2795, %v2791
    %v3800 = vpack.c.b16 %v2796, %v2792
    %v3801 = vpack.c.b16 %v2801, %v2797
    %v3802 = vpack.c.b16 %v2802, %v2798
    %v3803 = vpack.c.b16 %v2803, %v2799
    %v3804 = vpack.c.b16 %v2804, %v2800
    %v3805 = vpack.c.b16 %v2809, %v2805
    %v3806 = vpack.c.b16 %v2810, %v2806
    %v3807 = vpack.c.b16 %v2811, %v2807
    %v3808 = vpack.c.b16 %v2812, %v2808
    %v3809 = vpack.c.b16 %v2817, %v2813
    %v3810 = vpack.c.b16 %v2818, %v2814
    %v3811 = vpack.c.b16 %v2819, %v2815
    %v3812 = vpack.c.b16 %v2820, %v2816
    %v3813 = vpack.c.b16 %v2825, %v2821
    %v3814 = vpack.c.b16 %v2826, %v2822
    %v3815 = vpack.c.b16 %v2827, %v2823
    %v3816 = vpack.c.b16 %v2828, %v2824
    %v3817 = vpack.c.b16 %v2833, %v2829
    %v3818 = vpack.c.b16 %v2834, %v2830
    %v3819 = vpack.c.b16 %v2835, %v2831
    %v3820 = vpack.c.b16 %v2836, %v2832
    %v3821 = vpack.c.b16 %v2841, %v2837
    %v3822 = vpack.c.b16 %v2842, %v2838
    %v3823 = vpack.c.b16 %v2843, %v2839
    %v3824 = vpack.c.b16 %v2844, %v2840
    %v3825 = vpack.c.b16 %v2849, %v2845
    %v3826 = vpack.c.b16 %v2850, %v2846
    %v3827 = vpack.c.b16 %v2851, %v2847
    %v3828 = vpack.c.b16 %v2852, %v2848
    %v3829 = vpack.c.b16 %v2857, %v2853
    %v3830 = vpack.c.b16 %v2858, %v2854
    %v3831 = vpack.c.b16 %v2859, %v2855
    %v3832 = vpack.c.b16 %v2860, %v2856
    %v3833 = vpack.c.b16 %v2865, %v2861
    %v3834 = vpack.c.b16 %v2866, %v2862
    %v3835 = vpack.c.b16 %v2867, %v2863
    %v3836 = vpack.c.b16 %v2868, %v2864
    %v3837 = vpack.c.b16 %v2873, %v2869
    %v3838 = vpack.c.b16 %v2874, %v2870
    %v3839 = vpack.c.b16 %v2875, %v2871
    %v3840 = vpack.c.b16 %v2876, %v2872
    %v3841 = vpack.c.b16 %v2881, %v2877
    %v3842 = vpack.c.b16 %v2882, %v2878
    %v3843 = vpack.c.b16 %v2883, %v2879
    %v3844 = vpack.c.b16 %v2884, %v2880
    %v3845 = vpack.c.b16 %v2889, %v2885
    %v3846 = vpack.c.b16 %v2890, %v2886
    %v3847 = vpack.c.b16 %v2891, %v2887
    %v3848 = vpack.c.b16 %v2892, %v2888
    %v3849 = vpack.c.b16 %v2897, %v2893
    %v3850 = vpack.c.b16 %v2898, %v2894
    %v3851 = vpack.c.b16 %v2899, %v2895
    %v3852 = vpack.c.b16 %v2900, %v2896
    %v3853 = vpack.c.b16 %v2905, %v2901
    %v3854 = vpack.c.b16 %v2906, %v2902
    %v3855 = vpack.c.b16 %v2907, %v2903
    %v3856 = vpack.c.b16 %v2908, %v2904
    %v3857 = vpack.c.b16 %v2913, %v2909
    %v3858 = vpack.c.b16 %v2914, %v2910
    %v3859 = vpack.c.b16 %v2915, %v2911
    %v3860 = vpack.c.b16 %v2916, %v2912
    %v3861 = vpack.c.b16 %v2921, %v2917
    %v3862 = vpack.c.b16 %v2922, %v2918
    %v3863 = vpack.c.b16 %v2923, %v2919
    %v3864 = vpack.c.b16 %v2924, %v2920
    %v3865 = vpack.c.b16 %v2929, %v2925
    %v3866 = vpack.c.b16 %v2930, %v2926
    %v3867 = vpack.c.b16 %v2931, %v2927
    %v3868 = vpack.c.b16 %v2932, %v2928
    %v3869 = vpack.c.b16 %v2937, %v2933
    %v3870 = vpack.c.b16 %v2938, %v2934
    %v3871 = vpack.c.b16 %v2939, %v2935
    %v3872 = vpack.c.b16 %v2940, %v2936
    %v3873 = vpack.c.b16 %v2945, %v2941
    %v3874 = vpack.c.b16 %v2946, %v2942
    %v3875 = vpack.c.b16 %v2947, %v2943
    %v3876 = vpack.c.b16 %v2948, %v2944
    %v3877 = vpack.c.b16 %v2953, %v2949
    %v3878 = vpack.c.b16 %v2954, %v2950
    %v3879 = vpack.c.b16 %v2955, %v2951
    %v3880 = vpack.c.b16 %v2956, %v2952
    %v3881 = vpack.c.b16 %v2961, %v2957
    %v3882 = vpack.c.b16 %v2962, %v2958
    %v3883 = vpack.c.b16 %v2963, %v2959
    %v3884 = vpack.c.b16 %v2964, %v2960
    %v3885 = vpack.c.b16 %v2969, %v2965
    %v3886 = vpack.c.b16 %v2970, %v2966
    %v3887 = vpack.c.b16 %v2971, %v2967
    %v3888 = vpack.c.b16 %v2972, %v2968
    %v3889 = vpack.c.b16 %v2977, %v2973
    %v3890 = vpack.c.b16 %v2978, %v2974
    %v3891 = vpack.c.b16 %v2979, %v2975
    %v3892 = vpack.c.b16 %v2980, %v2976
    %v3893 = vpack.c.b16 %v2985, %v2981
    %v3894 = vpack.c.b16 %v2986, %v2982
    %v3895 = vpack.c.b16 %v2987, %v2983
    %v3896 = vpack.c.b16 %v2988, %v2984
    %v3897 = vpack.c.b16 %v2993, %v2989
    %v3898 = vpack.c.b16 %v2994, %v2990
    %v3899 = vpack.c.b16 %v2995, %v2991
    %v3900 = vpack.c.b16 %v2996, %v2992
    %v3901 = vpack.c.b16 %v3001, %v2997
    %v3902 = vpack.c.b16 %v3002, %v2998
    %v3903 = vpack.c.b16 %v3003, %v2999
    %v3904 = vpack.c.b16 %v3004, %v3000
    %v3905 = vpack.c.b16 %v3009, %v3005
    %v3906 = vpack.c.b16 %v3010, %v3006
    %v3907 = vpack.c.b16 %v3011, %v3007
    %v3908 = vpack.c.b16 %v3012, %v3008
    %v3909 = vpack.c.b16 %v3017, %v3013
    %v3910 = vpack.c.b16 %v3018, %v3014
    %v3911 = vpack.c.b16 %v3019, %v3015
    %v3912 = vpack.c.b16 %v3020, %v3016
    %v3913 = vpack.c.b16 %v3025, %v3021
    %v3914 = vpack.c.b16 %v3026, %v3022
    %v3915 = vpack.c.b16 %v3027, %v3023
    %v3916 = vpack.c.b16 %v3028, %v3024
    %v3917 = vpack.c.b16 %v3033, %v3029
    %v3918 = vpack.c.b16 %v3034, %v3030
    %v3919 = vpack.c.b16 %v3035, %v3031
    %v3920 = vpack.c.b16 %v3036, %v3032
    %v3921 = vpack.c.b16 %v3041, %v3037
    %v3922 = vpack.c.b16 %v3042, %v3038
    %v3923 = vpack.c.b16 %v3043, %v3039
    %v3924 = vpack.c.b16 %v3044, %v3040
    %v3925 = vpack.c.b16 %v3049, %v3045
    %v3926 = vpack.c.b16 %v3050, %v3046
    %v3927 = vpack.c.b16 %v3051, %v3047
    %v3928 = vpack.c.b16 %v3052, %v3048
    %v3929 = vpack.c.b16 %v3057, %v3053
    %v3930 = vpack.c.b16 %v3058, %v3054
    %v3931 = vpack.c.b16 %v3059, %v3055
    %v3932 = vpack.c.b16 %v3060, %v3056
    %v3933 = vpack.c.b16 %v3065, %v3061
    %v3934 = vpack.c.b16 %v3066, %v3062
    %v3935 = vpack.c.b16 %v3067, %v3063
    %v3936 = vpack.c.b16 %v3068, %v3064
    %v3937 = vpack.c.b16 %v3073, %v3069
    %v3938 = vpack.c.b16 %v3074, %v3070
    %v3939 = vpack.c.b16 %v3075, %v3071
    %v3940 = vpack.c.b16 %v3076, %v3072
    %v3941 = vpack.c.b16 %v3081, %v3077
    %v3942 = vpack.c.b16 %v3082, %v3078
    %v3943 = vpack.c.b16 %v3083, %v3079
    %v3944 = vpack.c.b16 %v3084, %v3080
    %v3945 = vpack.c.b16 %v3089, %v3085
    %v3946 = vpack.c.b16 %v3090, %v3086
    %v3947 = vpack.c.b16 %v3091, %v3087
    %v3948 = vpack.c.b16 %v3092, %v3088
    %v3949 = vpack.c.b16 %v3097, %v3093
    %v3950 = vpack.c.b16 %v3098, %v3094
    %v3951 = vpack.c.b16 %v3099, %v3095
    %v3952 = vpack.c.b16 %v3100, %v3096
    %v3953 = vpack.c.b16 %v3105, %v3101
    %v3954 = vpack.c.b16 %v3106, %v3102
    %v3955 = vpack.c.b16 %v3107, %v3103
    %v3956 = vpack.c.b16 %v3108, %v3104
    %v3957 = vpack.c.b16 %v3113, %v3109
    %v3958 = vpack.c.b16 %v3114, %v3110
    %v3959 = vpack.c.b16 %v3115, %v3111
    %v3960 = vpack.c.b16 %v3116, %v3112
    %v3961 = vpack.c.b16 %v3121, %v3117
    %v3962 = vpack.c.b16 %v3122, %v3118
    %v3963 = vpack.c.b16 %v3123, %v3119
    %v3964 = vpack.c.b16 %v3124, %v3120
    %v3965 = vpack.c.b16 %v3129, %v3125
    %v3966 = vpack.c.b16 %v3130, %v3126
    %v3967 = vpack.c.b16 %v3131, %v3127
    %v3968 = vpack.c.b16 %v3132, %v3128
    %v3969 = vpack.c.b16 %v3137, %v3133
    %v3970 = vpack.c.b16 %v3138, %v3134
    %v3971 = vpack.c.b16 %v3139, %v3135
    %v3972 = vpack.c.b16 %v3140, %v3136
    %v3973 = vpack.c.b16 %v3145, %v3141
    %v3974 = vpack.c.b16 %v3146, %v3142
    %v3975 = vpack.c.b16 %v3147, %v3143
    %v3976 = vpack.c.b16 %v3148, %v3144
    %v3977 = vpack.c.b16 %v3153, %v3149
    %v3978 = vpack.c.b16 %v3154, %v3150
    %v3979 = vpack.c.b16 %v3155, %v3151
    %v3980 = vpack.c.b16 %v3156, %v3152
    %v3981 = vpack.c.b16 %v3161, %v3157
    %v3982 = vpack.c.b16 %v3162, %v3158
    %v3983 = vpack.c.b16 %v3163, %v3159
    %v3984 = vpack.c.b16 %v3164, %v3160
    %v3985 = vpack.c.b16 %v3169, %v3165
    %v3986 = vpack.c.b16 %v3170, %v3166
    %v3987 = vpack.c.b16 %v3171, %v3167
    %v3988 = vpack.c.b16 %v3172, %v3168
    %v3989 = vpack.c.b16 %v3177, %v3173
    %v3990 = vpack.c.b16 %v3178, %v3174
    %v3991 = vpack.c.b16 %v3179, %v3175
    %v3992 = vpack.c.b16 %v3180, %v3176
    %v3993 = vpack.c.b16 %v3185, %v3181
    %v3994 = vpack.c.b16 %v3186, %v3182
    %v3995 = vpack.c.b16 %v3187, %v3183
    %v3996 = vpack.c.b16 %v3188, %v3184
    %v3997 = vpack.c.b16 %v3193, %v3189
    %v3998 = vpack.c.b16 %v3194, %v3190
    %v3999 = vpack.c.b16 %v3195, %v3191
    %v4000 = vpack.c.b16 %v3196, %v3192
    %v4001 = vpack.c.b16 %v3201, %v3197
    %v4002 = vpack.c.b16 %v3202, %v3198
    %v4003 = vpack.c.b16 %v3203, %v3199
    %v4004 = vpack.c.b16 %v3204, %v3200
    %v4005 = vpack.c.b16 %v3209, %v3205
    %v4006 = vpack.c.b16 %v3210, %v3206
    %v4007 = vpack.c.b16 %v3211, %v3207
    %v4008 = vpack.c.b16 %v3212, %v3208
    %v4009 = vpack.c.b16 %v3217, %v3213
    %v4010 = vpack.c.b16 %v3218, %v3214
    %v4011 = vpack.c.b16 %v3219, %v3215
    %v4012 = vpack.c.b16 %v3220, %v3216
    %v4013 = vpack.c.b16 %v3225, %v3221
    %v4014 = vpack.c.b16 %v3226, %v3222
    %v4015 = vpack.c.b16 %v3227, %v3223
    %v4016 = vpack.c.b16 %v3228, %v3224
    %v4017 = vpack.c.b16 %v3233, %v3229
    %v4018 = vpack.c.b16 %v3234, %v3230
    %v4019 = vpack.c.b16 %v3235, %v3231
    %v4020 = vpack.c.b16 %v3236, %v3232
    %v4021 = vpack.c.b16 %v3241, %v3237
    %v4022 = vpack.c.b16 %v3242, %v3238
    %v4023 = vpack.c.b16 %v3243, %v3239
    %v4024 = vpack.c.b16 %v3244, %v3240
    %v4025 = vpack.c.b16 %v3249, %v3245
    %v4026 = vpack.c.b16 %v3250, %v3246
    %v4027 = vpack.c.b16 %v3251, %v3247
    %v4028 = vpack.c.b16 %v3252, %v3248
    %v4029 = vpack.c.b16 %v3257, %v3253
    %v4030 = vpack.c.b16 %v3258, %v3254
    %v4031 = vpack.c.b16 %v3259, %v3255
    %v4032 = vpack.c.b16 %v3260, %v3256
    %v4033 = vpack.c.b16 %v3265, %v3261
    %v4034 = vpack.c.b16 %v3266, %v3262
    %v4035 = vpack.c.b16 %v3267, %v3263
    %v4036 = vpack.c.b16 %v3268, %v3264
    %4805 = vmatprep.subr.bf16.mxu0 %v3270
    %4806 = vmatpush1.bf16.msra.mxu0 %v3269
    %4807 = vmatprep.subr.bf16.mxu0 %v3274
    %4808 = vmatpush1.bf16.msra.mxu0 %v3273
    %4809 = vmatprep.subr.bf16.mxu0 %v3278
    %4810 = vmatpush1.bf16.msra.mxu0 %v3277
    %4811 = vmatprep.subr.bf16.mxu0 %v3282
    %4812 = vmatpush1.bf16.msra.mxu0 %v3281
    %4813 = vmatprep.subr.bf16.mxu0 %v3286
    %4814 = vmatpush1.bf16.msra.mxu0 %v3285
    %4815 = vmatprep.subr.bf16.mxu0 %v3290
    %4816 = vmatpush1.bf16.msra.mxu0 %v3289
    %4817 = vmatprep.subr.bf16.mxu0 %v3294
    %4818 = vmatpush1.bf16.msra.mxu0 %v3293
    %4819 = vmatprep.subr.bf16.mxu0 %v3298
    %4820 = vmatpush1.bf16.msra.mxu0 %v3297
    %4821 = vmatprep.subr.bf16.mxu0 %v3302
    %4822 = vmatpush1.bf16.msra.mxu0 %v3301
    %4823 = vmatprep.subr.bf16.mxu0 %v3306
    %4824 = vmatpush1.bf16.msra.mxu0 %v3305
    %4825 = vmatprep.subr.bf16.mxu0 %v3310
    %4826 = vmatpush1.bf16.msra.mxu0 %v3309
    %4827 = vmatprep.subr.bf16.mxu0 %v3314
    %4828 = vmatpush1.bf16.msra.mxu0 %v3313
    %4829 = vmatprep.subr.bf16.mxu0 %v3318
    %4830 = vmatpush1.bf16.msra.mxu0 %v3317
    %4831 = vmatprep.subr.bf16.mxu0 %v3322
    %4832 = vmatpush1.bf16.msra.mxu0 %v3321
    %4833 = vmatprep.subr.bf16.mxu0 %v3326
    %4834 = vmatpush1.bf16.msra.mxu0 %v3325
    %4835 = vmatprep.subr.bf16.mxu0 %v3330
    %4836 = vmatpush1.bf16.msra.mxu0 %v3329
    %4837 = vmatprep.mubr.bf16.mxu0 %v918
    %4838 = vmatmul.mubr.bf16.gmra.mrb[0].mxu0 %v917
    %v4839 = vpop.f32.mrb[0].mxu0
    %v4840 = vadd.f32 %v868, %v4839
    %v4841 = vpop.f32.mrb[0].mxu0
    %v4842 = vadd.f32 %v872, %v4841
    %v4843 = vpop.f32.mrb[0].mxu0
    %v4844 = vpop.f32.mrb[0].mxu0
    %4845 = vdwg.mxu0
    %4846 = vmatprep.subr.bf16.mxu0 %v3334
    %4847 = vmatpush1.bf16.msra.mxu0 %v3333
    %4848 = vmatprep.subr.bf16.mxu0 %v3338
    %4849 = vmatpush1.bf16.msra.mxu0 %v3337
    %4850 = vmatprep.subr.bf16.mxu0 %v3342
    %4851 = vmatpush1.bf16.msra.mxu0 %v3341
    %4852 = vmatprep.subr.bf16.mxu0 %v3346
    %4853 = vmatpush1.bf16.msra.mxu0 %v3345
    %4854 = vmatprep.subr.bf16.mxu0 %v3350
    %4855 = vmatpush1.bf16.msra.mxu0 %v3349
    %4856 = vmatprep.subr.bf16.mxu0 %v3354
    %4857 = vmatpush1.bf16.msra.mxu0 %v3353
    %4858 = vmatprep.subr.bf16.mxu0 %v3358
    %4859 = vmatpush1.bf16.msra.mxu0 %v3357
    %4860 = vmatprep.subr.bf16.mxu0 %v3362
    %4861 = vmatpush1.bf16.msra.mxu0 %v3361
    %4862 = vmatprep.subr.bf16.mxu0 %v3366
    %4863 = vmatpush1.bf16.msra.mxu0 %v3365
    %4864 = vmatprep.subr.bf16.mxu0 %v3370
    %4865 = vmatpush1.bf16.msra.mxu0 %v3369
    %4866 = vmatprep.subr.bf16.mxu0 %v3374
    %4867 = vmatpush1.bf16.msra.mxu0 %v3373
    %4868 = vmatprep.subr.bf16.mxu0 %v3378
    %4869 = vmatpush1.bf16.msra.mxu0 %v3377
    %4870 = vmatprep.subr.bf16.mxu0 %v3382
    %4871 = vmatpush1.bf16.msra.mxu0 %v3381
    %4872 = vmatprep.subr.bf16.mxu0 %v3386
    %4873 = vmatpush1.bf16.msra.mxu0 %v3385
    %4874 = vmatprep.subr.bf16.mxu0 %v3390
    %4875 = vmatpush1.bf16.msra.mxu0 %v3389
    %4876 = vmatprep.subr.bf16.mxu0 %v3394
    %4877 = vmatpush1.bf16.msra.mxu0 %v3393
    %4878 = vmatprep.mubr.bf16.mxu0 %v920
    %4879 = vmatmul.mubr.bf16.gmra.mrb[0].mxu0 %v919
    %v4880 = vpop.f32.mrb[0].mxu0
    %v4881 = vadd.f32 %v4840, %v4880
    %v4882 = vpop.f32.mrb[0].mxu0
    %v4883 = vadd.f32 %v4842, %v4882
    %v4884 = vpop.f32.mrb[0].mxu0
    %v4885 = vpop.f32.mrb[0].mxu0
    %4886 = vdwg.mxu0
    %4887 = vmatprep.subr.bf16.mxu0 %v3398
    %4888 = vmatpush1.bf16.msra.mxu0 %v3397
    %4889 = vmatprep.subr.bf16.mxu0 %v3402
    %4890 = vmatpush1.bf16.msra.mxu0 %v3401
    %4891 = vmatprep.subr.bf16.mxu0 %v3406
    %4892 = vmatpush1.bf16.msra.mxu0 %v3405
    %4893 = vmatprep.subr.bf16.mxu0 %v3410
    %4894 = vmatpush1.bf16.msra.mxu0 %v3409
    %4895 = vmatprep.subr.bf16.mxu0 %v3414
    %4896 = vmatpush1.bf16.msra.mxu0 %v3413
    %4897 = vmatprep.subr.bf16.mxu0 %v3418
    %4898 = vmatpush1.bf16.msra.mxu0 %v3417
    %4899 = vmatprep.subr.bf16.mxu0 %v3422
    %4900 = vmatpush1.bf16.msra.mxu0 %v3421
    %4901 = vmatprep.subr.bf16.mxu0 %v3426
    %4902 = vmatpush1.bf16.msra.mxu0 %v3425
    %4903 = vmatprep.subr.bf16.mxu0 %v3430
    %4904 = vmatpush1.bf16.msra.mxu0 %v3429
    %4905 = vmatprep.subr.bf16.mxu0 %v3434
    %4906 = vmatpush1.bf16.msra.mxu0 %v3433
    %4907 = vmatprep.subr.bf16.mxu0 %v3438
    %4908 = vmatpush1.bf16.msra.mxu0 %v3437
    %4909 = vmatprep.subr.bf16.mxu0 %v3442
    %4910 = vmatpush1.bf16.msra.mxu0 %v3441
    %4911 = vmatprep.subr.bf16.mxu0 %v3446
    %4912 = vmatpush1.bf16.msra.mxu0 %v3445
    %4913 = vmatprep.subr.bf16.mxu0 %v3450
    %4914 = vmatpush1.bf16.msra.mxu0 %v3449
    %4915 = vmatprep.subr.bf16.mxu0 %v3454
    %4916 = vmatpush1.bf16.msra.mxu0 %v3453
    %4917 = vmatprep.subr.bf16.mxu0 %v3458
    %4918 = vmatpush1.bf16.msra.mxu0 %v3457
    %4919 = vmatprep.mubr.bf16.mxu0 %v922
    %4920 = vmatmul.mubr.bf16.gmra.mrb[0].mxu0 %v921
    %v4921 = vpop.f32.mrb[0].mxu0
    %v4922 = vadd.f32 %v4881, %v4921
    %v4923 = vpop.f32.mrb[0].mxu0
    %v4924 = vadd.f32 %v4883, %v4923
    %v4925 = vpop.f32.mrb[0].mxu0
    %v4926 = vpop.f32.mrb[0].mxu0
    %4927 = vdwg.mxu0
    %4928 = vmatprep.subr.bf16.mxu0 %v3462
    %4929 = vmatpush1.bf16.msra.mxu0 %v3461
    %4930 = vmatprep.subr.bf16.mxu0 %v3466
    %4931 = vmatpush1.bf16.msra.mxu0 %v3465
    %4932 = vmatprep.subr.bf16.mxu0 %v3470
    %4933 = vmatpush1.bf16.msra.mxu0 %v3469
    %4934 = vmatprep.subr.bf16.mxu0 %v3474
    %4935 = vmatpush1.bf16.msra.mxu0 %v3473
    %4936 = vmatprep.subr.bf16.mxu0 %v3478
    %4937 = vmatpush1.bf16.msra.mxu0 %v3477
    %4938 = vmatprep.subr.bf16.mxu0 %v3482
    %4939 = vmatpush1.bf16.msra.mxu0 %v3481
    %4940 = vmatprep.subr.bf16.mxu0 %v3486
    %4941 = vmatpush1.bf16.msra.mxu0 %v3485
    %4942 = vmatprep.subr.bf16.mxu0 %v3490
    %4943 = vmatpush1.bf16.msra.mxu0 %v3489
    %4944 = vmatprep.subr.bf16.mxu0 %v3494
    %4945 = vmatpush1.bf16.msra.mxu0 %v3493
    %4946 = vmatprep.subr.bf16.mxu0 %v3498
    %4947 = vmatpush1.bf16.msra.mxu0 %v3497
    %4948 = vmatprep.subr.bf16.mxu0 %v3502
    %4949 = vmatpush1.bf16.msra.mxu0 %v3501
    %4950 = vmatprep.subr.bf16.mxu0 %v3506
    %4951 = vmatpush1.bf16.msra.mxu0 %v3505
    %4952 = vmatprep.subr.bf16.mxu0 %v3510
    %4953 = vmatpush1.bf16.msra.mxu0 %v3509
    %4954 = vmatprep.subr.bf16.mxu0 %v3514
    %4955 = vmatpush1.bf16.msra.mxu0 %v3513
    %4956 = vmatprep.subr.bf16.mxu0 %v3518
    %4957 = vmatpush1.bf16.msra.mxu0 %v3517
    %4958 = vmatprep.subr.bf16.mxu0 %v3522
    %4959 = vmatpush1.bf16.msra.mxu0 %v3521
    %4960 = vmatprep.mubr.bf16.mxu0 %v924
    %4961 = vmatmul.mubr.bf16.gmra.mrb[0].mxu0 %v923
    %v4962 = vpop.f32.mrb[0].mxu0
    %v4963 = vadd.f32 %v4922, %v4962
    %v4964 = vpop.f32.mrb[0].mxu0
    %v4965 = vadd.f32 %v4924, %v4964
    %v4966 = vpop.f32.mrb[0].mxu0
    %v4967 = vpop.f32.mrb[0].mxu0
    %4968 = vdwg.mxu0
    %4969 = vmatprep.subr.bf16.mxu0 %v3526
    %4970 = vmatpush1.bf16.msra.mxu0 %v3525
    %4971 = vmatprep.subr.bf16.mxu0 %v3530
    %4972 = vmatpush1.bf16.msra.mxu0 %v3529
    %4973 = vmatprep.subr.bf16.mxu0 %v3534
    %4974 = vmatpush1.bf16.msra.mxu0 %v3533
    %4975 = vmatprep.subr.bf16.mxu0 %v3538
    %4976 = vmatpush1.bf16.msra.mxu0 %v3537
    %4977 = vmatprep.subr.bf16.mxu0 %v3542
    %4978 = vmatpush1.bf16.msra.mxu0 %v3541
    %4979 = vmatprep.subr.bf16.mxu0 %v3546
    %4980 = vmatpush1.bf16.msra.mxu0 %v3545
    %4981 = vmatprep.subr.bf16.mxu0 %v3550
    %4982 = vmatpush1.bf16.msra.mxu0 %v3549
    %4983 = vmatprep.subr.bf16.mxu0 %v3554
    %4984 = vmatpush1.bf16.msra.mxu0 %v3553
    %4985 = vmatprep.subr.bf16.mxu0 %v3558
    %4986 = vmatpush1.bf16.msra.mxu0 %v3557
    %4987 = vmatprep.subr.bf16.mxu0 %v3562
    %4988 = vmatpush1.bf16.msra.mxu0 %v3561
    %4989 = vmatprep.subr.bf16.mxu0 %v3566
    %4990 = vmatpush1.bf16.msra.mxu0 %v3565
    %4991 = vmatprep.subr.bf16.mxu0 %v3570
    %4992 = vmatpush1.bf16.msra.mxu0 %v3569
    %4993 = vmatprep.subr.bf16.mxu0 %v3574
    %4994 = vmatpush1.bf16.msra.mxu0 %v3573
    %4995 = vmatprep.subr.bf16.mxu0 %v3578
    %4996 = vmatpush1.bf16.msra.mxu0 %v3577
    %4997 = vmatprep.subr.bf16.mxu0 %v3582
    %4998 = vmatpush1.bf16.msra.mxu0 %v3581
    %4999 = vmatprep.subr.bf16.mxu0 %v3586
    %5000 = vmatpush1.bf16.msra.mxu0 %v3585
    %5001 = vmatprep.mubr.bf16.mxu0 %v926
    %5002 = vmatmul.mubr.bf16.gmra.mrb[0].mxu0 %v925
    %v5003 = vpop.f32.mrb[0].mxu0
    %v5004 = vadd.f32 %v4963, %v5003
    %v5005 = vpop.f32.mrb[0].mxu0
    %v5006 = vadd.f32 %v4965, %v5005
    %v5007 = vpop.f32.mrb[0].mxu0
    %v5008 = vpop.f32.mrb[0].mxu0
    %5009 = vdwg.mxu0
    %5010 = vmatprep.subr.bf16.mxu0 %v3590
    %5011 = vmatpush1.bf16.msra.mxu0 %v3589
    %5012 = vmatprep.subr.bf16.mxu0 %v3594
    %5013 = vmatpush1.bf16.msra.mxu0 %v3593
    %5014 = vmatprep.subr.bf16.mxu0 %v3598
    %5015 = vmatpush1.bf16.msra.mxu0 %v3597
    %5016 = vmatprep.subr.bf16.mxu0 %v3602
    %5017 = vmatpush1.bf16.msra.mxu0 %v3601
    %5018 = vmatprep.subr.bf16.mxu0 %v3606
    %5019 = vmatpush1.bf16.msra.mxu0 %v3605
    %5020 = vmatprep.subr.bf16.mxu0 %v3610
    %5021 = vmatpush1.bf16.msra.mxu0 %v3609
    %5022 = vmatprep.subr.bf16.mxu0 %v3614
    %5023 = vmatpush1.bf16.msra.mxu0 %v3613
    %5024 = vmatprep.subr.bf16.mxu0 %v3618
    %5025 = vmatpush1.bf16.msra.mxu0 %v3617
    %5026 = vmatprep.subr.bf16.mxu0 %v3622
    %5027 = vmatpush1.bf16.msra.mxu0 %v3621
    %5028 = vmatprep.subr.bf16.mxu0 %v3626
    %5029 = vmatpush1.bf16.msra.mxu0 %v3625
    %5030 = vmatprep.subr.bf16.mxu0 %v3630
    %5031 = vmatpush1.bf16.msra.mxu0 %v3629
    %5032 = vmatprep.subr.bf16.mxu0 %v3634
    %5033 = vmatpush1.bf16.msra.mxu0 %v3633
    %5034 = vmatprep.subr.bf16.mxu0 %v3638
    %5035 = vmatpush1.bf16.msra.mxu0 %v3637
    %5036 = vmatprep.subr.bf16.mxu0 %v3642
    %5037 = vmatpush1.bf16.msra.mxu0 %v3641
    %5038 = vmatprep.subr.bf16.mxu0 %v3646
    %5039 = vmatpush1.bf16.msra.mxu0 %v3645
    %5040 = vmatprep.subr.bf16.mxu0 %v3650
    %5041 = vmatpush1.bf16.msra.mxu0 %v3649
    %5042 = vmatprep.mubr.bf16.mxu0 %v928
    %5043 = vmatmul.mubr.bf16.gmra.mrb[0].mxu0 %v927
    %v5044 = vpop.f32.mrb[0].mxu0
    %v5045 = vadd.f32 %v5004, %v5044
    %v5046 = vpop.f32.mrb[0].mxu0
    %v5047 = vadd.f32 %v5006, %v5046
    %v5048 = vpop.f32.mrb[0].mxu0
    %v5049 = vpop.f32.mrb[0].mxu0
    %5050 = vdwg.mxu0
    %5051 = vmatprep.subr.bf16.mxu0 %v3654
    %5052 = vmatpush1.bf16.msra.mxu0 %v3653
    %5053 = vmatprep.subr.bf16.mxu0 %v3658
    %5054 = vmatpush1.bf16.msra.mxu0 %v3657
    %5055 = vmatprep.subr.bf16.mxu0 %v3662
    %5056 = vmatpush1.bf16.msra.mxu0 %v3661
    %5057 = vmatprep.subr.bf16.mxu0 %v3666
    %5058 = vmatpush1.bf16.msra.mxu0 %v3665
    %5059 = vmatprep.subr.bf16.mxu0 %v3670
    %5060 = vmatpush1.bf16.msra.mxu0 %v3669
    %5061 = vmatprep.subr.bf16.mxu0 %v3674
    %5062 = vmatpush1.bf16.msra.mxu0 %v3673
    %5063 = vmatprep.subr.bf16.mxu0 %v3678
    %5064 = vmatpush1.bf16.msra.mxu0 %v3677
    %5065 = vmatprep.subr.bf16.mxu0 %v3682
    %5066 = vmatpush1.bf16.msra.mxu0 %v3681
    %5067 = vmatprep.subr.bf16.mxu0 %v3686
    %5068 = vmatpush1.bf16.msra.mxu0 %v3685
    %5069 = vmatprep.subr.bf16.mxu0 %v3690
    %5070 = vmatpush1.bf16.msra.mxu0 %v3689
    %5071 = vmatprep.subr.bf16.mxu0 %v3694
    %5072 = vmatpush1.bf16.msra.mxu0 %v3693
    %5073 = vmatprep.subr.bf16.mxu0 %v3698
    %5074 = vmatpush1.bf16.msra.mxu0 %v3697
    %5075 = vmatprep.subr.bf16.mxu0 %v3702
    %5076 = vmatpush1.bf16.msra.mxu0 %v3701
    %5077 = vmatprep.subr.bf16.mxu0 %v3706
    %5078 = vmatpush1.bf16.msra.mxu0 %v3705
    %5079 = vmatprep.subr.bf16.mxu0 %v3710
    %5080 = vmatpush1.bf16.msra.mxu0 %v3709
    %5081 = vmatprep.subr.bf16.mxu0 %v3714
    %5082 = vmatpush1.bf16.msra.mxu0 %v3713
    %5083 = vmatprep.mubr.bf16.mxu0 %v930
    %5084 = vmatmul.mubr.bf16.gmra.mrb[0].mxu0 %v929
    %v5085 = vpop.f32.mrb[0].mxu0
    %v5086 = vadd.f32 %v5045, %v5085
    %v5087 = vpop.f32.mrb[0].mxu0
    %v5088 = vadd.f32 %v5047, %v5087
    %v5089 = vpop.f32.mrb[0].mxu0
    %v5090 = vpop.f32.mrb[0].mxu0
    %5091 = vdwg.mxu0
    %5092 = vmatprep.subr.bf16.mxu0 %v3718
    %5093 = vmatpush1.bf16.msra.mxu0 %v3717
    %5094 = vmatprep.subr.bf16.mxu0 %v3722
    %5095 = vmatpush1.bf16.msra.mxu0 %v3721
    %5096 = vmatprep.subr.bf16.mxu0 %v3726
    %5097 = vmatpush1.bf16.msra.mxu0 %v3725
    %5098 = vmatprep.subr.bf16.mxu0 %v3730
    %5099 = vmatpush1.bf16.msra.mxu0 %v3729
    %5100 = vmatprep.subr.bf16.mxu0 %v3734
    %5101 = vmatpush1.bf16.msra.mxu0 %v3733
    %5102 = vmatprep.subr.bf16.mxu0 %v3738
    %5103 = vmatpush1.bf16.msra.mxu0 %v3737
    %5104 = vmatprep.subr.bf16.mxu0 %v3742
    %5105 = vmatpush1.bf16.msra.mxu0 %v3741
    %5106 = vmatprep.subr.bf16.mxu0 %v3746
    %5107 = vmatpush1.bf16.msra.mxu0 %v3745
    %5108 = vmatprep.subr.bf16.mxu0 %v3750
    %5109 = vmatpush1.bf16.msra.mxu0 %v3749
    %5110 = vmatprep.subr.bf16.mxu0 %v3754
    %5111 = vmatpush1.bf16.msra.mxu0 %v3753
    %5112 = vmatprep.subr.bf16.mxu0 %v3758
    %5113 = vmatpush1.bf16.msra.mxu0 %v3757
    %5114 = vmatprep.subr.bf16.mxu0 %v3762
    %5115 = vmatpush1.bf16.msra.mxu0 %v3761
    %5116 = vmatprep.subr.bf16.mxu0 %v3766
    %5117 = vmatpush1.bf16.msra.mxu0 %v3765
    %5118 = vmatprep.subr.bf16.mxu0 %v3770
    %5119 = vmatpush1.bf16.msra.mxu0 %v3769
    %5120 = vmatprep.subr.bf16.mxu0 %v3774
    %5121 = vmatpush1.bf16.msra.mxu0 %v3773
    %5122 = vmatprep.subr.bf16.mxu0 %v3778
    %5123 = vmatpush1.bf16.msra.mxu0 %v3777
    %5124 = vmatprep.mubr.bf16.mxu0 %v932
    %5125 = vmatmul.mubr.bf16.gmra.mrb[0].mxu0 %v931
    %v5126 = vpop.f32.mrb[0].mxu0
    %v5127 = vadd.f32 %v5086, %v5126
    %v5128 = vpop.f32.mrb[0].mxu0
    %v5129 = vadd.f32 %v5088, %v5128
    %v5130 = vpop.f32.mrb[0].mxu0
    %v5131 = vpop.f32.mrb[0].mxu0
    %5132 = vdwg.mxu0
    %5133 = vmatprep.subr.bf16.mxu0 %v3782
    %5134 = vmatpush1.bf16.msra.mxu0 %v3781
    %5135 = vmatprep.subr.bf16.mxu0 %v3786
    %5136 = vmatpush1.bf16.msra.mxu0 %v3785
    %5137 = vmatprep.subr.bf16.mxu0 %v3790
    %5138 = vmatpush1.bf16.msra.mxu0 %v3789
    %5139 = vmatprep.subr.bf16.mxu0 %v3794
    %5140 = vmatpush1.bf16.msra.mxu0 %v3793
    %5141 = vmatprep.subr.bf16.mxu0 %v3798
    %5142 = vmatpush1.bf16.msra.mxu0 %v3797
    %5143 = vmatprep.subr.bf16.mxu0 %v3802
    %5144 = vmatpush1.bf16.msra.mxu0 %v3801
    %5145 = vmatprep.subr.bf16.mxu0 %v3806
    %5146 = vmatpush1.bf16.msra.mxu0 %v3805
    %5147 = vmatprep.subr.bf16.mxu0 %v3810
    %5148 = vmatpush1.bf16.msra.mxu0 %v3809
    %5149 = vmatprep.subr.bf16.mxu0 %v3814
    %5150 = vmatpush1.bf16.msra.mxu0 %v3813
    %5151 = vmatprep.subr.bf16.mxu0 %v3818
    %5152 = vmatpush1.bf16.msra.mxu0 %v3817
    %5153 = vmatprep.subr.bf16.mxu0 %v3822
    %5154 = vmatpush1.bf16.msra.mxu0 %v3821
    %5155 = vmatprep.subr.bf16.mxu0 %v3826
    %5156 = vmatpush1.bf16.msra.mxu0 %v3825
    %5157 = vmatprep.subr.bf16.mxu0 %v3830
    %5158 = vmatpush1.bf16.msra.mxu0 %v3829
    %5159 = vmatprep.subr.bf16.mxu0 %v3834
    %5160 = vmatpush1.bf16.msra.mxu0 %v3833
    %5161 = vmatprep.subr.bf16.mxu0 %v3838
    %5162 = vmatpush1.bf16.msra.mxu0 %v3837
    %5163 = vmatprep.subr.bf16.mxu0 %v3842
    %5164 = vmatpush1.bf16.msra.mxu0 %v3841
    %5165 = vmatprep.mubr.bf16.mxu0 %v934
    %5166 = vmatmul.mubr.bf16.gmra.mrb[0].mxu0 %v933
    %v5167 = vpop.f32.mrb[0].mxu0
    %v5168 = vadd.f32 %v5127, %v5167
    %v5169 = vpop.f32.mrb[0].mxu0
    %v5170 = vadd.f32 %v5129, %v5169
    %v5171 = vpop.f32.mrb[0].mxu0
    %v5172 = vpop.f32.mrb[0].mxu0
    %5173 = vdwg.mxu0
    %5174 = vmatprep.subr.bf16.mxu0 %v3846
    %5175 = vmatpush1.bf16.msra.mxu0 %v3845
    %5176 = vmatprep.subr.bf16.mxu0 %v3850
    %5177 = vmatpush1.bf16.msra.mxu0 %v3849
    %5178 = vmatprep.subr.bf16.mxu0 %v3854
    %5179 = vmatpush1.bf16.msra.mxu0 %v3853
    %5180 = vmatprep.subr.bf16.mxu0 %v3858
    %5181 = vmatpush1.bf16.msra.mxu0 %v3857
    %5182 = vmatprep.subr.bf16.mxu0 %v3862
    %5183 = vmatpush1.bf16.msra.mxu0 %v3861
    %5184 = vmatprep.subr.bf16.mxu0 %v3866
    %5185 = vmatpush1.bf16.msra.mxu0 %v3865
    %5186 = vmatprep.subr.bf16.mxu0 %v3870
    %5187 = vmatpush1.bf16.msra.mxu0 %v3869
    %5188 = vmatprep.subr.bf16.mxu0 %v3874
    %5189 = vmatpush1.bf16.msra.mxu0 %v3873
    %5190 = vmatprep.subr.bf16.mxu0 %v3878
    %5191 = vmatpush1.bf16.msra.mxu0 %v3877
    %5192 = vmatprep.subr.bf16.mxu0 %v3882
    %5193 = vmatpush1.bf16.msra.mxu0 %v3881
    %5194 = vmatprep.subr.bf16.mxu0 %v3886
    %5195 = vmatpush1.bf16.msra.mxu0 %v3885
    %5196 = vmatprep.subr.bf16.mxu0 %v3890
    %5197 = vmatpush1.bf16.msra.mxu0 %v3889
    %5198 = vmatprep.subr.bf16.mxu0 %v3894
    %5199 = vmatpush1.bf16.msra.mxu0 %v3893
    %5200 = vmatprep.subr.bf16.mxu0 %v3898
    %5201 = vmatpush1.bf16.msra.mxu0 %v3897
    %5202 = vmatprep.subr.bf16.mxu0 %v3902
    %5203 = vmatpush1.bf16.msra.mxu0 %v3901
    %5204 = vmatprep.subr.bf16.mxu0 %v3906
    %5205 = vmatpush1.bf16.msra.mxu0 %v3905
    %5206 = vmatprep.mubr.bf16.mxu0 %v936
    %5207 = vmatmul.mubr.bf16.gmra.mrb[0].mxu0 %v935
    %v5208 = vpop.f32.mrb[0].mxu0
    %v5209 = vadd.f32 %v5168, %v5208
    %v5210 = vpop.f32.mrb[0].mxu0
    %v5211 = vadd.f32 %v5170, %v5210
    %v5212 = vpop.f32.mrb[0].mxu0
    %v5213 = vpop.f32.mrb[0].mxu0
    %5214 = vdwg.mxu0
    %5215 = vmatprep.subr.bf16.mxu0 %v3910
    %5216 = vmatpush1.bf16.msra.mxu0 %v3909
    %5217 = vmatprep.subr.bf16.mxu0 %v3914
    %5218 = vmatpush1.bf16.msra.mxu0 %v3913
    %5219 = vmatprep.subr.bf16.mxu0 %v3918
    %5220 = vmatpush1.bf16.msra.mxu0 %v3917
    %5221 = vmatprep.subr.bf16.mxu0 %v3922
    %5222 = vmatpush1.bf16.msra.mxu0 %v3921
    %5223 = vmatprep.subr.bf16.mxu0 %v3926
    %5224 = vmatpush1.bf16.msra.mxu0 %v3925
    %5225 = vmatprep.subr.bf16.mxu0 %v3930
    %5226 = vmatpush1.bf16.msra.mxu0 %v3929
    %5227 = vmatprep.subr.bf16.mxu0 %v3934
    %5228 = vmatpush1.bf16.msra.mxu0 %v3933
    %5229 = vmatprep.subr.bf16.mxu0 %v3938
    %5230 = vmatpush1.bf16.msra.mxu0 %v3937
    %5231 = vmatprep.subr.bf16.mxu0 %v3942
    %5232 = vmatpush1.bf16.msra.mxu0 %v3941
    %5233 = vmatprep.subr.bf16.mxu0 %v3946
    %5234 = vmatpush1.bf16.msra.mxu0 %v3945
    %5235 = vmatprep.subr.bf16.mxu0 %v3950
    %5236 = vmatpush1.bf16.msra.mxu0 %v3949
    %5237 = vmatprep.subr.bf16.mxu0 %v3954
    %5238 = vmatpush1.bf16.msra.mxu0 %v3953
    %5239 = vmatprep.subr.bf16.mxu0 %v3958
    %5240 = vmatpush1.bf16.msra.mxu0 %v3957
    %5241 = vmatprep.subr.bf16.mxu0 %v3962
    %5242 = vmatpush1.bf16.msra.mxu0 %v3961
    %5243 = vmatprep.subr.bf16.mxu0 %v3966
    %5244 = vmatpush1.bf16.msra.mxu0 %v3965
    %5245 = vmatprep.subr.bf16.mxu0 %v3970
    %5246 = vmatpush1.bf16.msra.mxu0 %v3969
    %5247 = vmatprep.mubr.bf16.mxu0 %v938
    %5248 = vmatmul.mubr.bf16.gmra.mrb[0].mxu0 %v937
    %v5249 = vpop.f32.mrb[0].mxu0
    %v5250 = vadd.f32 %v5209, %v5249
    %v5251 = vpop.f32.mrb[0].mxu0
    %v5252 = vadd.f32 %v5211, %v5251
    %v5253 = vpop.f32.mrb[0].mxu0
    %v5254 = vpop.f32.mrb[0].mxu0
    %5255 = vdwg.mxu0
    %5256 = vmatprep.subr.bf16.mxu0 %v3974
    %5257 = vmatpush1.bf16.msra.mxu0 %v3973
    %5258 = vmatprep.subr.bf16.mxu0 %v3978
    %5259 = vmatpush1.bf16.msra.mxu0 %v3977
    %5260 = vmatprep.subr.bf16.mxu0 %v3982
    %5261 = vmatpush1.bf16.msra.mxu0 %v3981
    %5262 = vmatprep.subr.bf16.mxu0 %v3986
    %5263 = vmatpush1.bf16.msra.mxu0 %v3985
    %5264 = vmatprep.subr.bf16.mxu0 %v3990
    %5265 = vmatpush1.bf16.msra.mxu0 %v3989
    %5266 = vmatprep.subr.bf16.mxu0 %v3994
    %5267 = vmatpush1.bf16.msra.mxu0 %v3993
    %5268 = vmatprep.subr.bf16.mxu0 %v3998
    %5269 = vmatpush1.bf16.msra.mxu0 %v3997
    %5270 = vmatprep.subr.bf16.mxu0 %v4002
    %5271 = vmatpush1.bf16.msra.mxu0 %v4001
    %5272 = vmatprep.subr.bf16.mxu0 %v4006
    %5273 = vmatpush1.bf16.msra.mxu0 %v4005
    %5274 = vmatprep.subr.bf16.mxu0 %v4010
    %5275 = vmatpush1.bf16.msra.mxu0 %v4009
    %5276 = vmatprep.subr.bf16.mxu0 %v4014
    %5277 = vmatpush1.bf16.msra.mxu0 %v4013
    %5278 = vmatprep.subr.bf16.mxu0 %v4018
    %5279 = vmatpush1.bf16.msra.mxu0 %v4017
    %5280 = vmatprep.subr.bf16.mxu0 %v4022
    %5281 = vmatpush1.bf16.msra.mxu0 %v4021
    %5282 = vmatprep.subr.bf16.mxu0 %v4026
    %5283 = vmatpush1.bf16.msra.mxu0 %v4025
    %5284 = vmatprep.subr.bf16.mxu0 %v4030
    %5285 = vmatpush1.bf16.msra.mxu0 %v4029
    %5286 = vmatprep.subr.bf16.mxu0 %v4034
    %5287 = vmatpush1.bf16.msra.mxu0 %v4033
    %5288 = vmatprep.mubr.bf16.mxu0 %v940
    %5289 = vmatmul.mubr.bf16.gmra.mrb[0].mxu0 %v939
    %v5290 = vpop.f32.mrb[0].mxu0
    %v5291 = vadd.f32 %v5250, %v5290
    %v5292 = vpop.f32.mrb[0].mxu0
    %v5293 = vadd.f32 %v5252, %v5292
    %v5294 = vpop.f32.mrb[0].mxu0
    %v5295 = vpop.f32.mrb[0].mxu0
    %5296 = vdwg.mxu0
    %5297 = vmatprep.subr.bf16.mxu0 %v3272
    %5298 = vmatpush1.bf16.msra.mxu0 %v3271
    %5299 = vmatprep.subr.bf16.mxu0 %v3276
    %5300 = vmatpush1.bf16.msra.mxu0 %v3275
    %5301 = vmatprep.subr.bf16.mxu0 %v3280
    %5302 = vmatpush1.bf16.msra.mxu0 %v3279
    %5303 = vmatprep.subr.bf16.mxu0 %v3284
    %5304 = vmatpush1.bf16.msra.mxu0 %v3283
    %5305 = vmatprep.subr.bf16.mxu0 %v3288
    %5306 = vmatpush1.bf16.msra.mxu0 %v3287
    %5307 = vmatprep.subr.bf16.mxu0 %v3292
    %5308 = vmatpush1.bf16.msra.mxu0 %v3291
    %5309 = vmatprep.subr.bf16.mxu0 %v3296
    %5310 = vmatpush1.bf16.msra.mxu0 %v3295
    %5311 = vmatprep.subr.bf16.mxu0 %v3300
    %5312 = vmatpush1.bf16.msra.mxu0 %v3299
    %5313 = vmatprep.subr.bf16.mxu0 %v3304
    %5314 = vmatpush1.bf16.msra.mxu0 %v3303
    %5315 = vmatprep.subr.bf16.mxu0 %v3308
    %5316 = vmatpush1.bf16.msra.mxu0 %v3307
    %5317 = vmatprep.subr.bf16.mxu0 %v3312
    %5318 = vmatpush1.bf16.msra.mxu0 %v3311
    %5319 = vmatprep.subr.bf16.mxu0 %v3316
    %5320 = vmatpush1.bf16.msra.mxu0 %v3315
    %5321 = vmatprep.subr.bf16.mxu0 %v3320
    %5322 = vmatpush1.bf16.msra.mxu0 %v3319
    %5323 = vmatprep.subr.bf16.mxu0 %v3324
    %5324 = vmatpush1.bf16.msra.mxu0 %v3323
    %5325 = vmatprep.subr.bf16.mxu0 %v3328
    %5326 = vmatpush1.bf16.msra.mxu0 %v3327
    %5327 = vmatprep.subr.bf16.mxu0 %v3332
    %5328 = vmatpush1.bf16.msra.mxu0 %v3331
    %5329 = vmatprep.mubr.bf16.mxu0 %v918
    %5330 = vmatmul.mubr.bf16.gmra.mrb[0].mxu0 %v917
    %v5331 = vpop.f32.mrb[0].mxu0
    %v5332 = vadd.f32 %v876, %v5331
    %v5333 = vpop.f32.mrb[0].mxu0
    %v5334 = vadd.f32 %v880, %v5333
    %v5335 = vpop.f32.mrb[0].mxu0
    %v5336 = vpop.f32.mrb[0].mxu0
    %5337 = vdwg.mxu0
    %5338 = vmatprep.subr.bf16.mxu0 %v3336
    %5339 = vmatpush1.bf16.msra.mxu0 %v3335
    %5340 = vmatprep.subr.bf16.mxu0 %v3340
    %5341 = vmatpush1.bf16.msra.mxu0 %v3339
    %5342 = vmatprep.subr.bf16.mxu0 %v3344
    %5343 = vmatpush1.bf16.msra.mxu0 %v3343
    %5344 = vmatprep.subr.bf16.mxu0 %v3348
    %5345 = vmatpush1.bf16.msra.mxu0 %v3347
    %5346 = vmatprep.subr.bf16.mxu0 %v3352
    %5347 = vmatpush1.bf16.msra.mxu0 %v3351
    %5348 = vmatprep.subr.bf16.mxu0 %v3356
    %5349 = vmatpush1.bf16.msra.mxu0 %v3355
    %5350 = vmatprep.subr.bf16.mxu0 %v3360
    %5351 = vmatpush1.bf16.msra.mxu0 %v3359
    %5352 = vmatprep.subr.bf16.mxu0 %v3364
    %5353 = vmatpush1.bf16.msra.mxu0 %v3363
    %5354 = vmatprep.subr.bf16.mxu0 %v3368
    %5355 = vmatpush1.bf16.msra.mxu0 %v3367
    %5356 = vmatprep.subr.bf16.mxu0 %v3372
    %5357 = vmatpush1.bf16.msra.mxu0 %v3371
    %5358 = vmatprep.subr.bf16.mxu0 %v3376
    %5359 = vmatpush1.bf16.msra.mxu0 %v3375
    %5360 = vmatprep.subr.bf16.mxu0 %v3380
    %5361 = vmatpush1.bf16.msra.mxu0 %v3379
    %5362 = vmatprep.subr.bf16.mxu0 %v3384
    %5363 = vmatpush1.bf16.msra.mxu0 %v3383
    %5364 = vmatprep.subr.bf16.mxu0 %v3388
    %5365 = vmatpush1.bf16.msra.mxu0 %v3387
    %5366 = vmatprep.subr.bf16.mxu0 %v3392
    %5367 = vmatpush1.bf16.msra.mxu0 %v3391
    %5368 = vmatprep.subr.bf16.mxu0 %v3396
    %5369 = vmatpush1.bf16.msra.mxu0 %v3395
    %5370 = vmatprep.mubr.bf16.mxu0 %v920
    %5371 = vmatmul.mubr.bf16.gmra.mrb[0].mxu0 %v919
    %v5372 = vpop.f32.mrb[0].mxu0
    %v5373 = vadd.f32 %v5332, %v5372
    %v5374 = vpop.f32.mrb[0].mxu0
    %v5375 = vadd.f32 %v5334, %v5374
    %v5376 = vpop.f32.mrb[0].mxu0
    %v5377 = vpop.f32.mrb[0].mxu0
    %5378 = vdwg.mxu0
    %5379 = vmatprep.subr.bf16.mxu0 %v3400
    %5380 = vmatpush1.bf16.msra.mxu0 %v3399
    %5381 = vmatprep.subr.bf16.mxu0 %v3404
    %5382 = vmatpush1.bf16.msra.mxu0 %v3403
    %5383 = vmatprep.subr.bf16.mxu0 %v3408
    %5384 = vmatpush1.bf16.msra.mxu0 %v3407
    %5385 = vmatprep.subr.bf16.mxu0 %v3412
    %5386 = vmatpush1.bf16.msra.mxu0 %v3411
    %5387 = vmatprep.subr.bf16.mxu0 %v3416
    %5388 = vmatpush1.bf16.msra.mxu0 %v3415
    %5389 = vmatprep.subr.bf16.mxu0 %v3420
    %5390 = vmatpush1.bf16.msra.mxu0 %v3419
    %5391 = vmatprep.subr.bf16.mxu0 %v3424
    %5392 = vmatpush1.bf16.msra.mxu0 %v3423
    %5393 = vmatprep.subr.bf16.mxu0 %v3428
    %5394 = vmatpush1.bf16.msra.mxu0 %v3427
    %5395 = vmatprep.subr.bf16.mxu0 %v3432
    %5396 = vmatpush1.bf16.msra.mxu0 %v3431
    %5397 = vmatprep.subr.bf16.mxu0 %v3436
    %5398 = vmatpush1.bf16.msra.mxu0 %v3435
    %5399 = vmatprep.subr.bf16.mxu0 %v3440
    %5400 = vmatpush1.bf16.msra.mxu0 %v3439
    %5401 = vmatprep.subr.bf16.mxu0 %v3444
    %5402 = vmatpush1.bf16.msra.mxu0 %v3443
    %5403 = vmatprep.subr.bf16.mxu0 %v3448
    %5404 = vmatpush1.bf16.msra.mxu0 %v3447
    %5405 = vmatprep.subr.bf16.mxu0 %v3452
    %5406 = vmatpush1.bf16.msra.mxu0 %v3451
    %5407 = vmatprep.subr.bf16.mxu0 %v3456
    %5408 = vmatpush1.bf16.msra.mxu0 %v3455
    %5409 = vmatprep.subr.bf16.mxu0 %v3460
    %5410 = vmatpush1.bf16.msra.mxu0 %v3459
    %5411 = vmatprep.mubr.bf16.mxu0 %v922
    %5412 = vmatmul.mubr.bf16.gmra.mrb[0].mxu0 %v921
    %v5413 = vpop.f32.mrb[0].mxu0
    %v5414 = vadd.f32 %v5373, %v5413
    %v5415 = vpop.f32.mrb[0].mxu0
    %v5416 = vadd.f32 %v5375, %v5415
    %v5417 = vpop.f32.mrb[0].mxu0
    %v5418 = vpop.f32.mrb[0].mxu0
    %5419 = vdwg.mxu0
    %5420 = vmatprep.subr.bf16.mxu0 %v3464
    %5421 = vmatpush1.bf16.msra.mxu0 %v3463
    %5422 = vmatprep.subr.bf16.mxu0 %v3468
    %5423 = vmatpush1.bf16.msra.mxu0 %v3467
    %5424 = vmatprep.subr.bf16.mxu0 %v3472
    %5425 = vmatpush1.bf16.msra.mxu0 %v3471
    %5426 = vmatprep.subr.bf16.mxu0 %v3476
    %5427 = vmatpush1.bf16.msra.mxu0 %v3475
    %5428 = vmatprep.subr.bf16.mxu0 %v3480
    %5429 = vmatpush1.bf16.msra.mxu0 %v3479
    %5430 = vmatprep.subr.bf16.mxu0 %v3484
    %5431 = vmatpush1.bf16.msra.mxu0 %v3483
    %5432 = vmatprep.subr.bf16.mxu0 %v3488
    %5433 = vmatpush1.bf16.msra.mxu0 %v3487
    %5434 = vmatprep.subr.bf16.mxu0 %v3492
    %5435 = vmatpush1.bf16.msra.mxu0 %v3491
    %5436 = vmatprep.subr.bf16.mxu0 %v3496
    %5437 = vmatpush1.bf16.msra.mxu0 %v3495
    %5438 = vmatprep.subr.bf16.mxu0 %v3500
    %5439 = vmatpush1.bf16.msra.mxu0 %v3499
    %5440 = vmatprep.subr.bf16.mxu0 %v3504
    %5441 = vmatpush1.bf16.msra.mxu0 %v3503
    %5442 = vmatprep.subr.bf16.mxu0 %v3508
    %5443 = vmatpush1.bf16.msra.mxu0 %v3507
    %5444 = vmatprep.subr.bf16.mxu0 %v3512
    %5445 = vmatpush1.bf16.msra.mxu0 %v3511
    %5446 = vmatprep.subr.bf16.mxu0 %v3516
    %5447 = vmatpush1.bf16.msra.mxu0 %v3515
    %5448 = vmatprep.subr.bf16.mxu0 %v3520
    %5449 = vmatpush1.bf16.msra.mxu0 %v3519
    %5450 = vmatprep.subr.bf16.mxu0 %v3524
    %5451 = vmatpush1.bf16.msra.mxu0 %v3523
    %5452 = vmatprep.mubr.bf16.mxu0 %v924
    %5453 = vmatmul.mubr.bf16.gmra.mrb[0].mxu0 %v923
    %v5454 = vpop.f32.mrb[0].mxu0
    %v5455 = vadd.f32 %v5414, %v5454
    %v5456 = vpop.f32.mrb[0].mxu0
    %v5457 = vadd.f32 %v5416, %v5456
    %v5458 = vpop.f32.mrb[0].mxu0
    %v5459 = vpop.f32.mrb[0].mxu0
    %5460 = vdwg.mxu0
    %5461 = vmatprep.subr.bf16.mxu0 %v3528
    %5462 = vmatpush1.bf16.msra.mxu0 %v3527
    %5463 = vmatprep.subr.bf16.mxu0 %v3532
    %5464 = vmatpush1.bf16.msra.mxu0 %v3531
    %5465 = vmatprep.subr.bf16.mxu0 %v3536
    %5466 = vmatpush1.bf16.msra.mxu0 %v3535
    %5467 = vmatprep.subr.bf16.mxu0 %v3540
    %5468 = vmatpush1.bf16.msra.mxu0 %v3539
    %5469 = vmatprep.subr.bf16.mxu0 %v3544
    %5470 = vmatpush1.bf16.msra.mxu0 %v3543
    %5471 = vmatprep.subr.bf16.mxu0 %v3548
    %5472 = vmatpush1.bf16.msra.mxu0 %v3547
    %5473 = vmatprep.subr.bf16.mxu0 %v3552
    %5474 = vmatpush1.bf16.msra.mxu0 %v3551
    %5475 = vmatprep.subr.bf16.mxu0 %v3556
    %5476 = vmatpush1.bf16.msra.mxu0 %v3555
    %5477 = vmatprep.subr.bf16.mxu0 %v3560
    %5478 = vmatpush1.bf16.msra.mxu0 %v3559
    %5479 = vmatprep.subr.bf16.mxu0 %v3564
    %5480 = vmatpush1.bf16.msra.mxu0 %v3563
    %5481 = vmatprep.subr.bf16.mxu0 %v3568
    %5482 = vmatpush1.bf16.msra.mxu0 %v3567
    %5483 = vmatprep.subr.bf16.mxu0 %v3572
    %5484 = vmatpush1.bf16.msra.mxu0 %v3571
    %5485 = vmatprep.subr.bf16.mxu0 %v3576
    %5486 = vmatpush1.bf16.msra.mxu0 %v3575
    %5487 = vmatprep.subr.bf16.mxu0 %v3580
    %5488 = vmatpush1.bf16.msra.mxu0 %v3579
    %5489 = vmatprep.subr.bf16.mxu0 %v3584
    %5490 = vmatpush1.bf16.msra.mxu0 %v3583
    %5491 = vmatprep.subr.bf16.mxu0 %v3588
    %5492 = vmatpush1.bf16.msra.mxu0 %v3587
    %5493 = vmatprep.mubr.bf16.mxu0 %v926
    %5494 = vmatmul.mubr.bf16.gmra.mrb[0].mxu0 %v925
    %v5495 = vpop.f32.mrb[0].mxu0
    %v5496 = vadd.f32 %v5455, %v5495
    %v5497 = vpop.f32.mrb[0].mxu0
    %v5498 = vadd.f32 %v5457, %v5497
    %v5499 = vpop.f32.mrb[0].mxu0
    %v5500 = vpop.f32.mrb[0].mxu0
    %5501 = vdwg.mxu0
    %5502 = vmatprep.subr.bf16.mxu0 %v3592
    %5503 = vmatpush1.bf16.msra.mxu0 %v3591
    %5504 = vmatprep.subr.bf16.mxu0 %v3596
    %5505 = vmatpush1.bf16.msra.mxu0 %v3595
    %5506 = vmatprep.subr.bf16.mxu0 %v3600
    %5507 = vmatpush1.bf16.msra.mxu0 %v3599
    %5508 = vmatprep.subr.bf16.mxu0 %v3604
    %5509 = vmatpush1.bf16.msra.mxu0 %v3603
    %5510 = vmatprep.subr.bf16.mxu0 %v3608
    %5511 = vmatpush1.bf16.msra.mxu0 %v3607
    %5512 = vmatprep.subr.bf16.mxu0 %v3612
    %5513 = vmatpush1.bf16.msra.mxu0 %v3611
    %5514 = vmatprep.subr.bf16.mxu0 %v3616
    %5515 = vmatpush1.bf16.msra.mxu0 %v3615
    %5516 = vmatprep.subr.bf16.mxu0 %v3620
    %5517 = vmatpush1.bf16.msra.mxu0 %v3619
    %5518 = vmatprep.subr.bf16.mxu0 %v3624
    %5519 = vmatpush1.bf16.msra.mxu0 %v3623
    %5520 = vmatprep.subr.bf16.mxu0 %v3628
    %5521 = vmatpush1.bf16.msra.mxu0 %v3627
    %5522 = vmatprep.subr.bf16.mxu0 %v3632
    %5523 = vmatpush1.bf16.msra.mxu0 %v3631
    %5524 = vmatprep.subr.bf16.mxu0 %v3636
    %5525 = vmatpush1.bf16.msra.mxu0 %v3635
    %5526 = vmatprep.subr.bf16.mxu0 %v3640
    %5527 = vmatpush1.bf16.msra.mxu0 %v3639
    %5528 = vmatprep.subr.bf16.mxu0 %v3644
    %5529 = vmatpush1.bf16.msra.mxu0 %v3643
    %5530 = vmatprep.subr.bf16.mxu0 %v3648
    %5531 = vmatpush1.bf16.msra.mxu0 %v3647
    %5532 = vmatprep.subr.bf16.mxu0 %v3652
    %5533 = vmatpush1.bf16.msra.mxu0 %v3651
    %5534 = vmatprep.mubr.bf16.mxu0 %v928
    %5535 = vmatmul.mubr.bf16.gmra.mrb[0].mxu0 %v927
    %v5536 = vpop.f32.mrb[0].mxu0
    %v5537 = vadd.f32 %v5496, %v5536
    %v5538 = vpop.f32.mrb[0].mxu0
    %v5539 = vadd.f32 %v5498, %v5538
    %v5540 = vpop.f32.mrb[0].mxu0
    %v5541 = vpop.f32.mrb[0].mxu0
    %5542 = vdwg.mxu0
    %5543 = vmatprep.subr.bf16.mxu0 %v3656
    %5544 = vmatpush1.bf16.msra.mxu0 %v3655
    %5545 = vmatprep.subr.bf16.mxu0 %v3660
    %5546 = vmatpush1.bf16.msra.mxu0 %v3659
    %5547 = vmatprep.subr.bf16.mxu0 %v3664
    %5548 = vmatpush1.bf16.msra.mxu0 %v3663
    %5549 = vmatprep.subr.bf16.mxu0 %v3668
    %5550 = vmatpush1.bf16.msra.mxu0 %v3667
    %5551 = vmatprep.subr.bf16.mxu0 %v3672
    %5552 = vmatpush1.bf16.msra.mxu0 %v3671
    %5553 = vmatprep.subr.bf16.mxu0 %v3676
    %5554 = vmatpush1.bf16.msra.mxu0 %v3675
    %5555 = vmatprep.subr.bf16.mxu0 %v3680
    %5556 = vmatpush1.bf16.msra.mxu0 %v3679
    %5557 = vmatprep.subr.bf16.mxu0 %v3684
    %5558 = vmatpush1.bf16.msra.mxu0 %v3683
    %5559 = vmatprep.subr.bf16.mxu0 %v3688
    %5560 = vmatpush1.bf16.msra.mxu0 %v3687
    %5561 = vmatprep.subr.bf16.mxu0 %v3692
    %5562 = vmatpush1.bf16.msra.mxu0 %v3691
    %5563 = vmatprep.subr.bf16.mxu0 %v3696
    %5564 = vmatpush1.bf16.msra.mxu0 %v3695
    %5565 = vmatprep.subr.bf16.mxu0 %v3700
    %5566 = vmatpush1.bf16.msra.mxu0 %v3699
    %5567 = vmatprep.subr.bf16.mxu0 %v3704
    %5568 = vmatpush1.bf16.msra.mxu0 %v3703
    %5569 = vmatprep.subr.bf16.mxu0 %v3708
    %5570 = vmatpush1.bf16.msra.mxu0 %v3707
    %5571 = vmatprep.subr.bf16.mxu0 %v3712
    %5572 = vmatpush1.bf16.msra.mxu0 %v3711
    %5573 = vmatprep.subr.bf16.mxu0 %v3716
    %5574 = vmatpush1.bf16.msra.mxu0 %v3715
    %5575 = vmatprep.mubr.bf16.mxu0 %v930
    %5576 = vmatmul.mubr.bf16.gmra.mrb[0].mxu0 %v929
    %v5577 = vpop.f32.mrb[0].mxu0
    %v5578 = vadd.f32 %v5537, %v5577
    %v5579 = vpop.f32.mrb[0].mxu0
    %v5580 = vadd.f32 %v5539, %v5579
    %v5581 = vpop.f32.mrb[0].mxu0
    %v5582 = vpop.f32.mrb[0].mxu0
    %5583 = vdwg.mxu0
    %5584 = vmatprep.subr.bf16.mxu0 %v3720
    %5585 = vmatpush1.bf16.msra.mxu0 %v3719
    %5586 = vmatprep.subr.bf16.mxu0 %v3724
    %5587 = vmatpush1.bf16.msra.mxu0 %v3723
    %5588 = vmatprep.subr.bf16.mxu0 %v3728
    %5589 = vmatpush1.bf16.msra.mxu0 %v3727
    %5590 = vmatprep.subr.bf16.mxu0 %v3732
    %5591 = vmatpush1.bf16.msra.mxu0 %v3731
    %5592 = vmatprep.subr.bf16.mxu0 %v3736
    %5593 = vmatpush1.bf16.msra.mxu0 %v3735
    %5594 = vmatprep.subr.bf16.mxu0 %v3740
    %5595 = vmatpush1.bf16.msra.mxu0 %v3739
    %5596 = vmatprep.subr.bf16.mxu0 %v3744
    %5597 = vmatpush1.bf16.msra.mxu0 %v3743
    %5598 = vmatprep.subr.bf16.mxu0 %v3748
    %5599 = vmatpush1.bf16.msra.mxu0 %v3747
    %5600 = vmatprep.subr.bf16.mxu0 %v3752
    %5601 = vmatpush1.bf16.msra.mxu0 %v3751
    %5602 = vmatprep.subr.bf16.mxu0 %v3756
    %5603 = vmatpush1.bf16.msra.mxu0 %v3755
    %5604 = vmatprep.subr.bf16.mxu0 %v3760
    %5605 = vmatpush1.bf16.msra.mxu0 %v3759
    %5606 = vmatprep.subr.bf16.mxu0 %v3764
    %5607 = vmatpush1.bf16.msra.mxu0 %v3763
    %5608 = vmatprep.subr.bf16.mxu0 %v3768
    %5609 = vmatpush1.bf16.msra.mxu0 %v3767
    %5610 = vmatprep.subr.bf16.mxu0 %v3772
    %5611 = vmatpush1.bf16.msra.mxu0 %v3771
    %5612 = vmatprep.subr.bf16.mxu0 %v3776
    %5613 = vmatpush1.bf16.msra.mxu0 %v3775
    %5614 = vmatprep.subr.bf16.mxu0 %v3780
    %5615 = vmatpush1.bf16.msra.mxu0 %v3779
    %5616 = vmatprep.mubr.bf16.mxu0 %v932
    %5617 = vmatmul.mubr.bf16.gmra.mrb[0].mxu0 %v931
    %v5618 = vpop.f32.mrb[0].mxu0
    %v5619 = vadd.f32 %v5578, %v5618
    %v5620 = vpop.f32.mrb[0].mxu0
    %v5621 = vadd.f32 %v5580, %v5620
    %v5622 = vpop.f32.mrb[0].mxu0
    %v5623 = vpop.f32.mrb[0].mxu0
    %5624 = vdwg.mxu0
    %5625 = vmatprep.subr.bf16.mxu0 %v3784
    %5626 = vmatpush1.bf16.msra.mxu0 %v3783
    %5627 = vmatprep.subr.bf16.mxu0 %v3788
    %5628 = vmatpush1.bf16.msra.mxu0 %v3787
    %5629 = vmatprep.subr.bf16.mxu0 %v3792
    %5630 = vmatpush1.bf16.msra.mxu0 %v3791
    %5631 = vmatprep.subr.bf16.mxu0 %v3796
    %5632 = vmatpush1.bf16.msra.mxu0 %v3795
    %5633 = vmatprep.subr.bf16.mxu0 %v3800
    %5634 = vmatpush1.bf16.msra.mxu0 %v3799
    %5635 = vmatprep.subr.bf16.mxu0 %v3804
    %5636 = vmatpush1.bf16.msra.mxu0 %v3803
    %5637 = vmatprep.subr.bf16.mxu0 %v3808
    %5638 = vmatpush1.bf16.msra.mxu0 %v3807
    %5639 = vmatprep.subr.bf16.mxu0 %v3812
    %5640 = vmatpush1.bf16.msra.mxu0 %v3811
    %5641 = vmatprep.subr.bf16.mxu0 %v3816
    %5642 = vmatpush1.bf16.msra.mxu0 %v3815
    %5643 = vmatprep.subr.bf16.mxu0 %v3820
    %5644 = vmatpush1.bf16.msra.mxu0 %v3819
    %5645 = vmatprep.subr.bf16.mxu0 %v3824
    %5646 = vmatpush1.bf16.msra.mxu0 %v3823
    %5647 = vmatprep.subr.bf16.mxu0 %v3828
    %5648 = vmatpush1.bf16.msra.mxu0 %v3827
    %5649 = vmatprep.subr.bf16.mxu0 %v3832
    %5650 = vmatpush1.bf16.msra.mxu0 %v3831
    %5651 = vmatprep.subr.bf16.mxu0 %v3836
    %5652 = vmatpush1.bf16.msra.mxu0 %v3835
    %5653 = vmatprep.subr.bf16.mxu0 %v3840
    %5654 = vmatpush1.bf16.msra.mxu0 %v3839
    %5655 = vmatprep.subr.bf16.mxu0 %v3844
    %5656 = vmatpush1.bf16.msra.mxu0 %v3843
    %5657 = vmatprep.mubr.bf16.mxu0 %v934
    %5658 = vmatmul.mubr.bf16.gmra.mrb[0].mxu0 %v933
    %v5659 = vpop.f32.mrb[0].mxu0
    %v5660 = vadd.f32 %v5619, %v5659
    %v5661 = vpop.f32.mrb[0].mxu0
    %v5662 = vadd.f32 %v5621, %v5661
    %v5663 = vpop.f32.mrb[0].mxu0
    %v5664 = vpop.f32.mrb[0].mxu0
    %5665 = vdwg.mxu0
    %5666 = vmatprep.subr.bf16.mxu0 %v3848
    %5667 = vmatpush1.bf16.msra.mxu0 %v3847
    %5668 = vmatprep.subr.bf16.mxu0 %v3852
    %5669 = vmatpush1.bf16.msra.mxu0 %v3851
    %5670 = vmatprep.subr.bf16.mxu0 %v3856
    %5671 = vmatpush1.bf16.msra.mxu0 %v3855
    %5672 = vmatprep.subr.bf16.mxu0 %v3860
    %5673 = vmatpush1.bf16.msra.mxu0 %v3859
    %5674 = vmatprep.subr.bf16.mxu0 %v3864
    %5675 = vmatpush1.bf16.msra.mxu0 %v3863
    %5676 = vmatprep.subr.bf16.mxu0 %v3868
    %5677 = vmatpush1.bf16.msra.mxu0 %v3867
    %5678 = vmatprep.subr.bf16.mxu0 %v3872
    %5679 = vmatpush1.bf16.msra.mxu0 %v3871
    %5680 = vmatprep.subr.bf16.mxu0 %v3876
    %5681 = vmatpush1.bf16.msra.mxu0 %v3875
    %5682 = vmatprep.subr.bf16.mxu0 %v3880
    %5683 = vmatpush1.bf16.msra.mxu0 %v3879
    %5684 = vmatprep.subr.bf16.mxu0 %v3884
    %5685 = vmatpush1.bf16.msra.mxu0 %v3883
    %5686 = vmatprep.subr.bf16.mxu0 %v3888
    %5687 = vmatpush1.bf16.msra.mxu0 %v3887
    %5688 = vmatprep.subr.bf16.mxu0 %v3892
    %5689 = vmatpush1.bf16.msra.mxu0 %v3891
    %5690 = vmatprep.subr.bf16.mxu0 %v3896
    %5691 = vmatpush1.bf16.msra.mxu0 %v3895
    %5692 = vmatprep.subr.bf16.mxu0 %v3900
    %5693 = vmatpush1.bf16.msra.mxu0 %v3899
    %5694 = vmatprep.subr.bf16.mxu0 %v3904
    %5695 = vmatpush1.bf16.msra.mxu0 %v3903
    %5696 = vmatprep.subr.bf16.mxu0 %v3908
    %5697 = vmatpush1.bf16.msra.mxu0 %v3907
    %5698 = vmatprep.mubr.bf16.mxu0 %v936
    %5699 = vmatmul.mubr.bf16.gmra.mrb[0].mxu0 %v935
    %v5700 = vpop.f32.mrb[0].mxu0
    %v5701 = vadd.f32 %v5660, %v5700
    %v5702 = vpop.f32.mrb[0].mxu0
    %v5703 = vadd.f32 %v5662, %v5702
    %v5704 = vpop.f32.mrb[0].mxu0
    %v5705 = vpop.f32.mrb[0].mxu0
    %5706 = vdwg.mxu0
    %5707 = vmatprep.subr.bf16.mxu0 %v3912
    %5708 = vmatpush1.bf16.msra.mxu0 %v3911
    %5709 = vmatprep.subr.bf16.mxu0 %v3916
    %5710 = vmatpush1.bf16.msra.mxu0 %v3915
    %5711 = vmatprep.subr.bf16.mxu0 %v3920
    %5712 = vmatpush1.bf16.msra.mxu0 %v3919
    %5713 = vmatprep.subr.bf16.mxu0 %v3924
    %5714 = vmatpush1.bf16.msra.mxu0 %v3923
    %5715 = vmatprep.subr.bf16.mxu0 %v3928
    %5716 = vmatpush1.bf16.msra.mxu0 %v3927
    %5717 = vmatprep.subr.bf16.mxu0 %v3932
    %5718 = vmatpush1.bf16.msra.mxu0 %v3931
    %5719 = vmatprep.subr.bf16.mxu0 %v3936
    %5720 = vmatpush1.bf16.msra.mxu0 %v3935
    %5721 = vmatprep.subr.bf16.mxu0 %v3940
    %5722 = vmatpush1.bf16.msra.mxu0 %v3939
    %5723 = vmatprep.subr.bf16.mxu0 %v3944
    %5724 = vmatpush1.bf16.msra.mxu0 %v3943
    %5725 = vmatprep.subr.bf16.mxu0 %v3948
    %5726 = vmatpush1.bf16.msra.mxu0 %v3947
    %5727 = vmatprep.subr.bf16.mxu0 %v3952
    %5728 = vmatpush1.bf16.msra.mxu0 %v3951
    %5729 = vmatprep.subr.bf16.mxu0 %v3956
    %5730 = vmatpush1.bf16.msra.mxu0 %v3955
    %5731 = vmatprep.subr.bf16.mxu0 %v3960
    %5732 = vmatpush1.bf16.msra.mxu0 %v3959
    %5733 = vmatprep.subr.bf16.mxu0 %v3964
    %5734 = vmatpush1.bf16.msra.mxu0 %v3963
    %5735 = vmatprep.subr.bf16.mxu0 %v3968
    %5736 = vmatpush1.bf16.msra.mxu0 %v3967
    %5737 = vmatprep.subr.bf16.mxu0 %v3972
    %5738 = vmatpush1.bf16.msra.mxu0 %v3971
    %5739 = vmatprep.mubr.bf16.mxu0 %v938
    %5740 = vmatmul.mubr.bf16.gmra.mrb[0].mxu0 %v937
    %v5741 = vpop.f32.mrb[0].mxu0
    %v5742 = vadd.f32 %v5701, %v5741
    %v5743 = vpop.f32.mrb[0].mxu0
    %v5744 = vadd.f32 %v5703, %v5743
    %v5745 = vpop.f32.mrb[0].mxu0
    %v5746 = vpop.f32.mrb[0].mxu0
    %5747 = vdwg.mxu0
    %5748 = vmatprep.subr.bf16.mxu0 %v3976
    %5749 = vmatpush1.bf16.msra.mxu0 %v3975
    %5750 = vmatprep.subr.bf16.mxu0 %v3980
    %5751 = vmatpush1.bf16.msra.mxu0 %v3979
    %5752 = vmatprep.subr.bf16.mxu0 %v3984
    %5753 = vmatpush1.bf16.msra.mxu0 %v3983
    %5754 = vmatprep.subr.bf16.mxu0 %v3988
    %5755 = vmatpush1.bf16.msra.mxu0 %v3987
    %5756 = vmatprep.subr.bf16.mxu0 %v3992
    %5757 = vmatpush1.bf16.msra.mxu0 %v3991
    %5758 = vmatprep.subr.bf16.mxu0 %v3996
    %5759 = vmatpush1.bf16.msra.mxu0 %v3995
    %5760 = vmatprep.subr.bf16.mxu0 %v4000
    %5761 = vmatpush1.bf16.msra.mxu0 %v3999
    %5762 = vmatprep.subr.bf16.mxu0 %v4004
    %5763 = vmatpush1.bf16.msra.mxu0 %v4003
    %5764 = vmatprep.subr.bf16.mxu0 %v4008
    %5765 = vmatpush1.bf16.msra.mxu0 %v4007
    %5766 = vmatprep.subr.bf16.mxu0 %v4012
    %5767 = vmatpush1.bf16.msra.mxu0 %v4011
    %5768 = vmatprep.subr.bf16.mxu0 %v4016
    %5769 = vmatpush1.bf16.msra.mxu0 %v4015
    %5770 = vmatprep.subr.bf16.mxu0 %v4020
    %5771 = vmatpush1.bf16.msra.mxu0 %v4019
    %5772 = vmatprep.subr.bf16.mxu0 %v4024
    %5773 = vmatpush1.bf16.msra.mxu0 %v4023
    %5774 = vmatprep.subr.bf16.mxu0 %v4028
    %5775 = vmatpush1.bf16.msra.mxu0 %v4027
    %5776 = vmatprep.subr.bf16.mxu0 %v4032
    %5777 = vmatpush1.bf16.msra.mxu0 %v4031
    %5778 = vmatprep.subr.bf16.mxu0 %v4036
    %5779 = vmatpush1.bf16.msra.mxu0 %v4035
    %5780 = vmatprep.mubr.bf16.mxu0 %v940
    %5781 = vmatmul.mubr.bf16.gmra.mrb[0].mxu0 %v939
    %v5782 = vpop.f32.mrb[0].mxu0
    %v5783 = vadd.f32 %v5742, %v5782
    %v5784 = vpop.f32.mrb[0].mxu0
    %v5785 = vadd.f32 %v5744, %v5784
    %v5786 = vpop.f32.mrb[0].mxu0
    %v5787 = vpop.f32.mrb[0].mxu0
    %5788 = vdwg.mxu0
    %v5789 = vrot.slane %v5291, 4
    %v5790 = vadd.f32 %v5291, %v5789
    %v5791 = vrot.slane %v5790, 2
    %v5792 = vadd.f32 %v5790, %v5791
    %v5793 = vrot.slane %v5792, 1
    %v5794 = vadd.f32 %v5792, %v5793
    %v5795 = vrot.slane %v5293, 4
    %v5796 = vadd.f32 %v5293, %v5795
    %v5797 = vrot.slane %v5796, 2
    %v5798 = vadd.f32 %v5796, %v5797
    %v5799 = vrot.slane %v5798, 1
    %v5800 = vadd.f32 %v5798, %v5799
    %v5801 = vrot.slane %v5783, 4
    %v5802 = vadd.f32 %v5783, %v5801
    %v5803 = vrot.slane %v5802, 2
    %v5804 = vadd.f32 %v5802, %v5803
    %v5805 = vrot.slane %v5804, 1
    %v5806 = vadd.f32 %v5804, %v5805
    %v5807 = vrot.slane %v5785, 4
    %v5808 = vadd.f32 %v5785, %v5807
    %v5809 = vrot.slane %v5808, 2
    %v5810 = vadd.f32 %v5808, %v5809
    %v5811 = vrot.slane %v5810, 1
    %v5812 = vadd.f32 %v5810, %v5811
    %v5813 = vrcp.pop 8.0
    %v5814 = vmul.f32 %v5794, %v5813
    %v5815 = vmul.f32 %v5800, %v5813
    %v5816 = vmul.f32 %v5806, %v5813
    %v5817 = vmul.f32 %v5812, %v5813
    %v5818 = vsub.f32 %v5291, %v5814
    %v5819 = vsub.f32 %v5293, %v5815
    %v5820 = vsub.f32 %v5783, %v5816
    %v5821 = vsub.f32 %v5785, %v5817
    %v5822 = vmul.f32 %v5818, %v5818
    %v5823 = vmul.f32 %v5819, %v5819
    %v5824 = vmul.f32 %v5820, %v5820
    %v5825 = vmul.f32 %v5821, %v5821
    %v5826 = vrot.slane %v5822, 4
    %v5827 = vadd.f32 %v5822, %v5826
    %v5828 = vrot.slane %v5827, 2
    %v5829 = vadd.f32 %v5827, %v5828
    %v5830 = vrot.slane %v5829, 1
    %v5831 = vadd.f32 %v5829, %v5830
    %v5832 = vrot.slane %v5823, 4
    %v5833 = vadd.f32 %v5823, %v5832
    %v5834 = vrot.slane %v5833, 2
    %v5835 = vadd.f32 %v5833, %v5834
    %v5836 = vrot.slane %v5835, 1
    %v5837 = vadd.f32 %v5835, %v5836
    %v5838 = vrot.slane %v5824, 4
    %v5839 = vadd.f32 %v5824, %v5838
    %v5840 = vrot.slane %v5839, 2
    %v5841 = vadd.f32 %v5839, %v5840
    %v5842 = vrot.slane %v5841, 1
    %v5843 = vadd.f32 %v5841, %v5842
    %v5844 = vrot.slane %v5825, 4
    %v5845 = vadd.f32 %v5825, %v5844
    %v5846 = vrot.slane %v5845, 2
    %v5847 = vadd.f32 %v5845, %v5846
    %v5848 = vrot.slane %v5847, 1
    %v5849 = vadd.f32 %v5847, %v5848
    %v5850 = vmul.f32 %v5831, %v5813
    %v5851 = vmul.f32 %v5837, %v5813
    %v5852 = vmul.f32 %v5843, %v5813
    %v5853 = vmul.f32 %v5849, %v5813
    %v5854 = vadd.f32 %v5850, 1e-05
    %v5855 = vadd.f32 %v5851, 1e-05
    %v5856 = vadd.f32 %v5852, 1e-05
    %v5857 = vadd.f32 %v5853, 1e-05
    %v5858 = vrsqrt.pop %v5854
    %v5859 = vrsqrt.pop %v5855
    %v5860 = vrsqrt.pop %v5856
    %v5861 = vrsqrt.pop %v5857
    %v5862 = vmul.f32 %v80, %v5858
    %v5863 = vmul.f32 %v81, %v5859
    %v5864 = vmul.f32 %v82, %v5860
    %v5865 = vmul.f32 %v83, %v5861
    %v5866 = vmul.f32 %v5814, %v5862
    %v5867 = vmul.f32 %v5815, %v5863
    %v5868 = vmul.f32 %v5816, %v5864
    %v5869 = vmul.f32 %v5817, %v5865
    %v5874 = vrot.slane %v5866, 7
    %v5875 = vrot.slane %v5867, 7
    %v5876 = vrot.slane %v5868, 7
    %v5877 = vrot.slane %v5869, 7
    %v5882 = vsub.f32 %v80, %v5874
    %v5883 = vsub.f32 %v81, %v5875
    %v5884 = vsub.f32 %v82, %v5876
    %v5885 = vsub.f32 %v83, %v5877
    %v5886 = vlaneseq
    %v5887 = vshrl.u32 %v5886, 7
    %v5888 = vsub.s32 1, %v5887
    %v5889 = vrot.slane %v5862, %v5888
    %v5890 = vlaneseq
    %v5891 = vshrl.u32 %v5890, 7
    %v5892 = vsub.s32 1, %v5891
    %v5893 = vrot.slane %v5863, %v5892
    %v5894 = vlaneseq
    %v5895 = vshrl.u32 %v5894, 7
    %v5896 = vsub.s32 1, %v5895
    %v5897 = vrot.slane %v5864, %v5896
    %v5898 = vlaneseq
    %v5899 = vshrl.u32 %v5898, 7
    %v5900 = vsub.s32 1, %v5899
    %v5901 = vrot.slane %v5865, %v5900
    %v5902 = vmul.f32 %v5291, %v5889
    %v5903 = vmul.f32 %v5293, %v5893
    %v5904 = vmul.f32 %v5783, %v5897
    %v5905 = vmul.f32 %v5785, %v5901
    %v5906 = vlaneseq
    %v5907 = vshrl.u32 %v5906, 7
    %v5908 = vsub.s32 2, %v5907
    %v5909 = vrot.slane %v5882, %v5908
    %v5910 = vlaneseq
    %v5911 = vshrl.u32 %v5910, 7
    %v5912 = vsub.s32 2, %v5911
    %v5913 = vrot.slane %v5883, %v5912
    %v5914 = vlaneseq
    %v5915 = vshrl.u32 %v5914, 7
    %v5916 = vsub.s32 2, %v5915
    %v5917 = vrot.slane %v5884, %v5916
    %v5918 = vlaneseq
    %v5919 = vshrl.u32 %v5918, 7
    %v5920 = vsub.s32 2, %v5919
    %v5921 = vrot.slane %v5885, %v5920
    %v5922 = vadd.f32 %v5902, %v5909
    %v5923 = vadd.f32 %v5903, %v5913
    %v5924 = vadd.f32 %v5904, %v5917
    %v5925 = vadd.f32 %v5905, %v5921
    %v5926 = vmax.f32 %v5922, 0.0
    %v5927 = vmax.f32 %v5923, 0.0
    %v5928 = vmax.f32 %v5924, 0.0
    %v5929 = vmax.f32 %v5925, 0.0
    %v5930 = vpack.c.bf16 %v5926, %v5926
    %v5931 = vpack.c.bf16 %v5927, %v5927
    %v5932 = vpack.c.bf16 %v5928, %v5928
    %v5933 = vpack.c.bf16 %v5929, %v5929
    %v5934 = vld [vmem:[#allocation5] sm:$0xff]
    %v5935 = vld [vmem:[#allocation5 + $0x8] sm:$0xff]
    %v5936 = vld [vmem:[#allocation5 + $0x10] sm:$0xff]
    %v5937 = vld [vmem:[#allocation5 + $0x18] sm:$0xff]
    %v5938 = vld [vmem:[#allocation5 + $0x20] sm:$0xff]
    %v5939 = vld [vmem:[#allocation5 + $0x28] sm:$0xff]
    %v5940 = vld [vmem:[#allocation5 + $0x30] sm:$0xff]
    %v5941 = vld [vmem:[#allocation5 + $0x38] sm:$0xff]
    %v5942 = vld [vmem:[#allocation5 + $0x40] sm:$0xff]
    %v5943 = vld [vmem:[#allocation5 + $0x48] sm:$0xff]
    %v5944 = vld [vmem:[#allocation5 + $0x50] sm:$0xff]
    %v5945 = vld [vmem:[#allocation5 + $0x58] sm:$0xff]
    %v5946 = vld [vmem:[#allocation5 + $0x60] sm:$0xff]
    %v5947 = vld [vmem:[#allocation5 + $0x68] sm:$0xff]
    %v5948 = vld [vmem:[#allocation5 + $0x70] sm:$0xff]
    %v5949 = vld [vmem:[#allocation5 + $0x78] sm:$0xff]
    %v5950 = vld [vmem:[#allocation5 + $0x80] sm:$0xff]
    %v5951 = vld [vmem:[#allocation5 + $0x88] sm:$0xff]
    %v5952 = vld [vmem:[#allocation5 + $0x90] sm:$0xff]
    %v5953 = vld [vmem:[#allocation5 + $0x98] sm:$0xff]
    %v5954 = vld [vmem:[#allocation5 + $0xa0] sm:$0xff]
    %v5955 = vld [vmem:[#allocation5 + $0xa8] sm:$0xff]
    %v5956 = vld [vmem:[#allocation5 + $0xb0] sm:$0xff]
    %v5957 = vld [vmem:[#allocation5 + $0xb8] sm:$0xff]
    %v5958 = vld [vmem:[#allocation5 + $0xc0] sm:$0xff]
    %v5959 = vld [vmem:[#allocation5 + $0xc8] sm:$0xff]
    %v5960 = vld [vmem:[#allocation5 + $0xd0] sm:$0xff]
    %v5961 = vld [vmem:[#allocation5 + $0xd8] sm:$0xff]
    %v5962 = vld [vmem:[#allocation5 + $0xe0] sm:$0xff]
    %v5963 = vld [vmem:[#allocation5 + $0xe8] sm:$0xff]
    %v5964 = vld [vmem:[#allocation5 + $0xf0] sm:$0xff]
    %v5965 = vld [vmem:[#allocation5 + $0xf8] sm:$0xff]
    %v5966 = vld [vmem:[#allocation5 + $0x100] sm:$0xff]
    %v5967 = vld [vmem:[#allocation5 + $0x108] sm:$0xff]
    %v5968 = vld [vmem:[#allocation5 + $0x110] sm:$0xff]
    %v5969 = vld [vmem:[#allocation5 + $0x118] sm:$0xff]
    %v5970 = vld [vmem:[#allocation5 + $0x120] sm:$0xff]
    %v5971 = vld [vmem:[#allocation5 + $0x128] sm:$0xff]
    %v5972 = vld [vmem:[#allocation5 + $0x130] sm:$0xff]
    %v5973 = vld [vmem:[#allocation5 + $0x138] sm:$0xff]
    %v5974 = vld [vmem:[#allocation5 + $0x140] sm:$0xff]
    %v5975 = vld [vmem:[#allocation5 + $0x148] sm:$0xff]
    %v5976 = vld [vmem:[#allocation5 + $0x150] sm:$0xff]
    %v5977 = vld [vmem:[#allocation5 + $0x158] sm:$0xff]
    %v5978 = vld [vmem:[#allocation5 + $0x160] sm:$0xff]
    %v5979 = vld [vmem:[#allocation5 + $0x168] sm:$0xff]
    %v5980 = vld [vmem:[#allocation5 + $0x170] sm:$0xff]
    %v5981 = vld [vmem:[#allocation5 + $0x178] sm:$0xff]
    %v5982 = vld [vmem:[#allocation5 + $0x180] sm:$0xff]
    %v5983 = vld [vmem:[#allocation5 + $0x188] sm:$0xff]
    %v5984 = vld [vmem:[#allocation5 + $0x190] sm:$0xff]
    %v5985 = vld [vmem:[#allocation5 + $0x198] sm:$0xff]
    %v5986 = vld [vmem:[#allocation5 + $0x1a0] sm:$0xff]
    %v5987 = vld [vmem:[#allocation5 + $0x1a8] sm:$0xff]
    %v5988 = vld [vmem:[#allocation5 + $0x1b0] sm:$0xff]
    %v5989 = vld [vmem:[#allocation5 + $0x1b8] sm:$0xff]
    %v5990 = vld [vmem:[#allocation5 + $0x1c0] sm:$0xff]
    %v5991 = vld [vmem:[#allocation5 + $0x1c8] sm:$0xff]
    %v5992 = vld [vmem:[#allocation5 + $0x1d0] sm:$0xff]
    %v5993 = vld [vmem:[#allocation5 + $0x1d8] sm:$0xff]
    %v5994 = vld [vmem:[#allocation5 + $0x1e0] sm:$0xff]
    %v5995 = vld [vmem:[#allocation5 + $0x1e8] sm:$0xff]
    %v5996 = vld [vmem:[#allocation5 + $0x1f0] sm:$0xff]
    %v5997 = vld [vmem:[#allocation5 + $0x1f8] sm:$0xff]
    %v5998 = vlaneseq
    %v5999 = vshrl.u32 %v5998, 7
    %v6000 = vsub.s32 3, %v5999
    %v6001 = vrot.slane %v80, %v6000
    %v6002 = vlaneseq
    %v6003 = vshrl.u32 %v6002, 7
    %v6004 = vsub.s32 3, %v6003
    %v6005 = vrot.slane %v81, %v6004
    %v6070 = vunpack.c.l.b16 %v5934
    %v6071 = vunpack.c.h.b16 %v5934
    %v6072 = vunpack.c.l.b16 %v5935
    %v6073 = vunpack.c.h.b16 %v5935
    %v6074 = vunpack.c.l.b16 %v5936
    %v6075 = vunpack.c.h.b16 %v5936
    %v6076 = vunpack.c.l.b16 %v5937
    %v6077 = vunpack.c.h.b16 %v5937
    %v6078 = vunpack.c.l.b16 %v5938
    %v6079 = vunpack.c.h.b16 %v5938
    %v6080 = vunpack.c.l.b16 %v5939
    %v6081 = vunpack.c.h.b16 %v5939
    %v6082 = vunpack.c.l.b16 %v5940
    %v6083 = vunpack.c.h.b16 %v5940
    %v6084 = vunpack.c.l.b16 %v5941
    %v6085 = vunpack.c.h.b16 %v5941
    %v6086 = vunpack.c.l.b16 %v5942
    %v6087 = vunpack.c.h.b16 %v5942
    %v6088 = vunpack.c.l.b16 %v5943
    %v6089 = vunpack.c.h.b16 %v5943
    %v6090 = vunpack.c.l.b16 %v5944
    %v6091 = vunpack.c.h.b16 %v5944
    %v6092 = vunpack.c.l.b16 %v5945
    %v6093 = vunpack.c.h.b16 %v5945
    %v6094 = vunpack.c.l.b16 %v5946
    %v6095 = vunpack.c.h.b16 %v5946
    %v6096 = vunpack.c.l.b16 %v5947
    %v6097 = vunpack.c.h.b16 %v5947
    %v6098 = vunpack.c.l.b16 %v5948
    %v6099 = vunpack.c.h.b16 %v5948
    %v6100 = vunpack.c.l.b16 %v5949
    %v6101 = vunpack.c.h.b16 %v5949
    %v6102 = vunpack.c.l.b16 %v5950
    %v6103 = vunpack.c.h.b16 %v5950
    %v6104 = vunpack.c.l.b16 %v5951
    %v6105 = vunpack.c.h.b16 %v5951
    %v6106 = vunpack.c.l.b16 %v5952
    %v6107 = vunpack.c.h.b16 %v5952
    %v6108 = vunpack.c.l.b16 %v5953
    %v6109 = vunpack.c.h.b16 %v5953
    %v6110 = vunpack.c.l.b16 %v5954
    %v6111 = vunpack.c.h.b16 %v5954
    %v6112 = vunpack.c.l.b16 %v5955
    %v6113 = vunpack.c.h.b16 %v5955
    %v6114 = vunpack.c.l.b16 %v5956
    %v6115 = vunpack.c.h.b16 %v5956
    %v6116 = vunpack.c.l.b16 %v5957
    %v6117 = vunpack.c.h.b16 %v5957
    %v6118 = vunpack.c.l.b16 %v5958
    %v6119 = vunpack.c.h.b16 %v5958
    %v6120 = vunpack.c.l.b16 %v5959
    %v6121 = vunpack.c.h.b16 %v5959
    %v6122 = vunpack.c.l.b16 %v5960
    %v6123 = vunpack.c.h.b16 %v5960
    %v6124 = vunpack.c.l.b16 %v5961
    %v6125 = vunpack.c.h.b16 %v5961
    %v6126 = vunpack.c.l.b16 %v5962
    %v6127 = vunpack.c.h.b16 %v5962
    %v6128 = vunpack.c.l.b16 %v5963
    %v6129 = vunpack.c.h.b16 %v5963
    %v6130 = vunpack.c.l.b16 %v5964
    %v6131 = vunpack.c.h.b16 %v5964
    %v6132 = vunpack.c.l.b16 %v5965
    %v6133 = vunpack.c.h.b16 %v5965
    %v6134 = vunpack.c.l.b16 %v5966
    %v6135 = vunpack.c.h.b16 %v5966
    %v6136 = vunpack.c.l.b16 %v5967
    %v6137 = vunpack.c.h.b16 %v5967
    %v6138 = vunpack.c.l.b16 %v5968
    %v6139 = vunpack.c.h.b16 %v5968
    %v6140 = vunpack.c.l.b16 %v5969
    %v6141 = vunpack.c.h.b16 %v5969
    %v6142 = vunpack.c.l.b16 %v5970
    %v6143 = vunpack.c.h.b16 %v5970
    %v6144 = vunpack.c.l.b16 %v5971
    %v6145 = vunpack.c.h.b16 %v5971
    %v6146 = vunpack.c.l.b16 %v5972
    %v6147 = vunpack.c.h.b16 %v5972
    %v6148 = vunpack.c.l.b16 %v5973
    %v6149 = vunpack.c.h.b16 %v5973
    %v6150 = vunpack.c.l.b16 %v5974
    %v6151 = vunpack.c.h.b16 %v5974
    %v6152 = vunpack.c.l.b16 %v5975
    %v6153 = vunpack.c.h.b16 %v5975
    %v6154 = vunpack.c.l.b16 %v5976
    %v6155 = vunpack.c.h.b16 %v5976
    %v6156 = vunpack.c.l.b16 %v5977
    %v6157 = vunpack.c.h.b16 %v5977
    %v6158 = vunpack.c.l.b16 %v5978
    %v6159 = vunpack.c.h.b16 %v5978
    %v6160 = vunpack.c.l.b16 %v5979
    %v6161 = vunpack.c.h.b16 %v5979
    %v6162 = vunpack.c.l.b16 %v5980
    %v6163 = vunpack.c.h.b16 %v5980
    %v6164 = vunpack.c.l.b16 %v5981
    %v6165 = vunpack.c.h.b16 %v5981
    %v6166 = vunpack.c.l.b16 %v5982
    %v6167 = vunpack.c.h.b16 %v5982
    %v6168 = vunpack.c.l.b16 %v5983
    %v6169 = vunpack.c.h.b16 %v5983
    %v6170 = vunpack.c.l.b16 %v5984
    %v6171 = vunpack.c.h.b16 %v5984
    %v6172 = vunpack.c.l.b16 %v5985
    %v6173 = vunpack.c.h.b16 %v5985
    %v6174 = vunpack.c.l.b16 %v5986
    %v6175 = vunpack.c.h.b16 %v5986
    %v6176 = vunpack.c.l.b16 %v5987
    %v6177 = vunpack.c.h.b16 %v5987
    %v6178 = vunpack.c.l.b16 %v5988
    %v6179 = vunpack.c.h.b16 %v5988
    %v6180 = vunpack.c.l.b16 %v5989
    %v6181 = vunpack.c.h.b16 %v5989
    %v6182 = vunpack.c.l.b16 %v5990
    %v6183 = vunpack.c.h.b16 %v5990
    %v6184 = vunpack.c.l.b16 %v5991
    %v6185 = vunpack.c.h.b16 %v5991
    %v6186 = vunpack.c.l.b16 %v5992
    %v6187 = vunpack.c.h.b16 %v5992
    %v6188 = vunpack.c.l.b16 %v5993
    %v6189 = vunpack.c.h.b16 %v5993
    %v6190 = vunpack.c.l.b16 %v5994
    %v6191 = vunpack.c.h.b16 %v5994
    %v6192 = vunpack.c.l.b16 %v5995
    %v6193 = vunpack.c.h.b16 %v5995
    %v6194 = vunpack.c.l.b16 %v5996
    %v6195 = vunpack.c.h.b16 %v5996
    %v6196 = vunpack.c.l.b16 %v5997
    %v6197 = vunpack.c.h.b16 %v5997
    %v6198 = vpack.c.b16 %v6072, %v6070
    %v6199 = vpack.c.b16 %v6073, %v6071
    %v6200 = vpack.c.b16 %v6076, %v6074
    %v6201 = vpack.c.b16 %v6077, %v6075
    %v6202 = vpack.c.b16 %v6080, %v6078
    %v6203 = vpack.c.b16 %v6081, %v6079
    %v6204 = vpack.c.b16 %v6084, %v6082
    %v6205 = vpack.c.b16 %v6085, %v6083
    %v6206 = vpack.c.b16 %v6088, %v6086
    %v6207 = vpack.c.b16 %v6089, %v6087
    %v6208 = vpack.c.b16 %v6092, %v6090
    %v6209 = vpack.c.b16 %v6093, %v6091
    %v6210 = vpack.c.b16 %v6096, %v6094
    %v6211 = vpack.c.b16 %v6097, %v6095
    %v6212 = vpack.c.b16 %v6100, %v6098
    %v6213 = vpack.c.b16 %v6101, %v6099
    %v6214 = vpack.c.b16 %v6104, %v6102
    %v6215 = vpack.c.b16 %v6105, %v6103
    %v6216 = vpack.c.b16 %v6108, %v6106
    %v6217 = vpack.c.b16 %v6109, %v6107
    %v6218 = vpack.c.b16 %v6112, %v6110
    %v6219 = vpack.c.b16 %v6113, %v6111
    %v6220 = vpack.c.b16 %v6116, %v6114
    %v6221 = vpack.c.b16 %v6117, %v6115
    %v6222 = vpack.c.b16 %v6120, %v6118
    %v6223 = vpack.c.b16 %v6121, %v6119
    %v6224 = vpack.c.b16 %v6124, %v6122
    %v6225 = vpack.c.b16 %v6125, %v6123
    %v6226 = vpack.c.b16 %v6128, %v6126
    %v6227 = vpack.c.b16 %v6129, %v6127
    %v6228 = vpack.c.b16 %v6132, %v6130
    %v6229 = vpack.c.b16 %v6133, %v6131
    %v6230 = vpack.c.b16 %v6136, %v6134
    %v6231 = vpack.c.b16 %v6137, %v6135
    %v6232 = vpack.c.b16 %v6140, %v6138
    %v6233 = vpack.c.b16 %v6141, %v6139
    %v6234 = vpack.c.b16 %v6144, %v6142
    %v6235 = vpack.c.b16 %v6145, %v6143
    %v6236 = vpack.c.b16 %v6148, %v6146
    %v6237 = vpack.c.b16 %v6149, %v6147
    %v6238 = vpack.c.b16 %v6152, %v6150
    %v6239 = vpack.c.b16 %v6153, %v6151
    %v6240 = vpack.c.b16 %v6156, %v6154
    %v6241 = vpack.c.b16 %v6157, %v6155
    %v6242 = vpack.c.b16 %v6160, %v6158
    %v6243 = vpack.c.b16 %v6161, %v6159
    %v6244 = vpack.c.b16 %v6164, %v6162
    %v6245 = vpack.c.b16 %v6165, %v6163
    %v6246 = vpack.c.b16 %v6168, %v6166
    %v6247 = vpack.c.b16 %v6169, %v6167
    %v6248 = vpack.c.b16 %v6172, %v6170
    %v6249 = vpack.c.b16 %v6173, %v6171
    %v6250 = vpack.c.b16 %v6176, %v6174
    %v6251 = vpack.c.b16 %v6177, %v6175
    %v6252 = vpack.c.b16 %v6180, %v6178
    %v6253 = vpack.c.b16 %v6181, %v6179
    %v6254 = vpack.c.b16 %v6184, %v6182
    %v6255 = vpack.c.b16 %v6185, %v6183
    %v6256 = vpack.c.b16 %v6188, %v6186
    %v6257 = vpack.c.b16 %v6189, %v6187
    %v6258 = vpack.c.b16 %v6192, %v6190
    %v6259 = vpack.c.b16 %v6193, %v6191
    %v6260 = vpack.c.b16 %v6196, %v6194
    %v6261 = vpack.c.b16 %v6197, %v6195
    %6326 = vmatprep.subr.bf16.mxu0 %v6199
    %6327 = vmatpush1.bf16.msra.mxu0 %v6198
    %6328 = vmatprep.subr.bf16.mxu0 %v6201
    %6329 = vmatpush1.bf16.msra.mxu0 %v6200
    %6330 = vmatprep.subr.bf16.mxu0 %v6203
    %6331 = vmatpush1.bf16.msra.mxu0 %v6202
    %6332 = vmatprep.subr.bf16.mxu0 %v6205
    %6333 = vmatpush1.bf16.msra.mxu0 %v6204
    %6334 = vmatprep.subr.bf16.mxu0 %v6207
    %6335 = vmatpush1.bf16.msra.mxu0 %v6206
    %6336 = vmatprep.subr.bf16.mxu0 %v6209
    %6337 = vmatpush1.bf16.msra.mxu0 %v6208
    %6338 = vmatprep.subr.bf16.mxu0 %v6211
    %6339 = vmatpush1.bf16.msra.mxu0 %v6210
    %6340 = vmatprep.subr.bf16.mxu0 %v6213
    %6341 = vmatpush1.bf16.msra.mxu0 %v6212
    %6342 = vmatprep.subr.bf16.mxu0 %v6215
    %6343 = vmatpush1.bf16.msra.mxu0 %v6214
    %6344 = vmatprep.subr.bf16.mxu0 %v6217
    %6345 = vmatpush1.bf16.msra.mxu0 %v6216
    %6346 = vmatprep.subr.bf16.mxu0 %v6219
    %6347 = vmatpush1.bf16.msra.mxu0 %v6218
    %6348 = vmatprep.subr.bf16.mxu0 %v6221
    %6349 = vmatpush1.bf16.msra.mxu0 %v6220
    %6350 = vmatprep.subr.bf16.mxu0 %v6223
    %6351 = vmatpush1.bf16.msra.mxu0 %v6222
    %6352 = vmatprep.subr.bf16.mxu0 %v6225
    %6353 = vmatpush1.bf16.msra.mxu0 %v6224
    %6354 = vmatprep.subr.bf16.mxu0 %v6227
    %6355 = vmatpush1.bf16.msra.mxu0 %v6226
    %6356 = vmatprep.subr.bf16.mxu0 %v6229
    %6357 = vmatpush1.bf16.msra.mxu0 %v6228
    %6358 = vmatprep.mubr.bf16.mxu0 %v5931
    %6359 = vmatmul.mubr.bf16.gmra.mrb[0].mxu0 %v5930
    %v6360 = vpop.f32.mrb[0].mxu0
    %v6361 = vadd.f32 %v6001, %v6360
    %v6362 = vpop.f32.mrb[0].mxu0
    %v6363 = vadd.f32 %v6005, %v6362
    %v6364 = vpop.f32.mrb[0].mxu0
    %v6365 = vpop.f32.mrb[0].mxu0
    %6366 = vdwg.mxu0
    %6367 = vmatprep.subr.bf16.mxu0 %v6231
    %6368 = vmatpush1.bf16.msra.mxu0 %v6230
    %6369 = vmatprep.subr.bf16.mxu0 %v6233
    %6370 = vmatpush1.bf16.msra.mxu0 %v6232
    %6371 = vmatprep.subr.bf16.mxu0 %v6235
    %6372 = vmatpush1.bf16.msra.mxu0 %v6234
    %6373 = vmatprep.subr.bf16.mxu0 %v6237
    %6374 = vmatpush1.bf16.msra.mxu0 %v6236
    %6375 = vmatprep.subr.bf16.mxu0 %v6239
    %6376 = vmatpush1.bf16.msra.mxu0 %v6238
    %6377 = vmatprep.subr.bf16.mxu0 %v6241
    %6378 = vmatpush1.bf16.msra.mxu0 %v6240
    %6379 = vmatprep.subr.bf16.mxu0 %v6243
    %6380 = vmatpush1.bf16.msra.mxu0 %v6242
    %6381 = vmatprep.subr.bf16.mxu0 %v6245
    %6382 = vmatpush1.bf16.msra.mxu0 %v6244
    %6383 = vmatprep.subr.bf16.mxu0 %v6247
    %6384 = vmatpush1.bf16.msra.mxu0 %v6246
    %6385 = vmatprep.subr.bf16.mxu0 %v6249
    %6386 = vmatpush1.bf16.msra.mxu0 %v6248
    %6387 = vmatprep.subr.bf16.mxu0 %v6251
    %6388 = vmatpush1.bf16.msra.mxu0 %v6250
    %6389 = vmatprep.subr.bf16.mxu0 %v6253
    %6390 = vmatpush1.bf16.msra.mxu0 %v6252
    %6391 = vmatprep.subr.bf16.mxu0 %v6255
    %6392 = vmatpush1.bf16.msra.mxu0 %v6254
    %6393 = vmatprep.subr.bf16.mxu0 %v6257
    %6394 = vmatpush1.bf16.msra.mxu0 %v6256
    %6395 = vmatprep.subr.bf16.mxu0 %v6259
    %6396 = vmatpush1.bf16.msra.mxu0 %v6258
    %6397 = vmatprep.subr.bf16.mxu0 %v6261
    %6398 = vmatpush1.bf16.msra.mxu0 %v6260
    %6399 = vmatprep.mubr.bf16.mxu0 %v5933
    %6400 = vmatmul.mubr.bf16.gmra.mrb[0].mxu0 %v5932
    %v6401 = vpop.f32.mrb[0].mxu0
    %v6402 = vadd.f32 %v6361, %v6401
    %v6403 = vpop.f32.mrb[0].mxu0
    %v6404 = vadd.f32 %v6363, %v6403
    %v6405 = vpop.f32.mrb[0].mxu0
    %v6406 = vpop.f32.mrb[0].mxu0
    %6407 = vdwg.mxu0
    %v6408 = vrot.slane %v6402, 4
    %v6409 = vadd.f32 %v6402, %v6408
    %v6410 = vrot.slane %v6409, 2
    %v6411 = vadd.f32 %v6409, %v6410
    %v6412 = vrot.slane %v6411, 1
    %v6413 = vadd.f32 %v6411, %v6412
    %v6414 = vrot.slane %v6404, 4
    %v6415 = vadd.f32 %v6404, %v6414
    %v6416 = vrot.slane %v6415, 2
    %v6417 = vadd.f32 %v6415, %v6416
    %v6418 = vrot.slane %v6417, 1
    %v6419 = vadd.f32 %v6417, %v6418
    %v6420 = vmul.f32 %v6413, %v5813
    %v6421 = vmul.f32 %v6419, %v5813
    %v6422 = vsub.f32 %v6402, %v6420
    %v6423 = vsub.f32 %v6404, %v6421
    %v6424 = vmul.f32 %v6422, %v6422
    %v6425 = vmul.f32 %v6423, %v6423
    %v6426 = vrot.slane %v6424, 4
    %v6427 = vadd.f32 %v6424, %v6426
    %v6428 = vrot.slane %v6427, 2
    %v6429 = vadd.f32 %v6427, %v6428
    %v6430 = vrot.slane %v6429, 1
    %v6431 = vadd.f32 %v6429, %v6430
    %v6432 = vrot.slane %v6425, 4
    %v6433 = vadd.f32 %v6425, %v6432
    %v6434 = vrot.slane %v6433, 2
    %v6435 = vadd.f32 %v6433, %v6434
    %v6436 = vrot.slane %v6435, 1
    %v6437 = vadd.f32 %v6435, %v6436
    %v6438 = vmul.f32 %v6431, %v5813
    %v6439 = vmul.f32 %v6437, %v5813
    %v6440 = vadd.f32 %v6438, 1e-05
    %v6441 = vadd.f32 %v6439, 1e-05
    %v6442 = vrsqrt.pop %v6440
    %v6443 = vrsqrt.pop %v6441
    %v6444 = vmul.f32 %v80, %v6442
    %v6445 = vmul.f32 %v81, %v6443
    %v6446 = vmul.f32 %v6420, %v6444
    %v6447 = vmul.f32 %v6421, %v6445
    %v6450 = vrot.slane %v6446, 7
    %v6451 = vrot.slane %v6447, 7
    %v6454 = vsub.f32 %v80, %v6450
    %v6455 = vsub.f32 %v81, %v6451
    %v6456 = vlaneseq
    %v6457 = vshrl.u32 %v6456, 7
    %v6458 = vsub.s32 4, %v6457
    %v6459 = vrot.slane %v6444, %v6458
    %v6460 = vlaneseq
    %v6461 = vshrl.u32 %v6460, 7
    %v6462 = vsub.s32 4, %v6461
    %v6463 = vrot.slane %v6445, %v6462
    %v6464 = vmul.f32 %v6402, %v6459
    %v6465 = vmul.f32 %v6404, %v6463
    %v6466 = vlaneseq
    %v6467 = vshrl.u32 %v6466, 7
    %v6468 = vsub.s32 5, %v6467
    %v6469 = vrot.slane %v6454, %v6468
    %v6470 = vlaneseq
    %v6471 = vshrl.u32 %v6470, 7
    %v6472 = vsub.s32 5, %v6471
    %v6473 = vrot.slane %v6455, %v6472
    %v6474 = vadd.f32 %v6464, %v6469
    %v6475 = vadd.f32 %v6465, %v6473
    %v6476 = vmax.f32 %v6474, 0.0
    %v6477 = vmax.f32 %v6475, 0.0
    %v6478 = vpack.c.bf16 %v6476, %v6476
    %v6479 = vpack.c.bf16 %v6477, %v6477
    %v6480 = vld [vmem:[#allocation7] sm:$0xf]
    %v6481 = vld [vmem:[#allocation7 + $0x4] sm:$0xf]
    %v6482 = vld [vmem:[#allocation7 + $0x8] sm:$0xf]
    %v6483 = vld [vmem:[#allocation7 + $0xc] sm:$0xf]
    %v6484 = vld [vmem:[#allocation7 + $0x10] sm:$0xf]
    %v6485 = vld [vmem:[#allocation7 + $0x14] sm:$0xf]
    %v6486 = vld [vmem:[#allocation7 + $0x18] sm:$0xf]
    %v6487 = vld [vmem:[#allocation7 + $0x1c] sm:$0xf]
    %v6488 = vld [vmem:[#allocation7 + $0x20] sm:$0xf]
    %v6489 = vld [vmem:[#allocation7 + $0x24] sm:$0xf]
    %v6490 = vld [vmem:[#allocation7 + $0x28] sm:$0xf]
    %v6491 = vld [vmem:[#allocation7 + $0x2c] sm:$0xf]
    %v6492 = vld [vmem:[#allocation7 + $0x30] sm:$0xf]
    %v6493 = vld [vmem:[#allocation7 + $0x34] sm:$0xf]
    %v6494 = vld [vmem:[#allocation7 + $0x38] sm:$0xf]
    %v6495 = vld [vmem:[#allocation7 + $0x3c] sm:$0xf]
    %v6496 = vld [vmem:[#allocation7 + $0x40] sm:$0xf]
    %v6497 = vld [vmem:[#allocation7 + $0x44] sm:$0xf]
    %v6498 = vld [vmem:[#allocation7 + $0x48] sm:$0xf]
    %v6499 = vld [vmem:[#allocation7 + $0x4c] sm:$0xf]
    %v6500 = vld [vmem:[#allocation7 + $0x50] sm:$0xf]
    %v6501 = vld [vmem:[#allocation7 + $0x54] sm:$0xf]
    %v6502 = vld [vmem:[#allocation7 + $0x58] sm:$0xf]
    %v6503 = vld [vmem:[#allocation7 + $0x5c] sm:$0xf]
    %v6504 = vld [vmem:[#allocation7 + $0x60] sm:$0xf]
    %v6505 = vld [vmem:[#allocation7 + $0x64] sm:$0xf]
    %v6506 = vld [vmem:[#allocation7 + $0x68] sm:$0xf]
    %v6507 = vld [vmem:[#allocation7 + $0x6c] sm:$0xf]
    %v6508 = vld [vmem:[#allocation7 + $0x70] sm:$0xf]
    %v6509 = vld [vmem:[#allocation7 + $0x74] sm:$0xf]
    %v6510 = vld [vmem:[#allocation7 + $0x78] sm:$0xf]
    %v6511 = vld [vmem:[#allocation7 + $0x7c] sm:$0xf]
    %v6512 = vlaneseq
    %v6513 = vshrl.u32 %v6512, 7
    %v6514 = vsub.s32 6, %v6513
    %v6515 = vrot.slane %v80, %v6514
    %v6548 = vunpack.c.l.b16 %v6480
    %v6549 = vunpack.c.l.b16 %v6481
    %v6550 = vunpack.c.l.b16 %v6482
    %v6551 = vunpack.c.l.b16 %v6483
    %v6552 = vunpack.c.l.b16 %v6484
    %v6553 = vunpack.c.l.b16 %v6485
    %v6554 = vunpack.c.l.b16 %v6486
    %v6555 = vunpack.c.l.b16 %v6487
    %v6556 = vunpack.c.l.b16 %v6488
    %v6557 = vunpack.c.l.b16 %v6489
    %v6558 = vunpack.c.l.b16 %v6490
    %v6559 = vunpack.c.l.b16 %v6491
    %v6560 = vunpack.c.l.b16 %v6492
    %v6561 = vunpack.c.l.b16 %v6493
    %v6562 = vunpack.c.l.b16 %v6494
    %v6563 = vunpack.c.l.b16 %v6495
    %v6564 = vunpack.c.l.b16 %v6496
    %v6565 = vunpack.c.l.b16 %v6497
    %v6566 = vunpack.c.l.b16 %v6498
    %v6567 = vunpack.c.l.b16 %v6499
    %v6568 = vunpack.c.l.b16 %v6500
    %v6569 = vunpack.c.l.b16 %v6501
    %v6570 = vunpack.c.l.b16 %v6502
    %v6571 = vunpack.c.l.b16 %v6503
    %v6572 = vunpack.c.l.b16 %v6504
    %v6573 = vunpack.c.l.b16 %v6505
    %v6574 = vunpack.c.l.b16 %v6506
    %v6575 = vunpack.c.l.b16 %v6507
    %v6576 = vunpack.c.l.b16 %v6508
    %v6577 = vunpack.c.l.b16 %v6509
    %v6578 = vunpack.c.l.b16 %v6510
    %v6579 = vunpack.c.l.b16 %v6511
    %v6580 = vpack.c.b16 %v6549, %v6548
    %v6581 = vpack.c.b16 %v6551, %v6550
    %v6582 = vpack.c.b16 %v6553, %v6552
    %v6583 = vpack.c.b16 %v6555, %v6554
    %v6584 = vpack.c.b16 %v6557, %v6556
    %v6585 = vpack.c.b16 %v6559, %v6558
    %v6586 = vpack.c.b16 %v6561, %v6560
    %v6587 = vpack.c.b16 %v6563, %v6562
    %v6588 = vpack.c.b16 %v6565, %v6564
    %v6589 = vpack.c.b16 %v6567, %v6566
    %v6590 = vpack.c.b16 %v6569, %v6568
    %v6591 = vpack.c.b16 %v6571, %v6570
    %v6592 = vpack.c.b16 %v6573, %v6572
    %v6593 = vpack.c.b16 %v6575, %v6574
    %v6594 = vpack.c.b16 %v6577, %v6576
    %v6595 = vpack.c.b16 %v6579, %v6578
    %6612 = vmatprep.subr.bf16.mxu0 0
    %6613 = vmatpush1.bf16.msra.mxu0 %v6580
    %6614 = vmatprep.subr.bf16.mxu0 0
    %6615 = vmatpush1.bf16.msra.mxu0 %v6581
    %6616 = vmatprep.subr.bf16.mxu0 0
    %6617 = vmatpush1.bf16.msra.mxu0 %v6582
    %6618 = vmatprep.subr.bf16.mxu0 0
    %6619 = vmatpush1.bf16.msra.mxu0 %v6583
    %6620 = vmatprep.subr.bf16.mxu0 0
    %6621 = vmatpush1.bf16.msra.mxu0 %v6584
    %6622 = vmatprep.subr.bf16.mxu0 0
    %6623 = vmatpush1.bf16.msra.mxu0 %v6585
    %6624 = vmatprep.subr.bf16.mxu0 0
    %6625 = vmatpush1.bf16.msra.mxu0 %v6586
    %6626 = vmatprep.subr.bf16.mxu0 0
    %6627 = vmatpush1.bf16.msra.mxu0 %v6587
    %6628 = vmatprep.subr.bf16.mxu0 0
    %6629 = vmatpush1.bf16.msra.mxu0 %v6588
    %6630 = vmatprep.subr.bf16.mxu0 0
    %6631 = vmatpush1.bf16.msra.mxu0 %v6589
    %6632 = vmatprep.subr.bf16.mxu0 0
    %6633 = vmatpush1.bf16.msra.mxu0 %v6590
    %6634 = vmatprep.subr.bf16.mxu0 0
    %6635 = vmatpush1.bf16.msra.mxu0 %v6591
    %6636 = vmatprep.subr.bf16.mxu0 0
    %6637 = vmatpush1.bf16.msra.mxu0 %v6592
    %6638 = vmatprep.subr.bf16.mxu0 0
    %6639 = vmatpush1.bf16.msra.mxu0 %v6593
    %6640 = vmatprep.subr.bf16.mxu0 0
    %6641 = vmatpush1.bf16.msra.mxu0 %v6594
    %6642 = vmatprep.subr.bf16.mxu0 0
    %6643 = vmatpush1.bf16.msra.mxu0 %v6595
    %6644 = vmatprep.mubr.bf16.mxu0 %v6479
    %6645 = vmatmul.mubr.bf16.gmra.mrb[0].mxu0 %v6478
    %v6646 = vpop.f32.mrb[0].mxu0
    %v6647 = vadd.f32 %v6515, %v6646
    %v6648 = vpop.f32.mrb[0].mxu0
    %v6649 = vpop.f32.mrb[0].mxu0
    %v6650 = vpop.f32.mrb[0].mxu0
    %6651 = vdwg.mxu0
    %v6652 = vrot.slane %v6647, 4
    %v6653 = vadd.f32 %v6647, %v6652
    %v6654 = vrot.slane %v6653, 2
    %v6655 = vadd.f32 %v6653, %v6654
    %v6656 = vrot.slane %v6655, 1
    %v6657 = vadd.f32 %v6655, %v6656
    %v6658 = vmul.f32 %v6657, %v5813
    %v6659 = vsub.f32 %v6647, %v6658
    %v6660 = vmul.f32 %v6659, %v6659
    %v6661 = vrot.slane %v6660, 4
    %v6662 = vadd.f32 %v6660, %v6661
    %v6663 = vrot.slane %v6662, 2
    %v6664 = vadd.f32 %v6662, %v6663
    %v6665 = vrot.slane %v6664, 1
    %v6666 = vadd.f32 %v6664, %v6665
    %v6667 = vmul.f32 %v6666, %v5813
    %v6668 = vadd.f32 %v6667, 1e-05
    %v6669 = vrsqrt.pop %v6668
    %v6670 = vmul.f32 %v80, %v6669
    %v6671 = vmul.f32 %v6658, %v6670
    %v6673 = vrot.slane %v6671, 7
    %v6675 = vsub.f32 %v84, %v6673
    %v6676 = vlaneseq
    %v6677 = vshrl.u32 %v6676, 7
    %v6678 = vsub.s32 7, %v6677
    %v6679 = vrot.slane %v6670, %v6678
    %v6680 = vmul.f32 %v6647, %v6679
    %v6681 = vlaneseq
    %v6682 = vshrl.u32 %v6681, 7
    %v6683 = vsub.s32 0, %v6682
    %v6684 = vrot.slane %v6675, %v6683
    %v6685 = vadd.f32 %v6680, %v6684
    %v6686 = vmax.f32 %v6685, 0.0
    %v6687 = vpack.c.bf16 %v6686, %v6686
    %v6688 = vld [vmem:[%s4] sm:$0xf]
    %v6689 = vld [vmem:[%s4 + $0x4] sm:$0xf]
    %v6690 = vld [vmem:[%s4 + $0x8] sm:$0xf]
    %v6691 = vld [vmem:[%s4 + $0xc] sm:$0xf]
    %v6692 = vld [vmem:[%s4 + $0x10] sm:$0xf]
    %v6693 = vld [vmem:[%s4 + $0x14] sm:$0xf]
    %v6694 = vld [vmem:[%s4 + $0x18] sm:$0xf]
    %v6695 = vld [vmem:[%s4 + $0x1c] sm:$0xf]
    %v6696 = vld [vmem:[%s4 + $0x20] sm:$0xf]
    %v6697 = vld [vmem:[%s4 + $0x24] sm:$0xf]
    %v6698 = vld [vmem:[%s4 + $0x28] sm:$0xf]
    %v6699 = vld [vmem:[%s4 + $0x2c] sm:$0xf]
    %v6700 = vld [vmem:[%s4 + $0x30] sm:$0xf]
    %v6701 = vld [vmem:[%s4 + $0x34] sm:$0xf]
    %v6702 = vld [vmem:[%s4 + $0x38] sm:$0xf]
    %v6703 = vld [vmem:[%s4 + $0x3c] sm:$0xf]
    %v6704 = vlaneseq
    %v6705 = vshrl.u32 %v6704, 7
    %v6706 = vsub.s32 1, %v6705
    %v6707 = vrot.slane %v84, %v6706
    %v6724 = vunpack.c.l.b16 %v6688
    %v6725 = vunpack.c.l.b16 %v6689
    %v6726 = vunpack.c.l.b16 %v6690
    %v6727 = vunpack.c.l.b16 %v6691
    %v6728 = vunpack.c.l.b16 %v6692
    %v6729 = vunpack.c.l.b16 %v6693
    %v6730 = vunpack.c.l.b16 %v6694
    %v6731 = vunpack.c.l.b16 %v6695
    %v6732 = vunpack.c.l.b16 %v6696
    %v6733 = vunpack.c.l.b16 %v6697
    %v6734 = vunpack.c.l.b16 %v6698
    %v6735 = vunpack.c.l.b16 %v6699
    %v6736 = vunpack.c.l.b16 %v6700
    %v6737 = vunpack.c.l.b16 %v6701
    %v6738 = vunpack.c.l.b16 %v6702
    %v6739 = vunpack.c.l.b16 %v6703
    %v6740 = vpack.c.b16 %v6725, %v6724
    %v6741 = vpack.c.b16 %v6727, %v6726
    %v6742 = vpack.c.b16 %v6729, %v6728
    %v6743 = vpack.c.b16 %v6731, %v6730
    %v6744 = vpack.c.b16 %v6733, %v6732
    %v6745 = vpack.c.b16 %v6735, %v6734
    %v6746 = vpack.c.b16 %v6737, %v6736
    %v6747 = vpack.c.b16 %v6739, %v6738
    %6756 = vmatprep.subr.bf16.mxu0 0
    %6757 = vmatpush1.bf16.msra.mxu0 %v6740
    %6758 = vmatprep.subr.bf16.mxu0 0
    %6759 = vmatpush1.bf16.msra.mxu0 %v6741
    %6760 = vmatprep.subr.bf16.mxu0 0
    %6761 = vmatpush1.bf16.msra.mxu0 %v6742
    %6762 = vmatprep.subr.bf16.mxu0 0
    %6763 = vmatpush1.bf16.msra.mxu0 %v6743
    %6764 = vmatprep.subr.bf16.mxu0 0
    %6765 = vmatpush1.bf16.msra.mxu0 %v6744
    %6766 = vmatprep.subr.bf16.mxu0 0
    %6767 = vmatpush1.bf16.msra.mxu0 %v6745
    %6768 = vmatprep.subr.bf16.mxu0 0
    %6769 = vmatpush1.bf16.msra.mxu0 %v6746
    %6770 = vmatprep.subr.bf16.mxu0 0
    %6771 = vmatpush1.bf16.msra.mxu0 %v6747
    %6772 = vmatprep.subr.bf16.mxu0 0
    %6773 = vmatpush1.bf16.msra.mxu0 0
    %6774 = vmatprep.subr.bf16.mxu0 0
    %6775 = vmatpush1.bf16.msra.mxu0 0
    %6776 = vmatprep.subr.bf16.mxu0 0
    %6777 = vmatpush1.bf16.msra.mxu0 0
    %6778 = vmatprep.subr.bf16.mxu0 0
    %6779 = vmatpush1.bf16.msra.mxu0 0
    %6780 = vmatprep.subr.bf16.mxu0 0
    %6781 = vmatpush1.bf16.msra.mxu0 0
    %6782 = vmatprep.subr.bf16.mxu0 0
    %6783 = vmatpush1.bf16.msra.mxu0 0
    %6784 = vmatprep.subr.bf16.mxu0 0
    %6785 = vmatpush1.bf16.msra.mxu0 0
    %6786 = vmatprep.subr.bf16.mxu0 0
    %6787 = vmatpush1.bf16.msra.mxu0 0
    %6788 = vmatprep.mubr.bf16.mxu0 0
    %6789 = vmatmul.mubr.bf16.gmra.mrb[0].mxu0 %v6687
    %v6790 = vpop.f32.mrb[0].mxu0
    %v6791 = vadd.f32 %v6707, %v6790
    %v6792 = vpop.f32.mrb[0].mxu0
    %v6793 = vpop.f32.mrb[0].mxu0
    %v6794 = vpop.f32.mrb[0].mxu0
    %6795 = vdwg.mxu0
    %vm6796 = vcmask 80896
    %v6797 = vsel %vm6796, %v6791, 0.0
    %v6798 = vrot.slane %v6797, 4
    %v6799 = vadd.f32 %v6797, %v6798
    %v6800 = vrot.slane %v6799, 2
    %v6801 = vadd.f32 %v6799, %v6800
    %v6802 = vrot.slane %v6801, 1
    %v6803 = vadd.f32 %v6801, %v6802
    %v6804 = vmul.f32 %v6803, %v5813
    %v6805 = vsub.f32 %v6791, %v6804
    %v6806 = vmul.f32 %v6805, %v6805
    %v6807 = vsel %vm6796, %v6806, 0.0
    %v6808 = vrot.slane %v6807, 4
    %v6809 = vadd.f32 %v6807, %v6808
    %v6810 = vrot.slane %v6809, 2
    %v6811 = vadd.f32 %v6809, %v6810
    %v6812 = vrot.slane %v6811, 1
    %v6813 = vadd.f32 %v6811, %v6812
    %v6814 = vmul.f32 %v6813, %v5813
    %v6815 = vadd.f32 %v6814, 1e-05
    %v6816 = vrsqrt.pop %v6815
    %v6817 = vsub.f32 0.0, %v6804
    %v6818 = vmul.f32 %v6817, %v6816
    %v6819 = vmul.f32 %v6791, %v6816
    %v6820 = vadd.f32 %v6819, %v6818
    %6821 = vst.msk [vmem:[#allocation10] sm:$0xff] %vm6796, %v6820
    // Predicated region
    $region42: #{custom_cnn_4_forward.1} parent=1 // pred_check
      _
    $region43: #{custom_cnn_4_forward.1} parent=1 // pred_check_branch
      %6823 = sbr.rel (0) target = $region45
    $region44: #{custom_cnn_4_forward.1} parent=1 // pred_region
      %s6825 = ssub.s32 128, 128
      %6826 = vsyncadd [#allocation4], %s6825
      %s6828 = sshll.u32 [#allocation10], 4
      %s6829 = int_to_ptr.vmem [resolvable:$true] %s6828
      %6831 = dma.vmem_to_hbm [thread:$0]  %s6829, 128, %s6, [#allocation4]
    $region45: #{custom_cnn_4_forward.1} parent=1 // pred_fallthru
      _
    // Predicated region
    $region46: #{custom_cnn_4_forward.1} parent=1 // pred_check
      _
    $region47: #{custom_cnn_4_forward.1} parent=1 // pred_check_branch
      %6833 = sbr.rel (0) target = $region49
    $region48: #{custom_cnn_4_forward.1} parent=1 // pred_region
      %6834 = dma.done [#allocation4], 128
    $region49: #{custom_cnn_4_forward.1} parent=1 // pred_fallthru
      _
    %6835 = vsyncpa [#allocation3], 1
    %6836 = vsyncpa [#allocation6], 1
    %6837 = vsyncpa [#allocation9], 1
    %6838 = vsyncpa [#allocation4], 1

</llo_original>
